<compile_context>
chip_gen: v6e
topology: v6e:2x2x1
jax: 0.10.0
libtpu: 0.0.40
codegen_flags: <defaults>
</compile_context>

<pallas_src>
import jax
import jax.numpy as jnp
from jax.experimental import pallas as pl
from jax.experimental.pallas import tpu as pltpu

NEG_SLOPE = 0.01          # default negative_slope of nn.LeakyReLU / F.leaky_relu
HIDDEN = 32               # GRU hidden size
GRU_IN = 247              # GRU input feature size (hardcoded in the PyTorch module)
NPHASE = 250              # length of each of the 4 input phases (4 * 250 = 1000 positions)
MXU_DTYPE = jnp.bfloat16  # matmul operand dtype; accumulation stays f32


def _leaky(x):
    return jnp.where(x >= 0, x, NEG_SLOPE * x)


def _mm(a, b):
    # bf16 MXU operands, f32 accumulation.
    return jnp.dot(a.astype(MXU_DTYPE), b.astype(MXU_DTYPE),
                   preferred_element_type=jnp.float32)


# ---------------------------------------------------------------------------
# The fused kernel
# ---------------------------------------------------------------------------
def protein_cnn_kernel(x_ref, w1_ref, b1_ref, w2_ref, b2_ref,
                       wih_ref, bih_ref, whh_ref, bhh_ref, o_ref):
    B, T, _ = o_ref.shape            # (B_block, T=C2, 2H)
    H = HIDDEN
    Q = wih_ref.shape[0]             # 247 = conv output length = GRU feature size
    G3 = 3 * H

    # weights / biases loaded ONCE (hoisted out of the batch loop)
    w1 = w1_ref[...]                 # (C1, 3*C0)  bf16, conv1 taps folded along K
    w2 = w2_ref[...]                 # (C2, 6*C1)  bf16, conv2 taps folded along K
    b1 = b1_ref[...]                 # (C1, 1)     f32
    b2 = b2_ref[...]                 # (C2, 1)     f32
    wih = wih_ref[...]               # (Q, 6H)     bf16, cols [fw r z n | bw r z n]
    bih = bih_ref[...]               # (1, 6H)     f32
    whh = whh_ref[...]               # (2H, 6H)    bf16, block-diag [fw | bw]
    bhh = bhh_ref[...]               # (1, 6H)     f32

    # ---- conv stack (channels-first: positions on the 128-lane axis) -------------
    h2_list = []
    for b in range(B):
        xs = x_ref[b]                # (4, 3*C0, NP) bf16: host-prestacked conv1 tap slabs
        # conv1 (k=3) + LeakyReLU + MaxPool(2): even / odd pooled positions
        h1e = _leaky(jnp.maximum(_mm(w1, xs[0]), _mm(w1, xs[1])) + b1)    # (C1, NP)
        h1o = _leaky(jnp.maximum(_mm(w1, xs[2]), _mm(w1, xs[3])) + b1)    # (C1, NP), last col unused
        # conv2 (k=6) + LeakyReLU + MaxPool(2): taps stacked along channels -> 1 matmul/branch
        ae = jnp.concatenate([h1e[:, 0:Q], h1o[:, 0:Q],
                              h1e[:, 1:Q + 1], h1o[:, 1:Q + 1],
                              h1e[:, 2:Q + 2], h1o[:, 2:Q + 2]], axis=0)  # (6*C1, Q)
        af = jnp.concatenate([h1o[:, 0:Q], h1e[:, 1:Q + 1],
                              h1o[:, 1:Q + 1], h1e[:, 2:Q + 2],
                              h1o[:, 2:Q + 2], h1e[:, 3:Q + 3]], axis=0)  # (6*C1, Q)
        h2 = _leaky(jnp.maximum(_mm(w2, ae), _mm(w2, af)) + b2)           # (T, Q)
        h2_list.append(h2)

    # ---- GRU input projection: ONE matmul for all batches and both directions ----
    h2_all = jnp.concatenate(h2_list, axis=0)                  # (B*T, Q), batch-major
    xg_bm = _mm(h2_all, wih) + bih                             # (B*T, 6H), f32
    # one-time relayout to time-major so per-step reads are plain static slices
    xg = jnp.stack([xg_bm[b * T:(b + 1) * T, :] for b in range(B)], axis=1)  # (T, B, 6H)

    # ---- merged bidirectional GRU recurrence: fully unrolled, batched over B -----
    h = jnp.zeros((B, 2 * H), jnp.float32)                     # [h_fw | h_bw]
    outs_f = []                                                # fw hidden at time t
    outs_b = []                                                # bw hidden at time T-1-t
    for t in range(T):
        gh = _mm(h, whh) + bhh                                 # (B, 6H): one MXU pass / step
        gi_f = xg[t, :, 0:G3]                                  # fw gates, input time t
        gi_b = xg[T - 1 - t, :, G3:2 * G3]                     # bw gates, input time T-1-t
        gh_f = gh[:, 0:G3]
        gh_b = gh[:, G3:2 * G3]
        h_f = h[:, 0:H]
        h_b = h[:, H:2 * H]
        # forward direction
        r_f = jax.nn.sigmoid(gi_f[:, 0:H] + gh_f[:, 0:H])
        z_f = jax.nn.sigmoid(gi_f[:, H:2 * H] + gh_f[:, H:2 * H])
        n_f = jnp.tanh(gi_f[:, 2 * H:3 * H] + r_f * gh_f[:, 2 * H:3 * H])
        h_f = (1.0 - z_f) * n_f + z_f * h_f
        # backward direction
        r_b = jax.nn.sigmoid(gi_b[:, 0:H] + gh_b[:, 0:H])
        z_b = jax.nn.sigmoid(gi_b[:, H:2 * H] + gh_b[:, H:2 * H])
        n_b = jnp.tanh(gi_b[:, 2 * H:3 * H] + r_b * gh_b[:, 2 * H:3 * H])
        h_b = (1.0 - z_b) * n_b + z_b * h_b
        h = jnp.concatenate([h_f, h_b], axis=-1)
        outs_f.append(h_f)
        outs_b.append(h_b)

    # single full-block store; LeakyReLU applied once (stores hoisted out of the chain)
    rows = [jnp.concatenate([outs_f[t], outs_b[T - 1 - t]], axis=-1) for t in range(T)]
    out = jnp.stack(rows, axis=1)                              # (B, T, 2H)
    o_ref[...] = _leaky(out).astype(o_ref.dtype)


# ---------------------------------------------------------------------------
# Host-side, one-time weight packing (PyTorch layouts -> kernel layouts)
# ---------------------------------------------------------------------------
def pack_params(p):
    H = HIDDEN
    K1 = p['w1'].shape[2]
    K2 = p['w2'].shape[2]
    # conv taps folded along the contraction axis: (Cout, K*Cin), tap-major column blocks
    w1cat = jnp.concatenate([p['w1'][:, :, k] for k in range(K1)], axis=1)   # (C1, 3*C0)
    w2cat = jnp.concatenate([p['w2'][:, :, k] for k in range(K2)], axis=1)   # (C2, 6*C1)
    # dense merged GRU input weight: cols [fw r z n | bw r z n]
    wih = jnp.concatenate([p['w_ih_f'].T, p['w_ih_b'].T], axis=1)            # (Q, 6H)
    # block-diagonal recurrent weight: h_fw rows -> fw gate cols, h_bw rows -> bw gate cols
    whh = jnp.zeros((2 * H, 6 * H), jnp.float32)
    whh = whh.at[0:H, 0:3 * H].set(p['w_hh_f'].T)
    whh = whh.at[H:2 * H, 3 * H:6 * H].set(p['w_hh_b'].T)
    bih = jnp.concatenate([p['b_ih_f'], p['b_ih_b']]).reshape(1, 6 * H)
    bhh = jnp.concatenate([p['b_hh_f'], p['b_hh_b']]).reshape(1, 6 * H)
    return dict(
        w1cat=w1cat.astype(MXU_DTYPE), b1c=p['b1'].reshape(-1, 1).astype(jnp.float32),
        w2cat=w2cat.astype(MXU_DTYPE), b2c=p['b2'].reshape(-1, 1).astype(jnp.float32),
        wih=wih.astype(MXU_DTYPE), bih=bih.astype(jnp.float32),
        whh=whh.astype(MXU_DTYPE), bhh=bhh.astype(jnp.float32))


# ---------------------------------------------------------------------------
# Host-side input prep: permute + 4-way phase split + conv1 tap-stacks
# ---------------------------------------------------------------------------
def _prepare_input(v):
    """(B, L, C0) -> (B, 4, 3*C0, NPHASE) bf16 conv1 tap slabs (one stacked operand)."""
    vt = jnp.transpose(v, (0, 2, 1))[:, :, :4 * NPHASE]        # module's permute(0,2,1)
    x0, x1, x2, x3 = (vt[:, :, r::4] for r in range(4))        # each (B, C0, 250)
    m = NPHASE - 1

    def pad1(z):                                               # (B, 3C0, 249) -> (..., 250)
        return jnp.pad(z, ((0, 0), (0, 0), (0, 1)))

    xa = jnp.concatenate([x0, x1, x2], axis=1)                                          # pos 4j
    xb = jnp.concatenate([x1, x2, x3], axis=1)                                          # pos 4j+1
    xc = pad1(jnp.concatenate([x2[:, :, :m], x3[:, :, :m], x0[:, :, 1:]], axis=1))      # pos 4j+2
    xd = pad1(jnp.concatenate([x3[:, :, :m], x0[:, :, 1:], x1[:, :, 1:]], axis=1))      # pos 4j+3
    return jnp.stack([xa, xb, xc, xd], axis=1).astype(MXU_DTYPE)                        # (B,4,3C0,250)


def _num_grid_blocks(batch):
    # v7x has 2 TensorCores -> split the batch over a 'parallel' grid there; on v5e/v6e a
    # multi-step grid is just a serial loop (+~0.35us/step), so keep a single fused block.
    try:
        kind = jax.devices()[0].device_kind.lower()
    except Exception:
        return 1
    if ("v7" in kind or "7x" in kind) and batch >= 2 and batch % 2 == 0:
        return 2
    return 1


# ---------------------------------------------------------------------------
# Forward wrapper (input prep + one pallas_call + the module's final permute)
# ---------------------------------------------------------------------------
def protein_cnn_forward(v, packed, grid_blocks=None):
    """v: (B, L, C0) with 1000 <= L <= 1003 (so the conv stack yields 247 positions).
    Returns (B, 2*HIDDEN, C2), exactly the PyTorch module's output layout."""
    B, L, _ = v.shape
    T = packed['w2cat'].shape[0]                 # C2 == GRU sequence length
    H = HIDDEN
    assert 4 * NPHASE <= L <= 4 * NPHASE + 3, L
    assert packed['wih'].shape[0] == GRU_IN == NPHASE - 3

    if grid_blocks is None:
        grid_blocks = _num_grid_blocks(B)
    Bb = B // grid_blocks
    assert Bb * grid_blocks == B

    xstk = _prepare_input(v)                     # (B, 4, 3*C0, NPHASE)

    def full_spec(shape):
        nd = len(shape)
        return pl.BlockSpec(shape, lambda i, _n=nd: (0,) * _n)

    weights = (packed['w1cat'], packed['b1c'], packed['w2cat'], packed['b2c'],
               packed['wih'], packed['bih'], packed['whh'], packed['bhh'])
    in_specs = [pl.BlockSpec((Bb,) + xstk.shape[1:], lambda i: (i, 0, 0, 0))]
    in_specs += [full_spec(w.shape) for w in weights]

    out = pl.pallas_call(
        protein_cnn_kernel,
        out_shape=jax.ShapeDtypeStruct((B, T, 2 * H), v.dtype),
        grid=(grid_blocks,),
        in_specs=in_specs,
        out_specs=pl.BlockSpec((Bb, T, 2 * H), lambda i: (i, 0, 0)),
        compiler_params=pltpu.CompilerParams(
            dimension_semantics=("parallel",) if grid_blocks > 1 else ("arbitrary",)),
    )(xstk, *weights)

    # final permute of the PyTorch module: (B, T, 2H) -> (B, 2H, T)
    return jnp.transpose(out, (0, 2, 1))


# ---------------------------------------------------------------------------
# Pure-JAX reference (faithful to the PyTorch module) for a numerics check
# ---------------------------------------------------------------------------
def reference_forward(v, p):
    def conv1d(x, w, b):                      # x: (B, Cin, L), w: (Cout, Cin, K)
        K = w.shape[2]
        L_out = x.shape[2] - K + 1
        y = b[None, :, None]
        for k in range(K):
            y = y + jnp.einsum('oc,bcl->bol', w[:, :, k], x[:, :, k:k + L_out])
        return y

    def maxpool2(x):                          # (B, C, L) -> (B, C, L//2)
        L2 = (x.shape[2] // 2) * 2
        return jnp.maximum(x[:, :, 0:L2:2], x[:, :, 1:L2:2])

    x = jnp.transpose(v, (0, 2, 1))
    x = maxpool2(_leaky(conv1d(x, p['w1'], p['b1'])))
    x = maxpool2(_leaky(conv1d(x, p['w2'], p['b2'])))          # (B, C2, 247)

    H = HIDDEN

    def gru_direction(seq, w_ih, w_hh, b_ih, b_hh, reverse):
        B_, T_, _ = seq.shape
        hcur = jnp.zeros((B_, H), jnp.float32)
        outs = [None] * T_
        order = range(T_ - 1, -1, -1) if reverse else range(T_)
        for t in order:
            xt = seq[:, t, :]
            gi = xt @ w_ih.T + b_ih
            gh = hcur @ w_hh.T + b_hh
            r = jax.nn.sigmoid(gi[:, 0:H] + gh[:, 0:H])
            z = jax.nn.sigmoid(gi[:, H:2 * H] + gh[:, H:2 * H])
            n = jnp.tanh(gi[:, 2 * H:3 * H] + r * gh[:, 2 * H:3 * H])
            hcur = (1.0 - z) * n + z * hcur
            outs[t] = hcur
        return jnp.stack(outs, axis=1)

    of = gru_direction(x, p['w_ih_f'], p['w_hh_f'], p['b_ih_f'], p['b_hh_f'], False)
    ob = gru_direction(x, p['w_ih_b'], p['w_hh_b'], p['b_ih_b'], p['b_hh_b'], True)
    out = _leaky(jnp.concatenate([of, ob], axis=-1))
    return jnp.transpose(out, (0, 2, 1))


if __name__ == "__main__":
    B = 2
    in_ch = [4, 8, 16]   # GRU sequence length == in_ch[2]
    L = 1000             # conv stack -> 247 positions (required by the module's GRU(247, 32))
    G = 3 * HIDDEN

    keys = jax.random.split(jax.random.PRNGKey(0), 13)
    params = {
        'w1': 0.10 * jax.random.normal(keys[0], (in_ch[1], in_ch[0], 3), jnp.float32),
        'b1': 0.10 * jax.random.normal(keys[1], (in_ch[1],), jnp.float32),
        'w2': 0.10 * jax.random.normal(keys[2], (in_ch[2], in_ch[1], 6), jnp.float32),
        'b2': 0.10 * jax.random.normal(keys[3], (in_ch[2],), jnp.float32),
        'w_ih_f': 0.05 * jax.random.normal(keys[4], (G, GRU_IN), jnp.float32),
        'w_hh_f': 0.05 * jax.random.normal(keys[5], (G, HIDDEN), jnp.float32),
        'b_ih_f': 0.05 * jax.random.normal(keys[6], (G,), jnp.float32),
        'b_hh_f': 0.05 * jax.random.normal(keys[7], (G,), jnp.float32),
        'w_ih_b': 0.05 * jax.random.normal(keys[8], (G, GRU_IN), jnp.float32),
        'w_hh_b': 0.05 * jax.random.normal(keys[9], (G, HIDDEN), jnp.float32),
        'b_ih_b': 0.05 * jax.random.normal(keys[10], (G,), jnp.float32),
        'b_hh_b': 0.05 * jax.random.normal(keys[11], (G,), jnp.float32),
    }
    v = jax.random.normal(keys[12], (B, L, in_ch[0]), jnp.float32)

    packed = pack_params(params)                       # one-time host-side weight packing
    fwd = jax.jit(protein_cnn_forward)
    out = jax.block_until_ready(fwd(v, packed))

    assert out.shape == (B, 2 * HIDDEN, in_ch[2]), out.shape
    assert bool(jnp.all(jnp.isfinite(out)))

    ref = jax.block_until_ready(jax.jit(reference_forward)(v, params))
    max_err = float(jnp.max(jnp.abs(out - ref)))
    # bf16 MXU operands with f32 accumulation -> slightly wider tolerance than pure f32
    assert bool(jnp.allclose(out, ref, rtol=2e-2, atol=2e-2)), max_err

    print("KERNEL_OK")
</pallas_src>

<mosaic_0001>
module attributes {stable_mosaic.version = 11 : i64} {
  func.func @protein_cnn_kernel(%arg0: i32, %arg1: memref<2x4x12x250xbf16, #tpu.memory_space<vmem>>, %arg2: memref<8x12xbf16, #tpu.memory_space<vmem>>, %arg3: memref<8x1xf32, #tpu.memory_space<vmem>>, %arg4: memref<16x48xbf16, #tpu.memory_space<vmem>>, %arg5: memref<16x1xf32, #tpu.memory_space<vmem>>, %arg6: memref<247x192xbf16, #tpu.memory_space<vmem>>, %arg7: memref<1x192xf32, #tpu.memory_space<vmem>>, %arg8: memref<64x192xbf16, #tpu.memory_space<vmem>>, %arg9: memref<1x192xf32, #tpu.memory_space<vmem>>, %arg10: memref<2x16x64xf32, #tpu.memory_space<vmem>>) attributes {dimension_semantics = [#tpu.dimension_semantics<arbitrary>], iteration_bounds = array<i64: 1>, scalar_prefetch = 0 : i64, scratch_operands = 0 : i64, tpu.core_type = #tpu.core_type<tc>, window_params = [{transform_indices = @transform_0, window_bounds = array<i64: 2, 4, 12, 250>}, {pipeline_mode = #tpu.pipeline_mode<synchronous>, transform_indices = @transform_1, window_bounds = array<i64: 8, 12>}, {pipeline_mode = #tpu.pipeline_mode<synchronous>, transform_indices = @transform_2, window_bounds = array<i64: 8, 1>}, {pipeline_mode = #tpu.pipeline_mode<synchronous>, transform_indices = @transform_3, window_bounds = array<i64: 16, 48>}, {pipeline_mode = #tpu.pipeline_mode<synchronous>, transform_indices = @transform_4, window_bounds = array<i64: 16, 1>}, {pipeline_mode = #tpu.pipeline_mode<synchronous>, transform_indices = @transform_5, window_bounds = array<i64: 247, 192>}, {pipeline_mode = #tpu.pipeline_mode<synchronous>, transform_indices = @transform_6, window_bounds = array<i64: 1, 192>}, {pipeline_mode = #tpu.pipeline_mode<synchronous>, transform_indices = @transform_7, window_bounds = array<i64: 64, 192>}, {pipeline_mode = #tpu.pipeline_mode<synchronous>, transform_indices = @transform_8, window_bounds = array<i64: 1, 192>}, {transform_indices = @transform_9, window_bounds = array<i64: 2, 16, 64>}]} {
    %c0 = arith.constant 0 : index
    %c0_0 = arith.constant 0 : index
    %0 = vector.load %arg2[%c0, %c0_0] : memref<8x12xbf16, #tpu.memory_space<vmem>>, vector<8x12xbf16>
    %c0_1 = arith.constant 0 : index
    %c0_2 = arith.constant 0 : index
    %1 = vector.load %arg4[%c0_1, %c0_2] : memref<16x48xbf16, #tpu.memory_space<vmem>>, vector<16x48xbf16>
    %c0_3 = arith.constant 0 : index
    %c0_4 = arith.constant 0 : index
    %2 = vector.load %arg3[%c0_3, %c0_4] : memref<8x1xf32, #tpu.memory_space<vmem>>, vector<8x1xf32>
    %c0_5 = arith.constant 0 : index
    %c0_6 = arith.constant 0 : index
    %3 = vector.load %arg5[%c0_5, %c0_6] : memref<16x1xf32, #tpu.memory_space<vmem>>, vector<16x1xf32>
    %c0_7 = arith.constant 0 : index
    %c0_8 = arith.constant 0 : index
    %4 = vector.load %arg6[%c0_7, %c0_8] : memref<247x192xbf16, #tpu.memory_space<vmem>>, vector<247x192xbf16>
    %c0_9 = arith.constant 0 : index
    %c0_10 = arith.constant 0 : index
    %5 = vector.load %arg7[%c0_9, %c0_10] : memref<1x192xf32, #tpu.memory_space<vmem>>, vector<1x192xf32>
    %c0_11 = arith.constant 0 : index
    %c0_12 = arith.constant 0 : index
    %6 = vector.load %arg8[%c0_11, %c0_12] : memref<64x192xbf16, #tpu.memory_space<vmem>>, vector<64x192xbf16>
    %c0_13 = arith.constant 0 : index
    %c0_14 = arith.constant 0 : index
    %7 = vector.load %arg9[%c0_13, %c0_14] : memref<1x192xf32, #tpu.memory_space<vmem>>, vector<1x192xf32>
    %c0_15 = arith.constant 0 : index
    %c0_16 = arith.constant 0 : index
    %c0_17 = arith.constant 0 : index
    %c0_18 = arith.constant 0 : index
    %8 = vector.load %arg1[%c0_15, %c0_16, %c0_17, %c0_18] : memref<2x4x12x250xbf16, #tpu.memory_space<vmem>>, vector<1x4x12x250xbf16>
    %9 = vector.shape_cast %8 : vector<1x4x12x250xbf16> to vector<4x12x250xbf16>
    %10 = vector.extract_strided_slice %9 {offsets = [0, 0, 0], sizes = [1, 12, 250], strides = [1, 1, 1]} : vector<4x12x250xbf16> to vector<1x12x250xbf16>
    %11 = vector.shape_cast %10 : vector<1x12x250xbf16> to vector<12x250xbf16>
    %cst = arith.constant dense<0.000000e+00> : vector<8x250xf32>
    %12 = tpu.matmul %0, %11, %cst {dimension_numbers = #tpu.dot_dimension_numbers<[1], [0], [0], [1], [0, 0, 1, 1], [], []>} : vector<8x12xbf16>, vector<12x250xbf16>, vector<8x250xf32> -> vector<8x250xf32>
    %13 = vector.extract_strided_slice %9 {offsets = [1, 0, 0], sizes = [1, 12, 250], strides = [1, 1, 1]} : vector<4x12x250xbf16> to vector<1x12x250xbf16>
    %14 = vector.shape_cast %13 : vector<1x12x250xbf16> to vector<12x250xbf16>
    %cst_19 = arith.constant dense<0.000000e+00> : vector<8x250xf32>
    %15 = tpu.matmul %0, %14, %cst_19 {dimension_numbers = #tpu.dot_dimension_numbers<[1], [0], [0], [1], [0, 0, 1, 1], [], []>} : vector<8x12xbf16>, vector<12x250xbf16>, vector<8x250xf32> -> vector<8x250xf32>
    %16 = arith.maximumf %12, %15 : vector<8x250xf32>
    %17 = vector.broadcast %2 : vector<8x1xf32> to vector<8x250xf32>
    %18 = arith.addf %16, %17 : vector<8x250xf32>
    %cst_20 = arith.constant 0.000000e+00 : f32
    %19 = vector.broadcast %cst_20 : f32 to vector<8x250xf32>
    %20 = arith.cmpf oge, %18, %19 : vector<8x250xf32>
    %cst_21 = arith.constant 0.00999999977 : f32
    %21 = vector.broadcast %cst_21 : f32 to vector<8x250xf32>
    %22 = arith.mulf %21, %18 : vector<8x250xf32>
    %23 = arith.select %20, %18, %22 : vector<8x250xi1>, vector<8x250xf32>
    %24 = vector.extract_strided_slice %9 {offsets = [2, 0, 0], sizes = [1, 12, 250], strides = [1, 1, 1]} : vector<4x12x250xbf16> to vector<1x12x250xbf16>
    %25 = vector.shape_cast %24 : vector<1x12x250xbf16> to vector<12x250xbf16>
    %cst_22 = arith.constant dense<0.000000e+00> : vector<8x250xf32>
    %26 = tpu.matmul %0, %25, %cst_22 {dimension_numbers = #tpu.dot_dimension_numbers<[1], [0], [0], [1], [0, 0, 1, 1], [], []>} : vector<8x12xbf16>, vector<12x250xbf16>, vector<8x250xf32> -> vector<8x250xf32>
    %27 = vector.extract_strided_slice %9 {offsets = [3, 0, 0], sizes = [1, 12, 250], strides = [1, 1, 1]} : vector<4x12x250xbf16> to vector<1x12x250xbf16>
    %28 = vector.shape_cast %27 : vector<1x12x250xbf16> to vector<12x250xbf16>
    %cst_23 = arith.constant dense<0.000000e+00> : vector<8x250xf32>
    %29 = tpu.matmul %0, %28, %cst_23 {dimension_numbers = #tpu.dot_dimension_numbers<[1], [0], [0], [1], [0, 0, 1, 1], [], []>} : vector<8x12xbf16>, vector<12x250xbf16>, vector<8x250xf32> -> vector<8x250xf32>
    %30 = arith.maximumf %26, %29 : vector<8x250xf32>
    %31 = vector.broadcast %2 : vector<8x1xf32> to vector<8x250xf32>
    %32 = arith.addf %30, %31 : vector<8x250xf32>
    %cst_24 = arith.constant 0.000000e+00 : f32
    %33 = vector.broadcast %cst_24 : f32 to vector<8x250xf32>
    %34 = arith.cmpf oge, %32, %33 : vector<8x250xf32>
    %cst_25 = arith.constant 0.00999999977 : f32
    %35 = vector.broadcast %cst_25 : f32 to vector<8x250xf32>
    %36 = arith.mulf %35, %32 : vector<8x250xf32>
    %37 = arith.select %34, %32, %36 : vector<8x250xi1>, vector<8x250xf32>
    %38 = vector.extract_strided_slice %23 {offsets = [0, 0], sizes = [8, 247], strides = [1, 1]} : vector<8x250xf32> to vector<8x247xf32>
    %39 = vector.extract_strided_slice %37 {offsets = [0, 0], sizes = [8, 247], strides = [1, 1]} : vector<8x250xf32> to vector<8x247xf32>
    %40 = vector.extract_strided_slice %23 {offsets = [0, 1], sizes = [8, 247], strides = [1, 1]} : vector<8x250xf32> to vector<8x247xf32>
    %41 = vector.extract_strided_slice %37 {offsets = [0, 1], sizes = [8, 247], strides = [1, 1]} : vector<8x250xf32> to vector<8x247xf32>
    %42 = vector.extract_strided_slice %23 {offsets = [0, 2], sizes = [8, 247], strides = [1, 1]} : vector<8x250xf32> to vector<8x247xf32>
    %43 = vector.extract_strided_slice %37 {offsets = [0, 2], sizes = [8, 247], strides = [1, 1]} : vector<8x250xf32> to vector<8x247xf32>
    %44 = tpu.concatenate %38, %39, %40, %41, %42, %43 in 0 : vector<8x247xf32>, vector<8x247xf32>, vector<8x247xf32>, vector<8x247xf32>, vector<8x247xf32>, vector<8x247xf32> -> vector<48x247xf32>
    %45 = vector.extract_strided_slice %37 {offsets = [0, 0], sizes = [8, 247], strides = [1, 1]} : vector<8x250xf32> to vector<8x247xf32>
    %46 = vector.extract_strided_slice %23 {offsets = [0, 1], sizes = [8, 247], strides = [1, 1]} : vector<8x250xf32> to vector<8x247xf32>
    %47 = vector.extract_strided_slice %37 {offsets = [0, 1], sizes = [8, 247], strides = [1, 1]} : vector<8x250xf32> to vector<8x247xf32>
    %48 = vector.extract_strided_slice %23 {offsets = [0, 2], sizes = [8, 247], strides = [1, 1]} : vector<8x250xf32> to vector<8x247xf32>
    %49 = vector.extract_strided_slice %37 {offsets = [0, 2], sizes = [8, 247], strides = [1, 1]} : vector<8x250xf32> to vector<8x247xf32>
    %50 = vector.extract_strided_slice %23 {offsets = [0, 3], sizes = [8, 247], strides = [1, 1]} : vector<8x250xf32> to vector<8x247xf32>
    %51 = tpu.concatenate %45, %46, %47, %48, %49, %50 in 0 : vector<8x247xf32>, vector<8x247xf32>, vector<8x247xf32>, vector<8x247xf32>, vector<8x247xf32>, vector<8x247xf32> -> vector<48x247xf32>
    %52 = arith.truncf %44 : vector<48x247xf32> to vector<48x247xbf16>
    %cst_26 = arith.constant dense<0.000000e+00> : vector<16x247xf32>
    %53 = tpu.matmul %1, %52, %cst_26 {dimension_numbers = #tpu.dot_dimension_numbers<[1], [0], [0], [1], [0, 0, 1, 1], [], []>} : vector<16x48xbf16>, vector<48x247xbf16>, vector<16x247xf32> -> vector<16x247xf32>
    %54 = arith.truncf %51 : vector<48x247xf32> to vector<48x247xbf16>
    %cst_27 = arith.constant dense<0.000000e+00> : vector<16x247xf32>
    %55 = tpu.matmul %1, %54, %cst_27 {dimension_numbers = #tpu.dot_dimension_numbers<[1], [0], [0], [1], [0, 0, 1, 1], [], []>} : vector<16x48xbf16>, vector<48x247xbf16>, vector<16x247xf32> -> vector<16x247xf32>
    %56 = arith.maximumf %53, %55 : vector<16x247xf32>
    %57 = vector.broadcast %3 : vector<16x1xf32> to vector<16x247xf32>
    %58 = arith.addf %56, %57 : vector<16x247xf32>
    %cst_28 = arith.constant 0.000000e+00 : f32
    %59 = vector.broadcast %cst_28 : f32 to vector<16x247xf32>
    %60 = arith.cmpf oge, %58, %59 : vector<16x247xf32>
    %cst_29 = arith.constant 0.00999999977 : f32
    %61 = vector.broadcast %cst_29 : f32 to vector<16x247xf32>
    %62 = arith.mulf %61, %58 : vector<16x247xf32>
    %63 = arith.select %60, %58, %62 : vector<16x247xi1>, vector<16x247xf32>
    %c1 = arith.constant 1 : index
    %c0_30 = arith.constant 0 : index
    %c0_31 = arith.constant 0 : index
    %c0_32 = arith.constant 0 : index
    %64 = vector.load %arg1[%c1, %c0_30, %c0_31, %c0_32] : memref<2x4x12x250xbf16, #tpu.memory_space<vmem>>, vector<1x4x12x250xbf16>
    %65 = vector.shape_cast %64 : vector<1x4x12x250xbf16> to vector<4x12x250xbf16>
    %66 = vector.extract_strided_slice %65 {offsets = [0, 0, 0], sizes = [1, 12, 250], strides = [1, 1, 1]} : vector<4x12x250xbf16> to vector<1x12x250xbf16>
    %67 = vector.shape_cast %66 : vector<1x12x250xbf16> to vector<12x250xbf16>
    %cst_33 = arith.constant dense<0.000000e+00> : vector<8x250xf32>
    %68 = tpu.matmul %0, %67, %cst_33 {dimension_numbers = #tpu.dot_dimension_numbers<[1], [0], [0], [1], [0, 0, 1, 1], [], []>} : vector<8x12xbf16>, vector<12x250xbf16>, vector<8x250xf32> -> vector<8x250xf32>
    %69 = vector.extract_strided_slice %65 {offsets = [1, 0, 0], sizes = [1, 12, 250], strides = [1, 1, 1]} : vector<4x12x250xbf16> to vector<1x12x250xbf16>
    %70 = vector.shape_cast %69 : vector<1x12x250xbf16> to vector<12x250xbf16>
    %cst_34 = arith.constant dense<0.000000e+00> : vector<8x250xf32>
    %71 = tpu.matmul %0, %70, %cst_34 {dimension_numbers = #tpu.dot_dimension_numbers<[1], [0], [0], [1], [0, 0, 1, 1], [], []>} : vector<8x12xbf16>, vector<12x250xbf16>, vector<8x250xf32> -> vector<8x250xf32>
    %72 = arith.maximumf %68, %71 : vector<8x250xf32>
    %73 = vector.broadcast %2 : vector<8x1xf32> to vector<8x250xf32>
    %74 = arith.addf %72, %73 : vector<8x250xf32>
    %cst_35 = arith.constant 0.000000e+00 : f32
    %75 = vector.broadcast %cst_35 : f32 to vector<8x250xf32>
    %76 = arith.cmpf oge, %74, %75 : vector<8x250xf32>
    %cst_36 = arith.constant 0.00999999977 : f32
    %77 = vector.broadcast %cst_36 : f32 to vector<8x250xf32>
    %78 = arith.mulf %77, %74 : vector<8x250xf32>
    %79 = arith.select %76, %74, %78 : vector<8x250xi1>, vector<8x250xf32>
    %80 = vector.extract_strided_slice %65 {offsets = [2, 0, 0], sizes = [1, 12, 250], strides = [1, 1, 1]} : vector<4x12x250xbf16> to vector<1x12x250xbf16>
    %81 = vector.shape_cast %80 : vector<1x12x250xbf16> to vector<12x250xbf16>
    %cst_37 = arith.constant dense<0.000000e+00> : vector<8x250xf32>
    %82 = tpu.matmul %0, %81, %cst_37 {dimension_numbers = #tpu.dot_dimension_numbers<[1], [0], [0], [1], [0, 0, 1, 1], [], []>} : vector<8x12xbf16>, vector<12x250xbf16>, vector<8x250xf32> -> vector<8x250xf32>
    %83 = vector.extract_strided_slice %65 {offsets = [3, 0, 0], sizes = [1, 12, 250], strides = [1, 1, 1]} : vector<4x12x250xbf16> to vector<1x12x250xbf16>
    %84 = vector.shape_cast %83 : vector<1x12x250xbf16> to vector<12x250xbf16>
    %cst_38 = arith.constant dense<0.000000e+00> : vector<8x250xf32>
    %85 = tpu.matmul %0, %84, %cst_38 {dimension_numbers = #tpu.dot_dimension_numbers<[1], [0], [0], [1], [0, 0, 1, 1], [], []>} : vector<8x12xbf16>, vector<12x250xbf16>, vector<8x250xf32> -> vector<8x250xf32>
    %86 = arith.maximumf %82, %85 : vector<8x250xf32>
    %87 = vector.broadcast %2 : vector<8x1xf32> to vector<8x250xf32>
    %88 = arith.addf %86, %87 : vector<8x250xf32>
    %cst_39 = arith.constant 0.000000e+00 : f32
    %89 = vector.broadcast %cst_39 : f32 to vector<8x250xf32>
    %90 = arith.cmpf oge, %88, %89 : vector<8x250xf32>
    %cst_40 = arith.constant 0.00999999977 : f32
    %91 = vector.broadcast %cst_40 : f32 to vector<8x250xf32>
    %92 = arith.mulf %91, %88 : vector<8x250xf32>
    %93 = arith.select %90, %88, %92 : vector<8x250xi1>, vector<8x250xf32>
    %94 = vector.extract_strided_slice %79 {offsets = [0, 0], sizes = [8, 247], strides = [1, 1]} : vector<8x250xf32> to vector<8x247xf32>
    %95 = vector.extract_strided_slice %93 {offsets = [0, 0], sizes = [8, 247], strides = [1, 1]} : vector<8x250xf32> to vector<8x247xf32>
    %96 = vector.extract_strided_slice %79 {offsets = [0, 1], sizes = [8, 247], strides = [1, 1]} : vector<8x250xf32> to vector<8x247xf32>
    %97 = vector.extract_strided_slice %93 {offsets = [0, 1], sizes = [8, 247], strides = [1, 1]} : vector<8x250xf32> to vector<8x247xf32>
    %98 = vector.extract_strided_slice %79 {offsets = [0, 2], sizes = [8, 247], strides = [1, 1]} : vector<8x250xf32> to vector<8x247xf32>
    %99 = vector.extract_strided_slice %93 {offsets = [0, 2], sizes = [8, 247], strides = [1, 1]} : vector<8x250xf32> to vector<8x247xf32>
    %100 = tpu.concatenate %94, %95, %96, %97, %98, %99 in 0 : vector<8x247xf32>, vector<8x247xf32>, vector<8x247xf32>, vector<8x247xf32>, vector<8x247xf32>, vector<8x247xf32> -> vector<48x247xf32>
    %101 = vector.extract_strided_slice %93 {offsets = [0, 0], sizes = [8, 247], strides = [1, 1]} : vector<8x250xf32> to vector<8x247xf32>
    %102 = vector.extract_strided_slice %79 {offsets = [0, 1], sizes = [8, 247], strides = [1, 1]} : vector<8x250xf32> to vector<8x247xf32>
    %103 = vector.extract_strided_slice %93 {offsets = [0, 1], sizes = [8, 247], strides = [1, 1]} : vector<8x250xf32> to vector<8x247xf32>
    %104 = vector.extract_strided_slice %79 {offsets = [0, 2], sizes = [8, 247], strides = [1, 1]} : vector<8x250xf32> to vector<8x247xf32>
    %105 = vector.extract_strided_slice %93 {offsets = [0, 2], sizes = [8, 247], strides = [1, 1]} : vector<8x250xf32> to vector<8x247xf32>
    %106 = vector.extract_strided_slice %79 {offsets = [0, 3], sizes = [8, 247], strides = [1, 1]} : vector<8x250xf32> to vector<8x247xf32>
    %107 = tpu.concatenate %101, %102, %103, %104, %105, %106 in 0 : vector<8x247xf32>, vector<8x247xf32>, vector<8x247xf32>, vector<8x247xf32>, vector<8x247xf32>, vector<8x247xf32> -> vector<48x247xf32>
    %108 = arith.truncf %100 : vector<48x247xf32> to vector<48x247xbf16>
    %cst_41 = arith.constant dense<0.000000e+00> : vector<16x247xf32>
    %109 = tpu.matmul %1, %108, %cst_41 {dimension_numbers = #tpu.dot_dimension_numbers<[1], [0], [0], [1], [0, 0, 1, 1], [], []>} : vector<16x48xbf16>, vector<48x247xbf16>, vector<16x247xf32> -> vector<16x247xf32>
    %110 = arith.truncf %107 : vector<48x247xf32> to vector<48x247xbf16>
    %cst_42 = arith.constant dense<0.000000e+00> : vector<16x247xf32>
    %111 = tpu.matmul %1, %110, %cst_42 {dimension_numbers = #tpu.dot_dimension_numbers<[1], [0], [0], [1], [0, 0, 1, 1], [], []>} : vector<16x48xbf16>, vector<48x247xbf16>, vector<16x247xf32> -> vector<16x247xf32>
    %112 = arith.maximumf %109, %111 : vector<16x247xf32>
    %113 = vector.broadcast %3 : vector<16x1xf32> to vector<16x247xf32>
    %114 = arith.addf %112, %113 : vector<16x247xf32>
    %cst_43 = arith.constant 0.000000e+00 : f32
    %115 = vector.broadcast %cst_43 : f32 to vector<16x247xf32>
    %116 = arith.cmpf oge, %114, %115 : vector<16x247xf32>
    %cst_44 = arith.constant 0.00999999977 : f32
    %117 = vector.broadcast %cst_44 : f32 to vector<16x247xf32>
    %118 = arith.mulf %117, %114 : vector<16x247xf32>
    %119 = arith.select %116, %114, %118 : vector<16x247xi1>, vector<16x247xf32>
    %120 = tpu.concatenate %63, %119 in 0 : vector<16x247xf32>, vector<16x247xf32> -> vector<32x247xf32>
    %121 = arith.truncf %120 : vector<32x247xf32> to vector<32x247xbf16>
    %cst_45 = arith.constant dense<0.000000e+00> : vector<32x192xf32>
    %122 = tpu.matmul %121, %4, %cst_45 {dimension_numbers = #tpu.dot_dimension_numbers<[1], [0], [0], [1], [0, 0, 1, 1], [], []>} : vector<32x247xbf16>, vector<247x192xbf16>, vector<32x192xf32> -> vector<32x192xf32>
    %123 = vector.broadcast %5 : vector<1x192xf32> to vector<32x192xf32>
    %124 = arith.addf %122, %123 : vector<32x192xf32>
    %125 = vector.extract_strided_slice %124 {offsets = [0, 0], sizes = [16, 192], strides = [1, 1]} : vector<32x192xf32> to vector<16x192xf32>
    %126 = vector.extract_strided_slice %124 {offsets = [16, 0], sizes = [16, 192], strides = [1, 1]} : vector<32x192xf32> to vector<16x192xf32>
    %127 = vector.shape_cast %125 : vector<16x192xf32> to vector<16x1x192xf32>
    %128 = vector.shape_cast %126 : vector<16x192xf32> to vector<16x1x192xf32>
    %129 = tpu.concatenate %127, %128 in 1 : vector<16x1x192xf32>, vector<16x1x192xf32> -> vector<16x2x192xf32>
    %cst_46 = arith.constant 0.000000e+00 : f32
    %130 = vector.broadcast %cst_46 : f32 to vector<2x64xf32>
    %131 = arith.truncf %130 : vector<2x64xf32> to vector<2x64xbf16>
    %cst_47 = arith.constant dense<0.000000e+00> : vector<2x192xf32>
    %132 = tpu.matmul %131, %6, %cst_47 {dimension_numbers = #tpu.dot_dimension_numbers<[1], [0], [0], [1], [0, 0, 1, 1], [], []>} : vector<2x64xbf16>, vector<64x192xbf16>, vector<2x192xf32> -> vector<2x192xf32>
    %133 = vector.broadcast %7 : vector<1x192xf32> to vector<2x192xf32>
    %134 = arith.addf %132, %133 : vector<2x192xf32>
    %135 = vector.extract_strided_slice %129 {offsets = [0, 0, 0], sizes = [1, 2, 96], strides = [1, 1, 1]} : vector<16x2x192xf32> to vector<1x2x96xf32>
    %136 = vector.shape_cast %135 : vector<1x2x96xf32> to vector<2x96xf32>
    %137 = vector.extract_strided_slice %129 {offsets = [15, 0, 96], sizes = [1, 2, 96], strides = [1, 1, 1]} : vector<16x2x192xf32> to vector<1x2x96xf32>
    %138 = vector.shape_cast %137 : vector<1x2x96xf32> to vector<2x96xf32>
    %139 = vector.extract_strided_slice %134 {offsets = [0, 0], sizes = [2, 96], strides = [1, 1]} : vector<2x192xf32> to vector<2x96xf32>
    %140 = vector.extract_strided_slice %134 {offsets = [0, 96], sizes = [2, 96], strides = [1, 1]} : vector<2x192xf32> to vector<2x96xf32>
    %141 = vector.extract_strided_slice %130 {offsets = [0, 0], sizes = [2, 32], strides = [1, 1]} : vector<2x64xf32> to vector<2x32xf32>
    %142 = vector.extract_strided_slice %130 {offsets = [0, 32], sizes = [2, 32], strides = [1, 1]} : vector<2x64xf32> to vector<2x32xf32>
    %143 = vector.extract_strided_slice %136 {offsets = [0, 0], sizes = [2, 32], strides = [1, 1]} : vector<2x96xf32> to vector<2x32xf32>
    %144 = vector.extract_strided_slice %139 {offsets = [0, 0], sizes = [2, 32], strides = [1, 1]} : vector<2x96xf32> to vector<2x32xf32>
    %145 = arith.addf %143, %144 : vector<2x32xf32>
    %146 = arith.negf %145 : vector<2x32xf32>
    %147 = math.exp %146 : vector<2x32xf32>
    %cst_48 = arith.constant 1.000000e+00 : f32
    %148 = vector.broadcast %cst_48 : f32 to vector<2x32xf32>
    %149 = arith.addf %148, %147 : vector<2x32xf32>
    %150 = arith.divf %148, %149 : vector<2x32xf32>
    %151 = vector.extract_strided_slice %136 {offsets = [0, 32], sizes = [2, 32], strides = [1, 1]} : vector<2x96xf32> to vector<2x32xf32>
    %152 = vector.extract_strided_slice %139 {offsets = [0, 32], sizes = [2, 32], strides = [1, 1]} : vector<2x96xf32> to vector<2x32xf32>
    %153 = arith.addf %151, %152 : vector<2x32xf32>
    %154 = arith.negf %153 : vector<2x32xf32>
    %155 = math.exp %154 : vector<2x32xf32>
    %cst_49 = arith.constant 1.000000e+00 : f32
    %156 = vector.broadcast %cst_49 : f32 to vector<2x32xf32>
    %157 = arith.addf %156, %155 : vector<2x32xf32>
    %158 = arith.divf %156, %157 : vector<2x32xf32>
    %159 = vector.extract_strided_slice %136 {offsets = [0, 64], sizes = [2, 32], strides = [1, 1]} : vector<2x96xf32> to vector<2x32xf32>
    %160 = vector.extract_strided_slice %139 {offsets = [0, 64], sizes = [2, 32], strides = [1, 1]} : vector<2x96xf32> to vector<2x32xf32>
    %161 = arith.mulf %150, %160 : vector<2x32xf32>
    %162 = arith.addf %159, %161 : vector<2x32xf32>
    %163 = math.tanh %162 : vector<2x32xf32>
    %cst_50 = arith.constant 1.000000e+00 : f32
    %164 = vector.broadcast %cst_50 : f32 to vector<2x32xf32>
    %165 = arith.subf %164, %158 : vector<2x32xf32>
    %166 = arith.mulf %165, %163 : vector<2x32xf32>
    %167 = arith.mulf %158, %141 : vector<2x32xf32>
    %168 = arith.addf %166, %167 : vector<2x32xf32>
    %169 = vector.extract_strided_slice %138 {offsets = [0, 0], sizes = [2, 32], strides = [1, 1]} : vector<2x96xf32> to vector<2x32xf32>
    %170 = vector.extract_strided_slice %140 {offsets = [0, 0], sizes = [2, 32], strides = [1, 1]} : vector<2x96xf32> to vector<2x32xf32>
    %171 = arith.addf %169, %170 : vector<2x32xf32>
    %172 = arith.negf %171 : vector<2x32xf32>
    %173 = math.exp %172 : vector<2x32xf32>
    %cst_51 = arith.constant 1.000000e+00 : f32
    %174 = vector.broadcast %cst_51 : f32 to vector<2x32xf32>
    %175 = arith.addf %174, %173 : vector<2x32xf32>
    %176 = arith.divf %174, %175 : vector<2x32xf32>
    %177 = vector.extract_strided_slice %138 {offsets = [0, 32], sizes = [2, 32], strides = [1, 1]} : vector<2x96xf32> to vector<2x32xf32>
    %178 = vector.extract_strided_slice %140 {offsets = [0, 32], sizes = [2, 32], strides = [1, 1]} : vector<2x96xf32> to vector<2x32xf32>
    %179 = arith.addf %177, %178 : vector<2x32xf32>
    %180 = arith.negf %179 : vector<2x32xf32>
    %181 = math.exp %180 : vector<2x32xf32>
    %cst_52 = arith.constant 1.000000e+00 : f32
    %182 = vector.broadcast %cst_52 : f32 to vector<2x32xf32>
    %183 = arith.addf %182, %181 : vector<2x32xf32>
    %184 = arith.divf %182, %183 : vector<2x32xf32>
    %185 = vector.extract_strided_slice %138 {offsets = [0, 64], sizes = [2, 32], strides = [1, 1]} : vector<2x96xf32> to vector<2x32xf32>
    %186 = vector.extract_strided_slice %140 {offsets = [0, 64], sizes = [2, 32], strides = [1, 1]} : vector<2x96xf32> to vector<2x32xf32>
    %187 = arith.mulf %176, %186 : vector<2x32xf32>
    %188 = arith.addf %185, %187 : vector<2x32xf32>
    %189 = math.tanh %188 : vector<2x32xf32>
    %cst_53 = arith.constant 1.000000e+00 : f32
    %190 = vector.broadcast %cst_53 : f32 to vector<2x32xf32>
    %191 = arith.subf %190, %184 : vector<2x32xf32>
    %192 = arith.mulf %191, %189 : vector<2x32xf32>
    %193 = arith.mulf %184, %142 : vector<2x32xf32>
    %194 = arith.addf %192, %193 : vector<2x32xf32>
    %195 = tpu.concatenate %168, %194 in 1 : vector<2x32xf32>, vector<2x32xf32> -> vector<2x64xf32>
    %196 = arith.truncf %195 : vector<2x64xf32> to vector<2x64xbf16>
    %cst_54 = arith.constant dense<0.000000e+00> : vector<2x192xf32>
    %197 = tpu.matmul %196, %6, %cst_54 {dimension_numbers = #tpu.dot_dimension_numbers<[1], [0], [0], [1], [0, 0, 1, 1], [], []>} : vector<2x64xbf16>, vector<64x192xbf16>, vector<2x192xf32> -> vector<2x192xf32>
    %198 = vector.broadcast %7 : vector<1x192xf32> to vector<2x192xf32>
    %199 = arith.addf %197, %198 : vector<2x192xf32>
    %200 = vector.extract_strided_slice %129 {offsets = [1, 0, 0], sizes = [1, 2, 96], strides = [1, 1, 1]} : vector<16x2x192xf32> to vector<1x2x96xf32>
    %201 = vector.shape_cast %200 : vector<1x2x96xf32> to vector<2x96xf32>
    %202 = vector.extract_strided_slice %129 {offsets = [14, 0, 96], sizes = [1, 2, 96], strides = [1, 1, 1]} : vector<16x2x192xf32> to vector<1x2x96xf32>
    %203 = vector.shape_cast %202 : vector<1x2x96xf32> to vector<2x96xf32>
    %204 = vector.extract_strided_slice %199 {offsets = [0, 0], sizes = [2, 96], strides = [1, 1]} : vector<2x192xf32> to vector<2x96xf32>
    %205 = vector.extract_strided_slice %199 {offsets = [0, 96], sizes = [2, 96], strides = [1, 1]} : vector<2x192xf32> to vector<2x96xf32>
    %206 = vector.extract_strided_slice %195 {offsets = [0, 0], sizes = [2, 32], strides = [1, 1]} : vector<2x64xf32> to vector<2x32xf32>
    %207 = vector.extract_strided_slice %195 {offsets = [0, 32], sizes = [2, 32], strides = [1, 1]} : vector<2x64xf32> to vector<2x32xf32>
    %208 = vector.extract_strided_slice %201 {offsets = [0, 0], sizes = [2, 32], strides = [1, 1]} : vector<2x96xf32> to vector<2x32xf32>
    %209 = vector.extract_strided_slice %204 {offsets = [0, 0], sizes = [2, 32], strides = [1, 1]} : vector<2x96xf32> to vector<2x32xf32>
    %210 = arith.addf %208, %209 : vector<2x32xf32>
    %211 = arith.negf %210 : vector<2x32xf32>
    %212 = math.exp %211 : vector<2x32xf32>
    %cst_55 = arith.constant 1.000000e+00 : f32
    %213 = vector.broadcast %cst_55 : f32 to vector<2x32xf32>
    %214 = arith.addf %213, %212 : vector<2x32xf32>
    %215 = arith.divf %213, %214 : vector<2x32xf32>
    %216 = vector.extract_strided_slice %201 {offsets = [0, 32], sizes = [2, 32], strides = [1, 1]} : vector<2x96xf32> to vector<2x32xf32>
    %217 = vector.extract_strided_slice %204 {offsets = [0, 32], sizes = [2, 32], strides = [1, 1]} : vector<2x96xf32> to vector<2x32xf32>
    %218 = arith.addf %216, %217 : vector<2x32xf32>
    %219 = arith.negf %218 : vector<2x32xf32>
    %220 = math.exp %219 : vector<2x32xf32>
    %cst_56 = arith.constant 1.000000e+00 : f32
    %221 = vector.broadcast %cst_56 : f32 to vector<2x32xf32>
    %222 = arith.addf %221, %220 : vector<2x32xf32>
    %223 = arith.divf %221, %222 : vector<2x32xf32>
    %224 = vector.extract_strided_slice %201 {offsets = [0, 64], sizes = [2, 32], strides = [1, 1]} : vector<2x96xf32> to vector<2x32xf32>
    %225 = vector.extract_strided_slice %204 {offsets = [0, 64], sizes = [2, 32], strides = [1, 1]} : vector<2x96xf32> to vector<2x32xf32>
    %226 = arith.mulf %215, %225 : vector<2x32xf32>
    %227 = arith.addf %224, %226 : vector<2x32xf32>
    %228 = math.tanh %227 : vector<2x32xf32>
    %cst_57 = arith.constant 1.000000e+00 : f32
    %229 = vector.broadcast %cst_57 : f32 to vector<2x32xf32>
    %230 = arith.subf %229, %223 : vector<2x32xf32>
    %231 = arith.mulf %230, %228 : vector<2x32xf32>
    %232 = arith.mulf %223, %206 : vector<2x32xf32>
    %233 = arith.addf %231, %232 : vector<2x32xf32>
    %234 = vector.extract_strided_slice %203 {offsets = [0, 0], sizes = [2, 32], strides = [1, 1]} : vector<2x96xf32> to vector<2x32xf32>
    %235 = vector.extract_strided_slice %205 {offsets = [0, 0], sizes = [2, 32], strides = [1, 1]} : vector<2x96xf32> to vector<2x32xf32>
    %236 = arith.addf %234, %235 : vector<2x32xf32>
    %237 = arith.negf %236 : vector<2x32xf32>
    %238 = math.exp %237 : vector<2x32xf32>
    %cst_58 = arith.constant 1.000000e+00 : f32
    %239 = vector.broadcast %cst_58 : f32 to vector<2x32xf32>
    %240 = arith.addf %239, %238 : vector<2x32xf32>
    %241 = arith.divf %239, %240 : vector<2x32xf32>
    %242 = vector.extract_strided_slice %203 {offsets = [0, 32], sizes = [2, 32], strides = [1, 1]} : vector<2x96xf32> to vector<2x32xf32>
    %243 = vector.extract_strided_slice %205 {offsets = [0, 32], sizes = [2, 32], strides = [1, 1]} : vector<2x96xf32> to vector<2x32xf32>
    %244 = arith.addf %242, %243 : vector<2x32xf32>
    %245 = arith.negf %244 : vector<2x32xf32>
    %246 = math.exp %245 : vector<2x32xf32>
    %cst_59 = arith.constant 1.000000e+00 : f32
    %247 = vector.broadcast %cst_59 : f32 to vector<2x32xf32>
    %248 = arith.addf %247, %246 : vector<2x32xf32>
    %249 = arith.divf %247, %248 : vector<2x32xf32>
    %250 = vector.extract_strided_slice %203 {offsets = [0, 64], sizes = [2, 32], strides = [1, 1]} : vector<2x96xf32> to vector<2x32xf32>
    %251 = vector.extract_strided_slice %205 {offsets = [0, 64], sizes = [2, 32], strides = [1, 1]} : vector<2x96xf32> to vector<2x32xf32>
    %252 = arith.mulf %241, %251 : vector<2x32xf32>
    %253 = arith.addf %250, %252 : vector<2x32xf32>
    %254 = math.tanh %253 : vector<2x32xf32>
    %cst_60 = arith.constant 1.000000e+00 : f32
    %255 = vector.broadcast %cst_60 : f32 to vector<2x32xf32>
    %256 = arith.subf %255, %249 : vector<2x32xf32>
    %257 = arith.mulf %256, %254 : vector<2x32xf32>
    %258 = arith.mulf %249, %207 : vector<2x32xf32>
    %259 = arith.addf %257, %258 : vector<2x32xf32>
    %260 = tpu.concatenate %233, %259 in 1 : vector<2x32xf32>, vector<2x32xf32> -> vector<2x64xf32>
    %261 = arith.truncf %260 : vector<2x64xf32> to vector<2x64xbf16>
    %cst_61 = arith.constant dense<0.000000e+00> : vector<2x192xf32>
    %262 = tpu.matmul %261, %6, %cst_61 {dimension_numbers = #tpu.dot_dimension_numbers<[1], [0], [0], [1], [0, 0, 1, 1], [], []>} : vector<2x64xbf16>, vector<64x192xbf16>, vector<2x192xf32> -> vector<2x192xf32>
    %263 = vector.broadcast %7 : vector<1x192xf32> to vector<2x192xf32>
    %264 = arith.addf %262, %263 : vector<2x192xf32>
    %265 = vector.extract_strided_slice %129 {offsets = [2, 0, 0], sizes = [1, 2, 96], strides = [1, 1, 1]} : vector<16x2x192xf32> to vector<1x2x96xf32>
    %266 = vector.shape_cast %265 : vector<1x2x96xf32> to vector<2x96xf32>
    %267 = vector.extract_strided_slice %129 {offsets = [13, 0, 96], sizes = [1, 2, 96], strides = [1, 1, 1]} : vector<16x2x192xf32> to vector<1x2x96xf32>
    %268 = vector.shape_cast %267 : vector<1x2x96xf32> to vector<2x96xf32>
    %269 = vector.extract_strided_slice %264 {offsets = [0, 0], sizes = [2, 96], strides = [1, 1]} : vector<2x192xf32> to vector<2x96xf32>
    %270 = vector.extract_strided_slice %264 {offsets = [0, 96], sizes = [2, 96], strides = [1, 1]} : vector<2x192xf32> to vector<2x96xf32>
    %271 = vector.extract_strided_slice %260 {offsets = [0, 0], sizes = [2, 32], strides = [1, 1]} : vector<2x64xf32> to vector<2x32xf32>
    %272 = vector.extract_strided_slice %260 {offsets = [0, 32], sizes = [2, 32], strides = [1, 1]} : vector<2x64xf32> to vector<2x32xf32>
    %273 = vector.extract_strided_slice %266 {offsets = [0, 0], sizes = [2, 32], strides = [1, 1]} : vector<2x96xf32> to vector<2x32xf32>
    %274 = vector.extract_strided_slice %269 {offsets = [0, 0], sizes = [2, 32], strides = [1, 1]} : vector<2x96xf32> to vector<2x32xf32>
    %275 = arith.addf %273, %274 : vector<2x32xf32>
    %276 = arith.negf %275 : vector<2x32xf32>
    %277 = math.exp %276 : vector<2x32xf32>
    %cst_62 = arith.constant 1.000000e+00 : f32
    %278 = vector.broadcast %cst_62 : f32 to vector<2x32xf32>
    %279 = arith.addf %278, %277 : vector<2x32xf32>
    %280 = arith.divf %278, %279 : vector<2x32xf32>
    %281 = vector.extract_strided_slice %266 {offsets = [0, 32], sizes = [2, 32], strides = [1, 1]} : vector<2x96xf32> to vector<2x32xf32>
    %282 = vector.extract_strided_slice %269 {offsets = [0, 32], sizes = [2, 32], strides = [1, 1]} : vector<2x96xf32> to vector<2x32xf32>
    %283 = arith.addf %281, %282 : vector<2x32xf32>
    %284 = arith.negf %283 : vector<2x32xf32>
    %285 = math.exp %284 : vector<2x32xf32>
    %cst_63 = arith.constant 1.000000e+00 : f32
    %286 = vector.broadcast %cst_63 : f32 to vector<2x32xf32>
    %287 = arith.addf %286, %285 : vector<2x32xf32>
    %288 = arith.divf %286, %287 : vector<2x32xf32>
    %289 = vector.extract_strided_slice %266 {offsets = [0, 64], sizes = [2, 32], strides = [1, 1]} : vector<2x96xf32> to vector<2x32xf32>
    %290 = vector.extract_strided_slice %269 {offsets = [0, 64], sizes = [2, 32], strides = [1, 1]} : vector<2x96xf32> to vector<2x32xf32>
    %291 = arith.mulf %280, %290 : vector<2x32xf32>
    %292 = arith.addf %289, %291 : vector<2x32xf32>
    %293 = math.tanh %292 : vector<2x32xf32>
    %cst_64 = arith.constant 1.000000e+00 : f32
    %294 = vector.broadcast %cst_64 : f32 to vector<2x32xf32>
    %295 = arith.subf %294, %288 : vector<2x32xf32>
    %296 = arith.mulf %295, %293 : vector<2x32xf32>
    %297 = arith.mulf %288, %271 : vector<2x32xf32>
    %298 = arith.addf %296, %297 : vector<2x32xf32>
    %299 = vector.extract_strided_slice %268 {offsets = [0, 0], sizes = [2, 32], strides = [1, 1]} : vector<2x96xf32> to vector<2x32xf32>
    %300 = vector.extract_strided_slice %270 {offsets = [0, 0], sizes = [2, 32], strides = [1, 1]} : vector<2x96xf32> to vector<2x32xf32>
    %301 = arith.addf %299, %300 : vector<2x32xf32>
    %302 = arith.negf %301 : vector<2x32xf32>
    %303 = math.exp %302 : vector<2x32xf32>
    %cst_65 = arith.constant 1.000000e+00 : f32
    %304 = vector.broadcast %cst_65 : f32 to vector<2x32xf32>
    %305 = arith.addf %304, %303 : vector<2x32xf32>
    %306 = arith.divf %304, %305 : vector<2x32xf32>
    %307 = vector.extract_strided_slice %268 {offsets = [0, 32], sizes = [2, 32], strides = [1, 1]} : vector<2x96xf32> to vector<2x32xf32>
    %308 = vector.extract_strided_slice %270 {offsets = [0, 32], sizes = [2, 32], strides = [1, 1]} : vector<2x96xf32> to vector<2x32xf32>
    %309 = arith.addf %307, %308 : vector<2x32xf32>
    %310 = arith.negf %309 : vector<2x32xf32>
    %311 = math.exp %310 : vector<2x32xf32>
    %cst_66 = arith.constant 1.000000e+00 : f32
    %312 = vector.broadcast %cst_66 : f32 to vector<2x32xf32>
    %313 = arith.addf %312, %311 : vector<2x32xf32>
    %314 = arith.divf %312, %313 : vector<2x32xf32>
    %315 = vector.extract_strided_slice %268 {offsets = [0, 64], sizes = [2, 32], strides = [1, 1]} : vector<2x96xf32> to vector<2x32xf32>
    %316 = vector.extract_strided_slice %270 {offsets = [0, 64], sizes = [2, 32], strides = [1, 1]} : vector<2x96xf32> to vector<2x32xf32>
    %317 = arith.mulf %306, %316 : vector<2x32xf32>
    %318 = arith.addf %315, %317 : vector<2x32xf32>
    %319 = math.tanh %318 : vector<2x32xf32>
    %cst_67 = arith.constant 1.000000e+00 : f32
    %320 = vector.broadcast %cst_67 : f32 to vector<2x32xf32>
    %321 = arith.subf %320, %314 : vector<2x32xf32>
    %322 = arith.mulf %321, %319 : vector<2x32xf32>
    %323 = arith.mulf %314, %272 : vector<2x32xf32>
    %324 = arith.addf %322, %323 : vector<2x32xf32>
    %325 = tpu.concatenate %298, %324 in 1 : vector<2x32xf32>, vector<2x32xf32> -> vector<2x64xf32>
    %326 = arith.truncf %325 : vector<2x64xf32> to vector<2x64xbf16>
    %cst_68 = arith.constant dense<0.000000e+00> : vector<2x192xf32>
    %327 = tpu.matmul %326, %6, %cst_68 {dimension_numbers = #tpu.dot_dimension_numbers<[1], [0], [0], [1], [0, 0, 1, 1], [], []>} : vector<2x64xbf16>, vector<64x192xbf16>, vector<2x192xf32> -> vector<2x192xf32>
    %328 = vector.broadcast %7 : vector<1x192xf32> to vector<2x192xf32>
    %329 = arith.addf %327, %328 : vector<2x192xf32>
    %330 = vector.extract_strided_slice %129 {offsets = [3, 0, 0], sizes = [1, 2, 96], strides = [1, 1, 1]} : vector<16x2x192xf32> to vector<1x2x96xf32>
    %331 = vector.shape_cast %330 : vector<1x2x96xf32> to vector<2x96xf32>
    %332 = vector.extract_strided_slice %129 {offsets = [12, 0, 96], sizes = [1, 2, 96], strides = [1, 1, 1]} : vector<16x2x192xf32> to vector<1x2x96xf32>
    %333 = vector.shape_cast %332 : vector<1x2x96xf32> to vector<2x96xf32>
    %334 = vector.extract_strided_slice %329 {offsets = [0, 0], sizes = [2, 96], strides = [1, 1]} : vector<2x192xf32> to vector<2x96xf32>
    %335 = vector.extract_strided_slice %329 {offsets = [0, 96], sizes = [2, 96], strides = [1, 1]} : vector<2x192xf32> to vector<2x96xf32>
    %336 = vector.extract_strided_slice %325 {offsets = [0, 0], sizes = [2, 32], strides = [1, 1]} : vector<2x64xf32> to vector<2x32xf32>
    %337 = vector.extract_strided_slice %325 {offsets = [0, 32], sizes = [2, 32], strides = [1, 1]} : vector<2x64xf32> to vector<2x32xf32>
    %338 = vector.extract_strided_slice %331 {offsets = [0, 0], sizes = [2, 32], strides = [1, 1]} : vector<2x96xf32> to vector<2x32xf32>
    %339 = vector.extract_strided_slice %334 {offsets = [0, 0], sizes = [2, 32], strides = [1, 1]} : vector<2x96xf32> to vector<2x32xf32>
    %340 = arith.addf %338, %339 : vector<2x32xf32>
    %341 = arith.negf %340 : vector<2x32xf32>
    %342 = math.exp %341 : vector<2x32xf32>
    %cst_69 = arith.constant 1.000000e+00 : f32
    %343 = vector.broadcast %cst_69 : f32 to vector<2x32xf32>
    %344 = arith.addf %343, %342 : vector<2x32xf32>
    %345 = arith.divf %343, %344 : vector<2x32xf32>
    %346 = vector.extract_strided_slice %331 {offsets = [0, 32], sizes = [2, 32], strides = [1, 1]} : vector<2x96xf32> to vector<2x32xf32>
    %347 = vector.extract_strided_slice %334 {offsets = [0, 32], sizes = [2, 32], strides = [1, 1]} : vector<2x96xf32> to vector<2x32xf32>
    %348 = arith.addf %346, %347 : vector<2x32xf32>
    %349 = arith.negf %348 : vector<2x32xf32>
    %350 = math.exp %349 : vector<2x32xf32>
    %cst_70 = arith.constant 1.000000e+00 : f32
    %351 = vector.broadcast %cst_70 : f32 to vector<2x32xf32>
    %352 = arith.addf %351, %350 : vector<2x32xf32>
    %353 = arith.divf %351, %352 : vector<2x32xf32>
    %354 = vector.extract_strided_slice %331 {offsets = [0, 64], sizes = [2, 32], strides = [1, 1]} : vector<2x96xf32> to vector<2x32xf32>
    %355 = vector.extract_strided_slice %334 {offsets = [0, 64], sizes = [2, 32], strides = [1, 1]} : vector<2x96xf32> to vector<2x32xf32>
    %356 = arith.mulf %345, %355 : vector<2x32xf32>
    %357 = arith.addf %354, %356 : vector<2x32xf32>
    %358 = math.tanh %357 : vector<2x32xf32>
    %cst_71 = arith.constant 1.000000e+00 : f32
    %359 = vector.broadcast %cst_71 : f32 to vector<2x32xf32>
    %360 = arith.subf %359, %353 : vector<2x32xf32>
    %361 = arith.mulf %360, %358 : vector<2x32xf32>
    %362 = arith.mulf %353, %336 : vector<2x32xf32>
    %363 = arith.addf %361, %362 : vector<2x32xf32>
    %364 = vector.extract_strided_slice %333 {offsets = [0, 0], sizes = [2, 32], strides = [1, 1]} : vector<2x96xf32> to vector<2x32xf32>
    %365 = vector.extract_strided_slice %335 {offsets = [0, 0], sizes = [2, 32], strides = [1, 1]} : vector<2x96xf32> to vector<2x32xf32>
    %366 = arith.addf %364, %365 : vector<2x32xf32>
    %367 = arith.negf %366 : vector<2x32xf32>
    %368 = math.exp %367 : vector<2x32xf32>
    %cst_72 = arith.constant 1.000000e+00 : f32
    %369 = vector.broadcast %cst_72 : f32 to vector<2x32xf32>
    %370 = arith.addf %369, %368 : vector<2x32xf32>
    %371 = arith.divf %369, %370 : vector<2x32xf32>
    %372 = vector.extract_strided_slice %333 {offsets = [0, 32], sizes = [2, 32], strides = [1, 1]} : vector<2x96xf32> to vector<2x32xf32>
    %373 = vector.extract_strided_slice %335 {offsets = [0, 32], sizes = [2, 32], strides = [1, 1]} : vector<2x96xf32> to vector<2x32xf32>
    %374 = arith.addf %372, %373 : vector<2x32xf32>
    %375 = arith.negf %374 : vector<2x32xf32>
    %376 = math.exp %375 : vector<2x32xf32>
    %cst_73 = arith.constant 1.000000e+00 : f32
    %377 = vector.broadcast %cst_73 : f32 to vector<2x32xf32>
    %378 = arith.addf %377, %376 : vector<2x32xf32>
    %379 = arith.divf %377, %378 : vector<2x32xf32>
    %380 = vector.extract_strided_slice %333 {offsets = [0, 64], sizes = [2, 32], strides = [1, 1]} : vector<2x96xf32> to vector<2x32xf32>
    %381 = vector.extract_strided_slice %335 {offsets = [0, 64], sizes = [2, 32], strides = [1, 1]} : vector<2x96xf32> to vector<2x32xf32>
    %382 = arith.mulf %371, %381 : vector<2x32xf32>
    %383 = arith.addf %380, %382 : vector<2x32xf32>
    %384 = math.tanh %383 : vector<2x32xf32>
    %cst_74 = arith.constant 1.000000e+00 : f32
    %385 = vector.broadcast %cst_74 : f32 to vector<2x32xf32>
    %386 = arith.subf %385, %379 : vector<2x32xf32>
    %387 = arith.mulf %386, %384 : vector<2x32xf32>
    %388 = arith.mulf %379, %337 : vector<2x32xf32>
    %389 = arith.addf %387, %388 : vector<2x32xf32>
    %390 = tpu.concatenate %363, %389 in 1 : vector<2x32xf32>, vector<2x32xf32> -> vector<2x64xf32>
    %391 = arith.truncf %390 : vector<2x64xf32> to vector<2x64xbf16>
    %cst_75 = arith.constant dense<0.000000e+00> : vector<2x192xf32>
    %392 = tpu.matmul %391, %6, %cst_75 {dimension_numbers = #tpu.dot_dimension_numbers<[1], [0], [0], [1], [0, 0, 1, 1], [], []>} : vector<2x64xbf16>, vector<64x192xbf16>, vector<2x192xf32> -> vector<2x192xf32>
    %393 = vector.broadcast %7 : vector<1x192xf32> to vector<2x192xf32>
    %394 = arith.addf %392, %393 : vector<2x192xf32>
    %395 = vector.extract_strided_slice %129 {offsets = [4, 0, 0], sizes = [1, 2, 96], strides = [1, 1, 1]} : vector<16x2x192xf32> to vector<1x2x96xf32>
    %396 = vector.shape_cast %395 : vector<1x2x96xf32> to vector<2x96xf32>
    %397 = vector.extract_strided_slice %129 {offsets = [11, 0, 96], sizes = [1, 2, 96], strides = [1, 1, 1]} : vector<16x2x192xf32> to vector<1x2x96xf32>
    %398 = vector.shape_cast %397 : vector<1x2x96xf32> to vector<2x96xf32>
    %399 = vector.extract_strided_slice %394 {offsets = [0, 0], sizes = [2, 96], strides = [1, 1]} : vector<2x192xf32> to vector<2x96xf32>
    %400 = vector.extract_strided_slice %394 {offsets = [0, 96], sizes = [2, 96], strides = [1, 1]} : vector<2x192xf32> to vector<2x96xf32>
    %401 = vector.extract_strided_slice %390 {offsets = [0, 0], sizes = [2, 32], strides = [1, 1]} : vector<2x64xf32> to vector<2x32xf32>
    %402 = vector.extract_strided_slice %390 {offsets = [0, 32], sizes = [2, 32], strides = [1, 1]} : vector<2x64xf32> to vector<2x32xf32>
    %403 = vector.extract_strided_slice %396 {offsets = [0, 0], sizes = [2, 32], strides = [1, 1]} : vector<2x96xf32> to vector<2x32xf32>
    %404 = vector.extract_strided_slice %399 {offsets = [0, 0], sizes = [2, 32], strides = [1, 1]} : vector<2x96xf32> to vector<2x32xf32>
    %405 = arith.addf %403, %404 : vector<2x32xf32>
    %406 = arith.negf %405 : vector<2x32xf32>
    %407 = math.exp %406 : vector<2x32xf32>
    %cst_76 = arith.constant 1.000000e+00 : f32
    %408 = vector.broadcast %cst_76 : f32 to vector<2x32xf32>
    %409 = arith.addf %408, %407 : vector<2x32xf32>
    %410 = arith.divf %408, %409 : vector<2x32xf32>
    %411 = vector.extract_strided_slice %396 {offsets = [0, 32], sizes = [2, 32], strides = [1, 1]} : vector<2x96xf32> to vector<2x32xf32>
    %412 = vector.extract_strided_slice %399 {offsets = [0, 32], sizes = [2, 32], strides = [1, 1]} : vector<2x96xf32> to vector<2x32xf32>
    %413 = arith.addf %411, %412 : vector<2x32xf32>
    %414 = arith.negf %413 : vector<2x32xf32>
    %415 = math.exp %414 : vector<2x32xf32>
    %cst_77 = arith.constant 1.000000e+00 : f32
    %416 = vector.broadcast %cst_77 : f32 to vector<2x32xf32>
    %417 = arith.addf %416, %415 : vector<2x32xf32>
    %418 = arith.divf %416, %417 : vector<2x32xf32>
    %419 = vector.extract_strided_slice %396 {offsets = [0, 64], sizes = [2, 32], strides = [1, 1]} : vector<2x96xf32> to vector<2x32xf32>
    %420 = vector.extract_strided_slice %399 {offsets = [0, 64], sizes = [2, 32], strides = [1, 1]} : vector<2x96xf32> to vector<2x32xf32>
    %421 = arith.mulf %410, %420 : vector<2x32xf32>
    %422 = arith.addf %419, %421 : vector<2x32xf32>
    %423 = math.tanh %422 : vector<2x32xf32>
    %cst_78 = arith.constant 1.000000e+00 : f32
    %424 = vector.broadcast %cst_78 : f32 to vector<2x32xf32>
    %425 = arith.subf %424, %418 : vector<2x32xf32>
    %426 = arith.mulf %425, %423 : vector<2x32xf32>
    %427 = arith.mulf %418, %401 : vector<2x32xf32>
    %428 = arith.addf %426, %427 : vector<2x32xf32>
    %429 = vector.extract_strided_slice %398 {offsets = [0, 0], sizes = [2, 32], strides = [1, 1]} : vector<2x96xf32> to vector<2x32xf32>
    %430 = vector.extract_strided_slice %400 {offsets = [0, 0], sizes = [2, 32], strides = [1, 1]} : vector<2x96xf32> to vector<2x32xf32>
    %431 = arith.addf %429, %430 : vector<2x32xf32>
    %432 = arith.negf %431 : vector<2x32xf32>
    %433 = math.exp %432 : vector<2x32xf32>
    %cst_79 = arith.constant 1.000000e+00 : f32
    %434 = vector.broadcast %cst_79 : f32 to vector<2x32xf32>
    %435 = arith.addf %434, %433 : vector<2x32xf32>
    %436 = arith.divf %434, %435 : vector<2x32xf32>
    %437 = vector.extract_strided_slice %398 {offsets = [0, 32], sizes = [2, 32], strides = [1, 1]} : vector<2x96xf32> to vector<2x32xf32>
    %438 = vector.extract_strided_slice %400 {offsets = [0, 32], sizes = [2, 32], strides = [1, 1]} : vector<2x96xf32> to vector<2x32xf32>
    %439 = arith.addf %437, %438 : vector<2x32xf32>
    %440 = arith.negf %439 : vector<2x32xf32>
    %441 = math.exp %440 : vector<2x32xf32>
    %cst_80 = arith.constant 1.000000e+00 : f32
    %442 = vector.broadcast %cst_80 : f32 to vector<2x32xf32>
    %443 = arith.addf %442, %441 : vector<2x32xf32>
    %444 = arith.divf %442, %443 : vector<2x32xf32>
    %445 = vector.extract_strided_slice %398 {offsets = [0, 64], sizes = [2, 32], strides = [1, 1]} : vector<2x96xf32> to vector<2x32xf32>
    %446 = vector.extract_strided_slice %400 {offsets = [0, 64], sizes = [2, 32], strides = [1, 1]} : vector<2x96xf32> to vector<2x32xf32>
    %447 = arith.mulf %436, %446 : vector<2x32xf32>
    %448 = arith.addf %445, %447 : vector<2x32xf32>
    %449 = math.tanh %448 : vector<2x32xf32>
    %cst_81 = arith.constant 1.000000e+00 : f32
    %450 = vector.broadcast %cst_81 : f32 to vector<2x32xf32>
    %451 = arith.subf %450, %444 : vector<2x32xf32>
    %452 = arith.mulf %451, %449 : vector<2x32xf32>
    %453 = arith.mulf %444, %402 : vector<2x32xf32>
    %454 = arith.addf %452, %453 : vector<2x32xf32>
    %455 = tpu.concatenate %428, %454 in 1 : vector<2x32xf32>, vector<2x32xf32> -> vector<2x64xf32>
    %456 = arith.truncf %455 : vector<2x64xf32> to vector<2x64xbf16>
    %cst_82 = arith.constant dense<0.000000e+00> : vector<2x192xf32>
    %457 = tpu.matmul %456, %6, %cst_82 {dimension_numbers = #tpu.dot_dimension_numbers<[1], [0], [0], [1], [0, 0, 1, 1], [], []>} : vector<2x64xbf16>, vector<64x192xbf16>, vector<2x192xf32> -> vector<2x192xf32>
    %458 = vector.broadcast %7 : vector<1x192xf32> to vector<2x192xf32>
    %459 = arith.addf %457, %458 : vector<2x192xf32>
    %460 = vector.extract_strided_slice %129 {offsets = [5, 0, 0], sizes = [1, 2, 96], strides = [1, 1, 1]} : vector<16x2x192xf32> to vector<1x2x96xf32>
    %461 = vector.shape_cast %460 : vector<1x2x96xf32> to vector<2x96xf32>
    %462 = vector.extract_strided_slice %129 {offsets = [10, 0, 96], sizes = [1, 2, 96], strides = [1, 1, 1]} : vector<16x2x192xf32> to vector<1x2x96xf32>
    %463 = vector.shape_cast %462 : vector<1x2x96xf32> to vector<2x96xf32>
    %464 = vector.extract_strided_slice %459 {offsets = [0, 0], sizes = [2, 96], strides = [1, 1]} : vector<2x192xf32> to vector<2x96xf32>
    %465 = vector.extract_strided_slice %459 {offsets = [0, 96], sizes = [2, 96], strides = [1, 1]} : vector<2x192xf32> to vector<2x96xf32>
    %466 = vector.extract_strided_slice %455 {offsets = [0, 0], sizes = [2, 32], strides = [1, 1]} : vector<2x64xf32> to vector<2x32xf32>
    %467 = vector.extract_strided_slice %455 {offsets = [0, 32], sizes = [2, 32], strides = [1, 1]} : vector<2x64xf32> to vector<2x32xf32>
    %468 = vector.extract_strided_slice %461 {offsets = [0, 0], sizes = [2, 32], strides = [1, 1]} : vector<2x96xf32> to vector<2x32xf32>
    %469 = vector.extract_strided_slice %464 {offsets = [0, 0], sizes = [2, 32], strides = [1, 1]} : vector<2x96xf32> to vector<2x32xf32>
    %470 = arith.addf %468, %469 : vector<2x32xf32>
    %471 = arith.negf %470 : vector<2x32xf32>
    %472 = math.exp %471 : vector<2x32xf32>
    %cst_83 = arith.constant 1.000000e+00 : f32
    %473 = vector.broadcast %cst_83 : f32 to vector<2x32xf32>
    %474 = arith.addf %473, %472 : vector<2x32xf32>
    %475 = arith.divf %473, %474 : vector<2x32xf32>
    %476 = vector.extract_strided_slice %461 {offsets = [0, 32], sizes = [2, 32], strides = [1, 1]} : vector<2x96xf32> to vector<2x32xf32>
    %477 = vector.extract_strided_slice %464 {offsets = [0, 32], sizes = [2, 32], strides = [1, 1]} : vector<2x96xf32> to vector<2x32xf32>
    %478 = arith.addf %476, %477 : vector<2x32xf32>
    %479 = arith.negf %478 : vector<2x32xf32>
    %480 = math.exp %479 : vector<2x32xf32>
    %cst_84 = arith.constant 1.000000e+00 : f32
    %481 = vector.broadcast %cst_84 : f32 to vector<2x32xf32>
    %482 = arith.addf %481, %480 : vector<2x32xf32>
    %483 = arith.divf %481, %482 : vector<2x32xf32>
    %484 = vector.extract_strided_slice %461 {offsets = [0, 64], sizes = [2, 32], strides = [1, 1]} : vector<2x96xf32> to vector<2x32xf32>
    %485 = vector.extract_strided_slice %464 {offsets = [0, 64], sizes = [2, 32], strides = [1, 1]} : vector<2x96xf32> to vector<2x32xf32>
    %486 = arith.mulf %475, %485 : vector<2x32xf32>
    %487 = arith.addf %484, %486 : vector<2x32xf32>
    %488 = math.tanh %487 : vector<2x32xf32>
    %cst_85 = arith.constant 1.000000e+00 : f32
    %489 = vector.broadcast %cst_85 : f32 to vector<2x32xf32>
    %490 = arith.subf %489, %483 : vector<2x32xf32>
    %491 = arith.mulf %490, %488 : vector<2x32xf32>
    %492 = arith.mulf %483, %466 : vector<2x32xf32>
    %493 = arith.addf %491, %492 : vector<2x32xf32>
    %494 = vector.extract_strided_slice %463 {offsets = [0, 0], sizes = [2, 32], strides = [1, 1]} : vector<2x96xf32> to vector<2x32xf32>
    %495 = vector.extract_strided_slice %465 {offsets = [0, 0], sizes = [2, 32], strides = [1, 1]} : vector<2x96xf32> to vector<2x32xf32>
    %496 = arith.addf %494, %495 : vector<2x32xf32>
    %497 = arith.negf %496 : vector<2x32xf32>
    %498 = math.exp %497 : vector<2x32xf32>
    %cst_86 = arith.constant 1.000000e+00 : f32
    %499 = vector.broadcast %cst_86 : f32 to vector<2x32xf32>
    %500 = arith.addf %499, %498 : vector<2x32xf32>
    %501 = arith.divf %499, %500 : vector<2x32xf32>
    %502 = vector.extract_strided_slice %463 {offsets = [0, 32], sizes = [2, 32], strides = [1, 1]} : vector<2x96xf32> to vector<2x32xf32>
    %503 = vector.extract_strided_slice %465 {offsets = [0, 32], sizes = [2, 32], strides = [1, 1]} : vector<2x96xf32> to vector<2x32xf32>
    %504 = arith.addf %502, %503 : vector<2x32xf32>
    %505 = arith.negf %504 : vector<2x32xf32>
    %506 = math.exp %505 : vector<2x32xf32>
    %cst_87 = arith.constant 1.000000e+00 : f32
    %507 = vector.broadcast %cst_87 : f32 to vector<2x32xf32>
    %508 = arith.addf %507, %506 : vector<2x32xf32>
    %509 = arith.divf %507, %508 : vector<2x32xf32>
    %510 = vector.extract_strided_slice %463 {offsets = [0, 64], sizes = [2, 32], strides = [1, 1]} : vector<2x96xf32> to vector<2x32xf32>
    %511 = vector.extract_strided_slice %465 {offsets = [0, 64], sizes = [2, 32], strides = [1, 1]} : vector<2x96xf32> to vector<2x32xf32>
    %512 = arith.mulf %501, %511 : vector<2x32xf32>
    %513 = arith.addf %510, %512 : vector<2x32xf32>
    %514 = math.tanh %513 : vector<2x32xf32>
    %cst_88 = arith.constant 1.000000e+00 : f32
    %515 = vector.broadcast %cst_88 : f32 to vector<2x32xf32>
    %516 = arith.subf %515, %509 : vector<2x32xf32>
    %517 = arith.mulf %516, %514 : vector<2x32xf32>
    %518 = arith.mulf %509, %467 : vector<2x32xf32>
    %519 = arith.addf %517, %518 : vector<2x32xf32>
    %520 = tpu.concatenate %493, %519 in 1 : vector<2x32xf32>, vector<2x32xf32> -> vector<2x64xf32>
    %521 = arith.truncf %520 : vector<2x64xf32> to vector<2x64xbf16>
    %cst_89 = arith.constant dense<0.000000e+00> : vector<2x192xf32>
    %522 = tpu.matmul %521, %6, %cst_89 {dimension_numbers = #tpu.dot_dimension_numbers<[1], [0], [0], [1], [0, 0, 1, 1], [], []>} : vector<2x64xbf16>, vector<64x192xbf16>, vector<2x192xf32> -> vector<2x192xf32>
    %523 = vector.broadcast %7 : vector<1x192xf32> to vector<2x192xf32>
    %524 = arith.addf %522, %523 : vector<2x192xf32>
    %525 = vector.extract_strided_slice %129 {offsets = [6, 0, 0], sizes = [1, 2, 96], strides = [1, 1, 1]} : vector<16x2x192xf32> to vector<1x2x96xf32>
    %526 = vector.shape_cast %525 : vector<1x2x96xf32> to vector<2x96xf32>
    %527 = vector.extract_strided_slice %129 {offsets = [9, 0, 96], sizes = [1, 2, 96], strides = [1, 1, 1]} : vector<16x2x192xf32> to vector<1x2x96xf32>
    %528 = vector.shape_cast %527 : vector<1x2x96xf32> to vector<2x96xf32>
    %529 = vector.extract_strided_slice %524 {offsets = [0, 0], sizes = [2, 96], strides = [1, 1]} : vector<2x192xf32> to vector<2x96xf32>
    %530 = vector.extract_strided_slice %524 {offsets = [0, 96], sizes = [2, 96], strides = [1, 1]} : vector<2x192xf32> to vector<2x96xf32>
    %531 = vector.extract_strided_slice %520 {offsets = [0, 0], sizes = [2, 32], strides = [1, 1]} : vector<2x64xf32> to vector<2x32xf32>
    %532 = vector.extract_strided_slice %520 {offsets = [0, 32], sizes = [2, 32], strides = [1, 1]} : vector<2x64xf32> to vector<2x32xf32>
    %533 = vector.extract_strided_slice %526 {offsets = [0, 0], sizes = [2, 32], strides = [1, 1]} : vector<2x96xf32> to vector<2x32xf32>
    %534 = vector.extract_strided_slice %529 {offsets = [0, 0], sizes = [2, 32], strides = [1, 1]} : vector<2x96xf32> to vector<2x32xf32>
    %535 = arith.addf %533, %534 : vector<2x32xf32>
    %536 = arith.negf %535 : vector<2x32xf32>
    %537 = math.exp %536 : vector<2x32xf32>
    %cst_90 = arith.constant 1.000000e+00 : f32
    %538 = vector.broadcast %cst_90 : f32 to vector<2x32xf32>
    %539 = arith.addf %538, %537 : vector<2x32xf32>
    %540 = arith.divf %538, %539 : vector<2x32xf32>
    %541 = vector.extract_strided_slice %526 {offsets = [0, 32], sizes = [2, 32], strides = [1, 1]} : vector<2x96xf32> to vector<2x32xf32>
    %542 = vector.extract_strided_slice %529 {offsets = [0, 32], sizes = [2, 32], strides = [1, 1]} : vector<2x96xf32> to vector<2x32xf32>
    %543 = arith.addf %541, %542 : vector<2x32xf32>
    %544 = arith.negf %543 : vector<2x32xf32>
    %545 = math.exp %544 : vector<2x32xf32>
    %cst_91 = arith.constant 1.000000e+00 : f32
    %546 = vector.broadcast %cst_91 : f32 to vector<2x32xf32>
    %547 = arith.addf %546, %545 : vector<2x32xf32>
    %548 = arith.divf %546, %547 : vector<2x32xf32>
    %549 = vector.extract_strided_slice %526 {offsets = [0, 64], sizes = [2, 32], strides = [1, 1]} : vector<2x96xf32> to vector<2x32xf32>
    %550 = vector.extract_strided_slice %529 {offsets = [0, 64], sizes = [2, 32], strides = [1, 1]} : vector<2x96xf32> to vector<2x32xf32>
    %551 = arith.mulf %540, %550 : vector<2x32xf32>
    %552 = arith.addf %549, %551 : vector<2x32xf32>
    %553 = math.tanh %552 : vector<2x32xf32>
    %cst_92 = arith.constant 1.000000e+00 : f32
    %554 = vector.broadcast %cst_92 : f32 to vector<2x32xf32>
    %555 = arith.subf %554, %548 : vector<2x32xf32>
    %556 = arith.mulf %555, %553 : vector<2x32xf32>
    %557 = arith.mulf %548, %531 : vector<2x32xf32>
    %558 = arith.addf %556, %557 : vector<2x32xf32>
    %559 = vector.extract_strided_slice %528 {offsets = [0, 0], sizes = [2, 32], strides = [1, 1]} : vector<2x96xf32> to vector<2x32xf32>
    %560 = vector.extract_strided_slice %530 {offsets = [0, 0], sizes = [2, 32], strides = [1, 1]} : vector<2x96xf32> to vector<2x32xf32>
    %561 = arith.addf %559, %560 : vector<2x32xf32>
    %562 = arith.negf %561 : vector<2x32xf32>
    %563 = math.exp %562 : vector<2x32xf32>
    %cst_93 = arith.constant 1.000000e+00 : f32
    %564 = vector.broadcast %cst_93 : f32 to vector<2x32xf32>
    %565 = arith.addf %564, %563 : vector<2x32xf32>
    %566 = arith.divf %564, %565 : vector<2x32xf32>
    %567 = vector.extract_strided_slice %528 {offsets = [0, 32], sizes = [2, 32], strides = [1, 1]} : vector<2x96xf32> to vector<2x32xf32>
    %568 = vector.extract_strided_slice %530 {offsets = [0, 32], sizes = [2, 32], strides = [1, 1]} : vector<2x96xf32> to vector<2x32xf32>
    %569 = arith.addf %567, %568 : vector<2x32xf32>
    %570 = arith.negf %569 : vector<2x32xf32>
    %571 = math.exp %570 : vector<2x32xf32>
    %cst_94 = arith.constant 1.000000e+00 : f32
    %572 = vector.broadcast %cst_94 : f32 to vector<2x32xf32>
    %573 = arith.addf %572, %571 : vector<2x32xf32>
    %574 = arith.divf %572, %573 : vector<2x32xf32>
    %575 = vector.extract_strided_slice %528 {offsets = [0, 64], sizes = [2, 32], strides = [1, 1]} : vector<2x96xf32> to vector<2x32xf32>
    %576 = vector.extract_strided_slice %530 {offsets = [0, 64], sizes = [2, 32], strides = [1, 1]} : vector<2x96xf32> to vector<2x32xf32>
    %577 = arith.mulf %566, %576 : vector<2x32xf32>
    %578 = arith.addf %575, %577 : vector<2x32xf32>
    %579 = math.tanh %578 : vector<2x32xf32>
    %cst_95 = arith.constant 1.000000e+00 : f32
    %580 = vector.broadcast %cst_95 : f32 to vector<2x32xf32>
    %581 = arith.subf %580, %574 : vector<2x32xf32>
    %582 = arith.mulf %581, %579 : vector<2x32xf32>
    %583 = arith.mulf %574, %532 : vector<2x32xf32>
    %584 = arith.addf %582, %583 : vector<2x32xf32>
    %585 = tpu.concatenate %558, %584 in 1 : vector<2x32xf32>, vector<2x32xf32> -> vector<2x64xf32>
    %586 = arith.truncf %585 : vector<2x64xf32> to vector<2x64xbf16>
    %cst_96 = arith.constant dense<0.000000e+00> : vector<2x192xf32>
    %587 = tpu.matmul %586, %6, %cst_96 {dimension_numbers = #tpu.dot_dimension_numbers<[1], [0], [0], [1], [0, 0, 1, 1], [], []>} : vector<2x64xbf16>, vector<64x192xbf16>, vector<2x192xf32> -> vector<2x192xf32>
    %588 = vector.broadcast %7 : vector<1x192xf32> to vector<2x192xf32>
    %589 = arith.addf %587, %588 : vector<2x192xf32>
    %590 = vector.extract_strided_slice %129 {offsets = [7, 0, 0], sizes = [1, 2, 96], strides = [1, 1, 1]} : vector<16x2x192xf32> to vector<1x2x96xf32>
    %591 = vector.shape_cast %590 : vector<1x2x96xf32> to vector<2x96xf32>
    %592 = vector.extract_strided_slice %129 {offsets = [8, 0, 96], sizes = [1, 2, 96], strides = [1, 1, 1]} : vector<16x2x192xf32> to vector<1x2x96xf32>
    %593 = vector.shape_cast %592 : vector<1x2x96xf32> to vector<2x96xf32>
    %594 = vector.extract_strided_slice %589 {offsets = [0, 0], sizes = [2, 96], strides = [1, 1]} : vector<2x192xf32> to vector<2x96xf32>
    %595 = vector.extract_strided_slice %589 {offsets = [0, 96], sizes = [2, 96], strides = [1, 1]} : vector<2x192xf32> to vector<2x96xf32>
    %596 = vector.extract_strided_slice %585 {offsets = [0, 0], sizes = [2, 32], strides = [1, 1]} : vector<2x64xf32> to vector<2x32xf32>
    %597 = vector.extract_strided_slice %585 {offsets = [0, 32], sizes = [2, 32], strides = [1, 1]} : vector<2x64xf32> to vector<2x32xf32>
    %598 = vector.extract_strided_slice %591 {offsets = [0, 0], sizes = [2, 32], strides = [1, 1]} : vector<2x96xf32> to vector<2x32xf32>
    %599 = vector.extract_strided_slice %594 {offsets = [0, 0], sizes = [2, 32], strides = [1, 1]} : vector<2x96xf32> to vector<2x32xf32>
    %600 = arith.addf %598, %599 : vector<2x32xf32>
    %601 = arith.negf %600 : vector<2x32xf32>
    %602 = math.exp %601 : vector<2x32xf32>
    %cst_97 = arith.constant 1.000000e+00 : f32
    %603 = vector.broadcast %cst_97 : f32 to vector<2x32xf32>
    %604 = arith.addf %603, %602 : vector<2x32xf32>
    %605 = arith.divf %603, %604 : vector<2x32xf32>
    %606 = vector.extract_strided_slice %591 {offsets = [0, 32], sizes = [2, 32], strides = [1, 1]} : vector<2x96xf32> to vector<2x32xf32>
    %607 = vector.extract_strided_slice %594 {offsets = [0, 32], sizes = [2, 32], strides = [1, 1]} : vector<2x96xf32> to vector<2x32xf32>
    %608 = arith.addf %606, %607 : vector<2x32xf32>
    %609 = arith.negf %608 : vector<2x32xf32>
    %610 = math.exp %609 : vector<2x32xf32>
    %cst_98 = arith.constant 1.000000e+00 : f32
    %611 = vector.broadcast %cst_98 : f32 to vector<2x32xf32>
    %612 = arith.addf %611, %610 : vector<2x32xf32>
    %613 = arith.divf %611, %612 : vector<2x32xf32>
    %614 = vector.extract_strided_slice %591 {offsets = [0, 64], sizes = [2, 32], strides = [1, 1]} : vector<2x96xf32> to vector<2x32xf32>
    %615 = vector.extract_strided_slice %594 {offsets = [0, 64], sizes = [2, 32], strides = [1, 1]} : vector<2x96xf32> to vector<2x32xf32>
    %616 = arith.mulf %605, %615 : vector<2x32xf32>
    %617 = arith.addf %614, %616 : vector<2x32xf32>
    %618 = math.tanh %617 : vector<2x32xf32>
    %cst_99 = arith.constant 1.000000e+00 : f32
    %619 = vector.broadcast %cst_99 : f32 to vector<2x32xf32>
    %620 = arith.subf %619, %613 : vector<2x32xf32>
    %621 = arith.mulf %620, %618 : vector<2x32xf32>
    %622 = arith.mulf %613, %596 : vector<2x32xf32>
    %623 = arith.addf %621, %622 : vector<2x32xf32>
    %624 = vector.extract_strided_slice %593 {offsets = [0, 0], sizes = [2, 32], strides = [1, 1]} : vector<2x96xf32> to vector<2x32xf32>
    %625 = vector.extract_strided_slice %595 {offsets = [0, 0], sizes = [2, 32], strides = [1, 1]} : vector<2x96xf32> to vector<2x32xf32>
    %626 = arith.addf %624, %625 : vector<2x32xf32>
    %627 = arith.negf %626 : vector<2x32xf32>
    %628 = math.exp %627 : vector<2x32xf32>
    %cst_100 = arith.constant 1.000000e+00 : f32
    %629 = vector.broadcast %cst_100 : f32 to vector<2x32xf32>
    %630 = arith.addf %629, %628 : vector<2x32xf32>
    %631 = arith.divf %629, %630 : vector<2x32xf32>
    %632 = vector.extract_strided_slice %593 {offsets = [0, 32], sizes = [2, 32], strides = [1, 1]} : vector<2x96xf32> to vector<2x32xf32>
    %633 = vector.extract_strided_slice %595 {offsets = [0, 32], sizes = [2, 32], strides = [1, 1]} : vector<2x96xf32> to vector<2x32xf32>
    %634 = arith.addf %632, %633 : vector<2x32xf32>
    %635 = arith.negf %634 : vector<2x32xf32>
    %636 = math.exp %635 : vector<2x32xf32>
    %cst_101 = arith.constant 1.000000e+00 : f32
    %637 = vector.broadcast %cst_101 : f32 to vector<2x32xf32>
    %638 = arith.addf %637, %636 : vector<2x32xf32>
    %639 = arith.divf %637, %638 : vector<2x32xf32>
    %640 = vector.extract_strided_slice %593 {offsets = [0, 64], sizes = [2, 32], strides = [1, 1]} : vector<2x96xf32> to vector<2x32xf32>
    %641 = vector.extract_strided_slice %595 {offsets = [0, 64], sizes = [2, 32], strides = [1, 1]} : vector<2x96xf32> to vector<2x32xf32>
    %642 = arith.mulf %631, %641 : vector<2x32xf32>
    %643 = arith.addf %640, %642 : vector<2x32xf32>
    %644 = math.tanh %643 : vector<2x32xf32>
    %cst_102 = arith.constant 1.000000e+00 : f32
    %645 = vector.broadcast %cst_102 : f32 to vector<2x32xf32>
    %646 = arith.subf %645, %639 : vector<2x32xf32>
    %647 = arith.mulf %646, %644 : vector<2x32xf32>
    %648 = arith.mulf %639, %597 : vector<2x32xf32>
    %649 = arith.addf %647, %648 : vector<2x32xf32>
    %650 = tpu.concatenate %623, %649 in 1 : vector<2x32xf32>, vector<2x32xf32> -> vector<2x64xf32>
    %651 = arith.truncf %650 : vector<2x64xf32> to vector<2x64xbf16>
    %cst_103 = arith.constant dense<0.000000e+00> : vector<2x192xf32>
    %652 = tpu.matmul %651, %6, %cst_103 {dimension_numbers = #tpu.dot_dimension_numbers<[1], [0], [0], [1], [0, 0, 1, 1], [], []>} : vector<2x64xbf16>, vector<64x192xbf16>, vector<2x192xf32> -> vector<2x192xf32>
    %653 = vector.broadcast %7 : vector<1x192xf32> to vector<2x192xf32>
    %654 = arith.addf %652, %653 : vector<2x192xf32>
    %655 = vector.extract_strided_slice %129 {offsets = [8, 0, 0], sizes = [1, 2, 96], strides = [1, 1, 1]} : vector<16x2x192xf32> to vector<1x2x96xf32>
    %656 = vector.shape_cast %655 : vector<1x2x96xf32> to vector<2x96xf32>
    %657 = vector.extract_strided_slice %129 {offsets = [7, 0, 96], sizes = [1, 2, 96], strides = [1, 1, 1]} : vector<16x2x192xf32> to vector<1x2x96xf32>
    %658 = vector.shape_cast %657 : vector<1x2x96xf32> to vector<2x96xf32>
    %659 = vector.extract_strided_slice %654 {offsets = [0, 0], sizes = [2, 96], strides = [1, 1]} : vector<2x192xf32> to vector<2x96xf32>
    %660 = vector.extract_strided_slice %654 {offsets = [0, 96], sizes = [2, 96], strides = [1, 1]} : vector<2x192xf32> to vector<2x96xf32>
    %661 = vector.extract_strided_slice %650 {offsets = [0, 0], sizes = [2, 32], strides = [1, 1]} : vector<2x64xf32> to vector<2x32xf32>
    %662 = vector.extract_strided_slice %650 {offsets = [0, 32], sizes = [2, 32], strides = [1, 1]} : vector<2x64xf32> to vector<2x32xf32>
    %663 = vector.extract_strided_slice %656 {offsets = [0, 0], sizes = [2, 32], strides = [1, 1]} : vector<2x96xf32> to vector<2x32xf32>
    %664 = vector.extract_strided_slice %659 {offsets = [0, 0], sizes = [2, 32], strides = [1, 1]} : vector<2x96xf32> to vector<2x32xf32>
    %665 = arith.addf %663, %664 : vector<2x32xf32>
    %666 = arith.negf %665 : vector<2x32xf32>
    %667 = math.exp %666 : vector<2x32xf32>
    %cst_104 = arith.constant 1.000000e+00 : f32
    %668 = vector.broadcast %cst_104 : f32 to vector<2x32xf32>
    %669 = arith.addf %668, %667 : vector<2x32xf32>
    %670 = arith.divf %668, %669 : vector<2x32xf32>
    %671 = vector.extract_strided_slice %656 {offsets = [0, 32], sizes = [2, 32], strides = [1, 1]} : vector<2x96xf32> to vector<2x32xf32>
    %672 = vector.extract_strided_slice %659 {offsets = [0, 32], sizes = [2, 32], strides = [1, 1]} : vector<2x96xf32> to vector<2x32xf32>
    %673 = arith.addf %671, %672 : vector<2x32xf32>
    %674 = arith.negf %673 : vector<2x32xf32>
    %675 = math.exp %674 : vector<2x32xf32>
    %cst_105 = arith.constant 1.000000e+00 : f32
    %676 = vector.broadcast %cst_105 : f32 to vector<2x32xf32>
    %677 = arith.addf %676, %675 : vector<2x32xf32>
    %678 = arith.divf %676, %677 : vector<2x32xf32>
    %679 = vector.extract_strided_slice %656 {offsets = [0, 64], sizes = [2, 32], strides = [1, 1]} : vector<2x96xf32> to vector<2x32xf32>
    %680 = vector.extract_strided_slice %659 {offsets = [0, 64], sizes = [2, 32], strides = [1, 1]} : vector<2x96xf32> to vector<2x32xf32>
    %681 = arith.mulf %670, %680 : vector<2x32xf32>
    %682 = arith.addf %679, %681 : vector<2x32xf32>
    %683 = math.tanh %682 : vector<2x32xf32>
    %cst_106 = arith.constant 1.000000e+00 : f32
    %684 = vector.broadcast %cst_106 : f32 to vector<2x32xf32>
    %685 = arith.subf %684, %678 : vector<2x32xf32>
    %686 = arith.mulf %685, %683 : vector<2x32xf32>
    %687 = arith.mulf %678, %661 : vector<2x32xf32>
    %688 = arith.addf %686, %687 : vector<2x32xf32>
    %689 = vector.extract_strided_slice %658 {offsets = [0, 0], sizes = [2, 32], strides = [1, 1]} : vector<2x96xf32> to vector<2x32xf32>
    %690 = vector.extract_strided_slice %660 {offsets = [0, 0], sizes = [2, 32], strides = [1, 1]} : vector<2x96xf32> to vector<2x32xf32>
    %691 = arith.addf %689, %690 : vector<2x32xf32>
    %692 = arith.negf %691 : vector<2x32xf32>
    %693 = math.exp %692 : vector<2x32xf32>
    %cst_107 = arith.constant 1.000000e+00 : f32
    %694 = vector.broadcast %cst_107 : f32 to vector<2x32xf32>
    %695 = arith.addf %694, %693 : vector<2x32xf32>
    %696 = arith.divf %694, %695 : vector<2x32xf32>
    %697 = vector.extract_strided_slice %658 {offsets = [0, 32], sizes = [2, 32], strides = [1, 1]} : vector<2x96xf32> to vector<2x32xf32>
    %698 = vector.extract_strided_slice %660 {offsets = [0, 32], sizes = [2, 32], strides = [1, 1]} : vector<2x96xf32> to vector<2x32xf32>
    %699 = arith.addf %697, %698 : vector<2x32xf32>
    %700 = arith.negf %699 : vector<2x32xf32>
    %701 = math.exp %700 : vector<2x32xf32>
    %cst_108 = arith.constant 1.000000e+00 : f32
    %702 = vector.broadcast %cst_108 : f32 to vector<2x32xf32>
    %703 = arith.addf %702, %701 : vector<2x32xf32>
    %704 = arith.divf %702, %703 : vector<2x32xf32>
    %705 = vector.extract_strided_slice %658 {offsets = [0, 64], sizes = [2, 32], strides = [1, 1]} : vector<2x96xf32> to vector<2x32xf32>
    %706 = vector.extract_strided_slice %660 {offsets = [0, 64], sizes = [2, 32], strides = [1, 1]} : vector<2x96xf32> to vector<2x32xf32>
    %707 = arith.mulf %696, %706 : vector<2x32xf32>
    %708 = arith.addf %705, %707 : vector<2x32xf32>
    %709 = math.tanh %708 : vector<2x32xf32>
    %cst_109 = arith.constant 1.000000e+00 : f32
    %710 = vector.broadcast %cst_109 : f32 to vector<2x32xf32>
    %711 = arith.subf %710, %704 : vector<2x32xf32>
    %712 = arith.mulf %711, %709 : vector<2x32xf32>
    %713 = arith.mulf %704, %662 : vector<2x32xf32>
    %714 = arith.addf %712, %713 : vector<2x32xf32>
    %715 = tpu.concatenate %688, %714 in 1 : vector<2x32xf32>, vector<2x32xf32> -> vector<2x64xf32>
    %716 = arith.truncf %715 : vector<2x64xf32> to vector<2x64xbf16>
    %cst_110 = arith.constant dense<0.000000e+00> : vector<2x192xf32>
    %717 = tpu.matmul %716, %6, %cst_110 {dimension_numbers = #tpu.dot_dimension_numbers<[1], [0], [0], [1], [0, 0, 1, 1], [], []>} : vector<2x64xbf16>, vector<64x192xbf16>, vector<2x192xf32> -> vector<2x192xf32>
    %718 = vector.broadcast %7 : vector<1x192xf32> to vector<2x192xf32>
    %719 = arith.addf %717, %718 : vector<2x192xf32>
    %720 = vector.extract_strided_slice %129 {offsets = [9, 0, 0], sizes = [1, 2, 96], strides = [1, 1, 1]} : vector<16x2x192xf32> to vector<1x2x96xf32>
    %721 = vector.shape_cast %720 : vector<1x2x96xf32> to vector<2x96xf32>
    %722 = vector.extract_strided_slice %129 {offsets = [6, 0, 96], sizes = [1, 2, 96], strides = [1, 1, 1]} : vector<16x2x192xf32> to vector<1x2x96xf32>
    %723 = vector.shape_cast %722 : vector<1x2x96xf32> to vector<2x96xf32>
    %724 = vector.extract_strided_slice %719 {offsets = [0, 0], sizes = [2, 96], strides = [1, 1]} : vector<2x192xf32> to vector<2x96xf32>
    %725 = vector.extract_strided_slice %719 {offsets = [0, 96], sizes = [2, 96], strides = [1, 1]} : vector<2x192xf32> to vector<2x96xf32>
    %726 = vector.extract_strided_slice %715 {offsets = [0, 0], sizes = [2, 32], strides = [1, 1]} : vector<2x64xf32> to vector<2x32xf32>
    %727 = vector.extract_strided_slice %715 {offsets = [0, 32], sizes = [2, 32], strides = [1, 1]} : vector<2x64xf32> to vector<2x32xf32>
    %728 = vector.extract_strided_slice %721 {offsets = [0, 0], sizes = [2, 32], strides = [1, 1]} : vector<2x96xf32> to vector<2x32xf32>
    %729 = vector.extract_strided_slice %724 {offsets = [0, 0], sizes = [2, 32], strides = [1, 1]} : vector<2x96xf32> to vector<2x32xf32>
    %730 = arith.addf %728, %729 : vector<2x32xf32>
    %731 = arith.negf %730 : vector<2x32xf32>
    %732 = math.exp %731 : vector<2x32xf32>
    %cst_111 = arith.constant 1.000000e+00 : f32
    %733 = vector.broadcast %cst_111 : f32 to vector<2x32xf32>
    %734 = arith.addf %733, %732 : vector<2x32xf32>
    %735 = arith.divf %733, %734 : vector<2x32xf32>
    %736 = vector.extract_strided_slice %721 {offsets = [0, 32], sizes = [2, 32], strides = [1, 1]} : vector<2x96xf32> to vector<2x32xf32>
    %737 = vector.extract_strided_slice %724 {offsets = [0, 32], sizes = [2, 32], strides = [1, 1]} : vector<2x96xf32> to vector<2x32xf32>
    %738 = arith.addf %736, %737 : vector<2x32xf32>
    %739 = arith.negf %738 : vector<2x32xf32>
    %740 = math.exp %739 : vector<2x32xf32>
    %cst_112 = arith.constant 1.000000e+00 : f32
    %741 = vector.broadcast %cst_112 : f32 to vector<2x32xf32>
    %742 = arith.addf %741, %740 : vector<2x32xf32>
    %743 = arith.divf %741, %742 : vector<2x32xf32>
    %744 = vector.extract_strided_slice %721 {offsets = [0, 64], sizes = [2, 32], strides = [1, 1]} : vector<2x96xf32> to vector<2x32xf32>
    %745 = vector.extract_strided_slice %724 {offsets = [0, 64], sizes = [2, 32], strides = [1, 1]} : vector<2x96xf32> to vector<2x32xf32>
    %746 = arith.mulf %735, %745 : vector<2x32xf32>
    %747 = arith.addf %744, %746 : vector<2x32xf32>
    %748 = math.tanh %747 : vector<2x32xf32>
    %cst_113 = arith.constant 1.000000e+00 : f32
    %749 = vector.broadcast %cst_113 : f32 to vector<2x32xf32>
    %750 = arith.subf %749, %743 : vector<2x32xf32>
    %751 = arith.mulf %750, %748 : vector<2x32xf32>
    %752 = arith.mulf %743, %726 : vector<2x32xf32>
    %753 = arith.addf %751, %752 : vector<2x32xf32>
    %754 = vector.extract_strided_slice %723 {offsets = [0, 0], sizes = [2, 32], strides = [1, 1]} : vector<2x96xf32> to vector<2x32xf32>
    %755 = vector.extract_strided_slice %725 {offsets = [0, 0], sizes = [2, 32], strides = [1, 1]} : vector<2x96xf32> to vector<2x32xf32>
    %756 = arith.addf %754, %755 : vector<2x32xf32>
    %757 = arith.negf %756 : vector<2x32xf32>
    %758 = math.exp %757 : vector<2x32xf32>
    %cst_114 = arith.constant 1.000000e+00 : f32
    %759 = vector.broadcast %cst_114 : f32 to vector<2x32xf32>
    %760 = arith.addf %759, %758 : vector<2x32xf32>
    %761 = arith.divf %759, %760 : vector<2x32xf32>
    %762 = vector.extract_strided_slice %723 {offsets = [0, 32], sizes = [2, 32], strides = [1, 1]} : vector<2x96xf32> to vector<2x32xf32>
    %763 = vector.extract_strided_slice %725 {offsets = [0, 32], sizes = [2, 32], strides = [1, 1]} : vector<2x96xf32> to vector<2x32xf32>
    %764 = arith.addf %762, %763 : vector<2x32xf32>
    %765 = arith.negf %764 : vector<2x32xf32>
    %766 = math.exp %765 : vector<2x32xf32>
    %cst_115 = arith.constant 1.000000e+00 : f32
    %767 = vector.broadcast %cst_115 : f32 to vector<2x32xf32>
    %768 = arith.addf %767, %766 : vector<2x32xf32>
    %769 = arith.divf %767, %768 : vector<2x32xf32>
    %770 = vector.extract_strided_slice %723 {offsets = [0, 64], sizes = [2, 32], strides = [1, 1]} : vector<2x96xf32> to vector<2x32xf32>
    %771 = vector.extract_strided_slice %725 {offsets = [0, 64], sizes = [2, 32], strides = [1, 1]} : vector<2x96xf32> to vector<2x32xf32>
    %772 = arith.mulf %761, %771 : vector<2x32xf32>
    %773 = arith.addf %770, %772 : vector<2x32xf32>
    %774 = math.tanh %773 : vector<2x32xf32>
    %cst_116 = arith.constant 1.000000e+00 : f32
    %775 = vector.broadcast %cst_116 : f32 to vector<2x32xf32>
    %776 = arith.subf %775, %769 : vector<2x32xf32>
    %777 = arith.mulf %776, %774 : vector<2x32xf32>
    %778 = arith.mulf %769, %727 : vector<2x32xf32>
    %779 = arith.addf %777, %778 : vector<2x32xf32>
    %780 = tpu.concatenate %753, %779 in 1 : vector<2x32xf32>, vector<2x32xf32> -> vector<2x64xf32>
    %781 = arith.truncf %780 : vector<2x64xf32> to vector<2x64xbf16>
    %cst_117 = arith.constant dense<0.000000e+00> : vector<2x192xf32>
    %782 = tpu.matmul %781, %6, %cst_117 {dimension_numbers = #tpu.dot_dimension_numbers<[1], [0], [0], [1], [0, 0, 1, 1], [], []>} : vector<2x64xbf16>, vector<64x192xbf16>, vector<2x192xf32> -> vector<2x192xf32>
    %783 = vector.broadcast %7 : vector<1x192xf32> to vector<2x192xf32>
    %784 = arith.addf %782, %783 : vector<2x192xf32>
    %785 = vector.extract_strided_slice %129 {offsets = [10, 0, 0], sizes = [1, 2, 96], strides = [1, 1, 1]} : vector<16x2x192xf32> to vector<1x2x96xf32>
    %786 = vector.shape_cast %785 : vector<1x2x96xf32> to vector<2x96xf32>
    %787 = vector.extract_strided_slice %129 {offsets = [5, 0, 96], sizes = [1, 2, 96], strides = [1, 1, 1]} : vector<16x2x192xf32> to vector<1x2x96xf32>
    %788 = vector.shape_cast %787 : vector<1x2x96xf32> to vector<2x96xf32>
    %789 = vector.extract_strided_slice %784 {offsets = [0, 0], sizes = [2, 96], strides = [1, 1]} : vector<2x192xf32> to vector<2x96xf32>
    %790 = vector.extract_strided_slice %784 {offsets = [0, 96], sizes = [2, 96], strides = [1, 1]} : vector<2x192xf32> to vector<2x96xf32>
    %791 = vector.extract_strided_slice %780 {offsets = [0, 0], sizes = [2, 32], strides = [1, 1]} : vector<2x64xf32> to vector<2x32xf32>
    %792 = vector.extract_strided_slice %780 {offsets = [0, 32], sizes = [2, 32], strides = [1, 1]} : vector<2x64xf32> to vector<2x32xf32>
    %793 = vector.extract_strided_slice %786 {offsets = [0, 0], sizes = [2, 32], strides = [1, 1]} : vector<2x96xf32> to vector<2x32xf32>
    %794 = vector.extract_strided_slice %789 {offsets = [0, 0], sizes = [2, 32], strides = [1, 1]} : vector<2x96xf32> to vector<2x32xf32>
    %795 = arith.addf %793, %794 : vector<2x32xf32>
    %796 = arith.negf %795 : vector<2x32xf32>
    %797 = math.exp %796 : vector<2x32xf32>
    %cst_118 = arith.constant 1.000000e+00 : f32
    %798 = vector.broadcast %cst_118 : f32 to vector<2x32xf32>
    %799 = arith.addf %798, %797 : vector<2x32xf32>
    %800 = arith.divf %798, %799 : vector<2x32xf32>
    %801 = vector.extract_strided_slice %786 {offsets = [0, 32], sizes = [2, 32], strides = [1, 1]} : vector<2x96xf32> to vector<2x32xf32>
    %802 = vector.extract_strided_slice %789 {offsets = [0, 32], sizes = [2, 32], strides = [1, 1]} : vector<2x96xf32> to vector<2x32xf32>
    %803 = arith.addf %801, %802 : vector<2x32xf32>
    %804 = arith.negf %803 : vector<2x32xf32>
    %805 = math.exp %804 : vector<2x32xf32>
    %cst_119 = arith.constant 1.000000e+00 : f32
    %806 = vector.broadcast %cst_119 : f32 to vector<2x32xf32>
    %807 = arith.addf %806, %805 : vector<2x32xf32>
    %808 = arith.divf %806, %807 : vector<2x32xf32>
    %809 = vector.extract_strided_slice %786 {offsets = [0, 64], sizes = [2, 32], strides = [1, 1]} : vector<2x96xf32> to vector<2x32xf32>
    %810 = vector.extract_strided_slice %789 {offsets = [0, 64], sizes = [2, 32], strides = [1, 1]} : vector<2x96xf32> to vector<2x32xf32>
    %811 = arith.mulf %800, %810 : vector<2x32xf32>
    %812 = arith.addf %809, %811 : vector<2x32xf32>
    %813 = math.tanh %812 : vector<2x32xf32>
    %cst_120 = arith.constant 1.000000e+00 : f32
    %814 = vector.broadcast %cst_120 : f32 to vector<2x32xf32>
    %815 = arith.subf %814, %808 : vector<2x32xf32>
    %816 = arith.mulf %815, %813 : vector<2x32xf32>
    %817 = arith.mulf %808, %791 : vector<2x32xf32>
    %818 = arith.addf %816, %817 : vector<2x32xf32>
    %819 = vector.extract_strided_slice %788 {offsets = [0, 0], sizes = [2, 32], strides = [1, 1]} : vector<2x96xf32> to vector<2x32xf32>
    %820 = vector.extract_strided_slice %790 {offsets = [0, 0], sizes = [2, 32], strides = [1, 1]} : vector<2x96xf32> to vector<2x32xf32>
    %821 = arith.addf %819, %820 : vector<2x32xf32>
    %822 = arith.negf %821 : vector<2x32xf32>
    %823 = math.exp %822 : vector<2x32xf32>
    %cst_121 = arith.constant 1.000000e+00 : f32
    %824 = vector.broadcast %cst_121 : f32 to vector<2x32xf32>
    %825 = arith.addf %824, %823 : vector<2x32xf32>
    %826 = arith.divf %824, %825 : vector<2x32xf32>
    %827 = vector.extract_strided_slice %788 {offsets = [0, 32], sizes = [2, 32], strides = [1, 1]} : vector<2x96xf32> to vector<2x32xf32>
    %828 = vector.extract_strided_slice %790 {offsets = [0, 32], sizes = [2, 32], strides = [1, 1]} : vector<2x96xf32> to vector<2x32xf32>
    %829 = arith.addf %827, %828 : vector<2x32xf32>
    %830 = arith.negf %829 : vector<2x32xf32>
    %831 = math.exp %830 : vector<2x32xf32>
    %cst_122 = arith.constant 1.000000e+00 : f32
    %832 = vector.broadcast %cst_122 : f32 to vector<2x32xf32>
    %833 = arith.addf %832, %831 : vector<2x32xf32>
    %834 = arith.divf %832, %833 : vector<2x32xf32>
    %835 = vector.extract_strided_slice %788 {offsets = [0, 64], sizes = [2, 32], strides = [1, 1]} : vector<2x96xf32> to vector<2x32xf32>
    %836 = vector.extract_strided_slice %790 {offsets = [0, 64], sizes = [2, 32], strides = [1, 1]} : vector<2x96xf32> to vector<2x32xf32>
    %837 = arith.mulf %826, %836 : vector<2x32xf32>
    %838 = arith.addf %835, %837 : vector<2x32xf32>
    %839 = math.tanh %838 : vector<2x32xf32>
    %cst_123 = arith.constant 1.000000e+00 : f32
    %840 = vector.broadcast %cst_123 : f32 to vector<2x32xf32>
    %841 = arith.subf %840, %834 : vector<2x32xf32>
    %842 = arith.mulf %841, %839 : vector<2x32xf32>
    %843 = arith.mulf %834, %792 : vector<2x32xf32>
    %844 = arith.addf %842, %843 : vector<2x32xf32>
    %845 = tpu.concatenate %818, %844 in 1 : vector<2x32xf32>, vector<2x32xf32> -> vector<2x64xf32>
    %846 = arith.truncf %845 : vector<2x64xf32> to vector<2x64xbf16>
    %cst_124 = arith.constant dense<0.000000e+00> : vector<2x192xf32>
    %847 = tpu.matmul %846, %6, %cst_124 {dimension_numbers = #tpu.dot_dimension_numbers<[1], [0], [0], [1], [0, 0, 1, 1], [], []>} : vector<2x64xbf16>, vector<64x192xbf16>, vector<2x192xf32> -> vector<2x192xf32>
    %848 = vector.broadcast %7 : vector<1x192xf32> to vector<2x192xf32>
    %849 = arith.addf %847, %848 : vector<2x192xf32>
    %850 = vector.extract_strided_slice %129 {offsets = [11, 0, 0], sizes = [1, 2, 96], strides = [1, 1, 1]} : vector<16x2x192xf32> to vector<1x2x96xf32>
    %851 = vector.shape_cast %850 : vector<1x2x96xf32> to vector<2x96xf32>
    %852 = vector.extract_strided_slice %129 {offsets = [4, 0, 96], sizes = [1, 2, 96], strides = [1, 1, 1]} : vector<16x2x192xf32> to vector<1x2x96xf32>
    %853 = vector.shape_cast %852 : vector<1x2x96xf32> to vector<2x96xf32>
    %854 = vector.extract_strided_slice %849 {offsets = [0, 0], sizes = [2, 96], strides = [1, 1]} : vector<2x192xf32> to vector<2x96xf32>
    %855 = vector.extract_strided_slice %849 {offsets = [0, 96], sizes = [2, 96], strides = [1, 1]} : vector<2x192xf32> to vector<2x96xf32>
    %856 = vector.extract_strided_slice %845 {offsets = [0, 0], sizes = [2, 32], strides = [1, 1]} : vector<2x64xf32> to vector<2x32xf32>
    %857 = vector.extract_strided_slice %845 {offsets = [0, 32], sizes = [2, 32], strides = [1, 1]} : vector<2x64xf32> to vector<2x32xf32>
    %858 = vector.extract_strided_slice %851 {offsets = [0, 0], sizes = [2, 32], strides = [1, 1]} : vector<2x96xf32> to vector<2x32xf32>
    %859 = vector.extract_strided_slice %854 {offsets = [0, 0], sizes = [2, 32], strides = [1, 1]} : vector<2x96xf32> to vector<2x32xf32>
    %860 = arith.addf %858, %859 : vector<2x32xf32>
    %861 = arith.negf %860 : vector<2x32xf32>
    %862 = math.exp %861 : vector<2x32xf32>
    %cst_125 = arith.constant 1.000000e+00 : f32
    %863 = vector.broadcast %cst_125 : f32 to vector<2x32xf32>
    %864 = arith.addf %863, %862 : vector<2x32xf32>
    %865 = arith.divf %863, %864 : vector<2x32xf32>
    %866 = vector.extract_strided_slice %851 {offsets = [0, 32], sizes = [2, 32], strides = [1, 1]} : vector<2x96xf32> to vector<2x32xf32>
    %867 = vector.extract_strided_slice %854 {offsets = [0, 32], sizes = [2, 32], strides = [1, 1]} : vector<2x96xf32> to vector<2x32xf32>
    %868 = arith.addf %866, %867 : vector<2x32xf32>
    %869 = arith.negf %868 : vector<2x32xf32>
    %870 = math.exp %869 : vector<2x32xf32>
    %cst_126 = arith.constant 1.000000e+00 : f32
    %871 = vector.broadcast %cst_126 : f32 to vector<2x32xf32>
    %872 = arith.addf %871, %870 : vector<2x32xf32>
    %873 = arith.divf %871, %872 : vector<2x32xf32>
    %874 = vector.extract_strided_slice %851 {offsets = [0, 64], sizes = [2, 32], strides = [1, 1]} : vector<2x96xf32> to vector<2x32xf32>
    %875 = vector.extract_strided_slice %854 {offsets = [0, 64], sizes = [2, 32], strides = [1, 1]} : vector<2x96xf32> to vector<2x32xf32>
    %876 = arith.mulf %865, %875 : vector<2x32xf32>
    %877 = arith.addf %874, %876 : vector<2x32xf32>
    %878 = math.tanh %877 : vector<2x32xf32>
    %cst_127 = arith.constant 1.000000e+00 : f32
    %879 = vector.broadcast %cst_127 : f32 to vector<2x32xf32>
    %880 = arith.subf %879, %873 : vector<2x32xf32>
    %881 = arith.mulf %880, %878 : vector<2x32xf32>
    %882 = arith.mulf %873, %856 : vector<2x32xf32>
    %883 = arith.addf %881, %882 : vector<2x32xf32>
    %884 = vector.extract_strided_slice %853 {offsets = [0, 0], sizes = [2, 32], strides = [1, 1]} : vector<2x96xf32> to vector<2x32xf32>
    %885 = vector.extract_strided_slice %855 {offsets = [0, 0], sizes = [2, 32], strides = [1, 1]} : vector<2x96xf32> to vector<2x32xf32>
    %886 = arith.addf %884, %885 : vector<2x32xf32>
    %887 = arith.negf %886 : vector<2x32xf32>
    %888 = math.exp %887 : vector<2x32xf32>
    %cst_128 = arith.constant 1.000000e+00 : f32
    %889 = vector.broadcast %cst_128 : f32 to vector<2x32xf32>
    %890 = arith.addf %889, %888 : vector<2x32xf32>
    %891 = arith.divf %889, %890 : vector<2x32xf32>
    %892 = vector.extract_strided_slice %853 {offsets = [0, 32], sizes = [2, 32], strides = [1, 1]} : vector<2x96xf32> to vector<2x32xf32>
    %893 = vector.extract_strided_slice %855 {offsets = [0, 32], sizes = [2, 32], strides = [1, 1]} : vector<2x96xf32> to vector<2x32xf32>
    %894 = arith.addf %892, %893 : vector<2x32xf32>
    %895 = arith.negf %894 : vector<2x32xf32>
    %896 = math.exp %895 : vector<2x32xf32>
    %cst_129 = arith.constant 1.000000e+00 : f32
    %897 = vector.broadcast %cst_129 : f32 to vector<2x32xf32>
    %898 = arith.addf %897, %896 : vector<2x32xf32>
    %899 = arith.divf %897, %898 : vector<2x32xf32>
    %900 = vector.extract_strided_slice %853 {offsets = [0, 64], sizes = [2, 32], strides = [1, 1]} : vector<2x96xf32> to vector<2x32xf32>
    %901 = vector.extract_strided_slice %855 {offsets = [0, 64], sizes = [2, 32], strides = [1, 1]} : vector<2x96xf32> to vector<2x32xf32>
    %902 = arith.mulf %891, %901 : vector<2x32xf32>
    %903 = arith.addf %900, %902 : vector<2x32xf32>
    %904 = math.tanh %903 : vector<2x32xf32>
    %cst_130 = arith.constant 1.000000e+00 : f32
    %905 = vector.broadcast %cst_130 : f32 to vector<2x32xf32>
    %906 = arith.subf %905, %899 : vector<2x32xf32>
    %907 = arith.mulf %906, %904 : vector<2x32xf32>
    %908 = arith.mulf %899, %857 : vector<2x32xf32>
    %909 = arith.addf %907, %908 : vector<2x32xf32>
    %910 = tpu.concatenate %883, %909 in 1 : vector<2x32xf32>, vector<2x32xf32> -> vector<2x64xf32>
    %911 = arith.truncf %910 : vector<2x64xf32> to vector<2x64xbf16>
    %cst_131 = arith.constant dense<0.000000e+00> : vector<2x192xf32>
    %912 = tpu.matmul %911, %6, %cst_131 {dimension_numbers = #tpu.dot_dimension_numbers<[1], [0], [0], [1], [0, 0, 1, 1], [], []>} : vector<2x64xbf16>, vector<64x192xbf16>, vector<2x192xf32> -> vector<2x192xf32>
    %913 = vector.broadcast %7 : vector<1x192xf32> to vector<2x192xf32>
    %914 = arith.addf %912, %913 : vector<2x192xf32>
    %915 = vector.extract_strided_slice %129 {offsets = [12, 0, 0], sizes = [1, 2, 96], strides = [1, 1, 1]} : vector<16x2x192xf32> to vector<1x2x96xf32>
    %916 = vector.shape_cast %915 : vector<1x2x96xf32> to vector<2x96xf32>
    %917 = vector.extract_strided_slice %129 {offsets = [3, 0, 96], sizes = [1, 2, 96], strides = [1, 1, 1]} : vector<16x2x192xf32> to vector<1x2x96xf32>
    %918 = vector.shape_cast %917 : vector<1x2x96xf32> to vector<2x96xf32>
    %919 = vector.extract_strided_slice %914 {offsets = [0, 0], sizes = [2, 96], strides = [1, 1]} : vector<2x192xf32> to vector<2x96xf32>
    %920 = vector.extract_strided_slice %914 {offsets = [0, 96], sizes = [2, 96], strides = [1, 1]} : vector<2x192xf32> to vector<2x96xf32>
    %921 = vector.extract_strided_slice %910 {offsets = [0, 0], sizes = [2, 32], strides = [1, 1]} : vector<2x64xf32> to vector<2x32xf32>
    %922 = vector.extract_strided_slice %910 {offsets = [0, 32], sizes = [2, 32], strides = [1, 1]} : vector<2x64xf32> to vector<2x32xf32>
    %923 = vector.extract_strided_slice %916 {offsets = [0, 0], sizes = [2, 32], strides = [1, 1]} : vector<2x96xf32> to vector<2x32xf32>
    %924 = vector.extract_strided_slice %919 {offsets = [0, 0], sizes = [2, 32], strides = [1, 1]} : vector<2x96xf32> to vector<2x32xf32>
    %925 = arith.addf %923, %924 : vector<2x32xf32>
    %926 = arith.negf %925 : vector<2x32xf32>
    %927 = math.exp %926 : vector<2x32xf32>
    %cst_132 = arith.constant 1.000000e+00 : f32
    %928 = vector.broadcast %cst_132 : f32 to vector<2x32xf32>
    %929 = arith.addf %928, %927 : vector<2x32xf32>
    %930 = arith.divf %928, %929 : vector<2x32xf32>
    %931 = vector.extract_strided_slice %916 {offsets = [0, 32], sizes = [2, 32], strides = [1, 1]} : vector<2x96xf32> to vector<2x32xf32>
    %932 = vector.extract_strided_slice %919 {offsets = [0, 32], sizes = [2, 32], strides = [1, 1]} : vector<2x96xf32> to vector<2x32xf32>
    %933 = arith.addf %931, %932 : vector<2x32xf32>
    %934 = arith.negf %933 : vector<2x32xf32>
    %935 = math.exp %934 : vector<2x32xf32>
    %cst_133 = arith.constant 1.000000e+00 : f32
    %936 = vector.broadcast %cst_133 : f32 to vector<2x32xf32>
    %937 = arith.addf %936, %935 : vector<2x32xf32>
    %938 = arith.divf %936, %937 : vector<2x32xf32>
    %939 = vector.extract_strided_slice %916 {offsets = [0, 64], sizes = [2, 32], strides = [1, 1]} : vector<2x96xf32> to vector<2x32xf32>
    %940 = vector.extract_strided_slice %919 {offsets = [0, 64], sizes = [2, 32], strides = [1, 1]} : vector<2x96xf32> to vector<2x32xf32>
    %941 = arith.mulf %930, %940 : vector<2x32xf32>
    %942 = arith.addf %939, %941 : vector<2x32xf32>
    %943 = math.tanh %942 : vector<2x32xf32>
    %cst_134 = arith.constant 1.000000e+00 : f32
    %944 = vector.broadcast %cst_134 : f32 to vector<2x32xf32>
    %945 = arith.subf %944, %938 : vector<2x32xf32>
    %946 = arith.mulf %945, %943 : vector<2x32xf32>
    %947 = arith.mulf %938, %921 : vector<2x32xf32>
    %948 = arith.addf %946, %947 : vector<2x32xf32>
    %949 = vector.extract_strided_slice %918 {offsets = [0, 0], sizes = [2, 32], strides = [1, 1]} : vector<2x96xf32> to vector<2x32xf32>
    %950 = vector.extract_strided_slice %920 {offsets = [0, 0], sizes = [2, 32], strides = [1, 1]} : vector<2x96xf32> to vector<2x32xf32>
    %951 = arith.addf %949, %950 : vector<2x32xf32>
    %952 = arith.negf %951 : vector<2x32xf32>
    %953 = math.exp %952 : vector<2x32xf32>
    %cst_135 = arith.constant 1.000000e+00 : f32
    %954 = vector.broadcast %cst_135 : f32 to vector<2x32xf32>
    %955 = arith.addf %954, %953 : vector<2x32xf32>
    %956 = arith.divf %954, %955 : vector<2x32xf32>
    %957 = vector.extract_strided_slice %918 {offsets = [0, 32], sizes = [2, 32], strides = [1, 1]} : vector<2x96xf32> to vector<2x32xf32>
    %958 = vector.extract_strided_slice %920 {offsets = [0, 32], sizes = [2, 32], strides = [1, 1]} : vector<2x96xf32> to vector<2x32xf32>
    %959 = arith.addf %957, %958 : vector<2x32xf32>
    %960 = arith.negf %959 : vector<2x32xf32>
    %961 = math.exp %960 : vector<2x32xf32>
    %cst_136 = arith.constant 1.000000e+00 : f32
    %962 = vector.broadcast %cst_136 : f32 to vector<2x32xf32>
    %963 = arith.addf %962, %961 : vector<2x32xf32>
    %964 = arith.divf %962, %963 : vector<2x32xf32>
    %965 = vector.extract_strided_slice %918 {offsets = [0, 64], sizes = [2, 32], strides = [1, 1]} : vector<2x96xf32> to vector<2x32xf32>
    %966 = vector.extract_strided_slice %920 {offsets = [0, 64], sizes = [2, 32], strides = [1, 1]} : vector<2x96xf32> to vector<2x32xf32>
    %967 = arith.mulf %956, %966 : vector<2x32xf32>
    %968 = arith.addf %965, %967 : vector<2x32xf32>
    %969 = math.tanh %968 : vector<2x32xf32>
    %cst_137 = arith.constant 1.000000e+00 : f32
    %970 = vector.broadcast %cst_137 : f32 to vector<2x32xf32>
    %971 = arith.subf %970, %964 : vector<2x32xf32>
    %972 = arith.mulf %971, %969 : vector<2x32xf32>
    %973 = arith.mulf %964, %922 : vector<2x32xf32>
    %974 = arith.addf %972, %973 : vector<2x32xf32>
    %975 = tpu.concatenate %948, %974 in 1 : vector<2x32xf32>, vector<2x32xf32> -> vector<2x64xf32>
    %976 = arith.truncf %975 : vector<2x64xf32> to vector<2x64xbf16>
    %cst_138 = arith.constant dense<0.000000e+00> : vector<2x192xf32>
    %977 = tpu.matmul %976, %6, %cst_138 {dimension_numbers = #tpu.dot_dimension_numbers<[1], [0], [0], [1], [0, 0, 1, 1], [], []>} : vector<2x64xbf16>, vector<64x192xbf16>, vector<2x192xf32> -> vector<2x192xf32>
    %978 = vector.broadcast %7 : vector<1x192xf32> to vector<2x192xf32>
    %979 = arith.addf %977, %978 : vector<2x192xf32>
    %980 = vector.extract_strided_slice %129 {offsets = [13, 0, 0], sizes = [1, 2, 96], strides = [1, 1, 1]} : vector<16x2x192xf32> to vector<1x2x96xf32>
    %981 = vector.shape_cast %980 : vector<1x2x96xf32> to vector<2x96xf32>
    %982 = vector.extract_strided_slice %129 {offsets = [2, 0, 96], sizes = [1, 2, 96], strides = [1, 1, 1]} : vector<16x2x192xf32> to vector<1x2x96xf32>
    %983 = vector.shape_cast %982 : vector<1x2x96xf32> to vector<2x96xf32>
    %984 = vector.extract_strided_slice %979 {offsets = [0, 0], sizes = [2, 96], strides = [1, 1]} : vector<2x192xf32> to vector<2x96xf32>
    %985 = vector.extract_strided_slice %979 {offsets = [0, 96], sizes = [2, 96], strides = [1, 1]} : vector<2x192xf32> to vector<2x96xf32>
    %986 = vector.extract_strided_slice %975 {offsets = [0, 0], sizes = [2, 32], strides = [1, 1]} : vector<2x64xf32> to vector<2x32xf32>
    %987 = vector.extract_strided_slice %975 {offsets = [0, 32], sizes = [2, 32], strides = [1, 1]} : vector<2x64xf32> to vector<2x32xf32>
    %988 = vector.extract_strided_slice %981 {offsets = [0, 0], sizes = [2, 32], strides = [1, 1]} : vector<2x96xf32> to vector<2x32xf32>
    %989 = vector.extract_strided_slice %984 {offsets = [0, 0], sizes = [2, 32], strides = [1, 1]} : vector<2x96xf32> to vector<2x32xf32>
    %990 = arith.addf %988, %989 : vector<2x32xf32>
    %991 = arith.negf %990 : vector<2x32xf32>
    %992 = math.exp %991 : vector<2x32xf32>
    %cst_139 = arith.constant 1.000000e+00 : f32
    %993 = vector.broadcast %cst_139 : f32 to vector<2x32xf32>
    %994 = arith.addf %993, %992 : vector<2x32xf32>
    %995 = arith.divf %993, %994 : vector<2x32xf32>
    %996 = vector.extract_strided_slice %981 {offsets = [0, 32], sizes = [2, 32], strides = [1, 1]} : vector<2x96xf32> to vector<2x32xf32>
    %997 = vector.extract_strided_slice %984 {offsets = [0, 32], sizes = [2, 32], strides = [1, 1]} : vector<2x96xf32> to vector<2x32xf32>
    %998 = arith.addf %996, %997 : vector<2x32xf32>
    %999 = arith.negf %998 : vector<2x32xf32>
    %1000 = math.exp %999 : vector<2x32xf32>
    %cst_140 = arith.constant 1.000000e+00 : f32
    %1001 = vector.broadcast %cst_140 : f32 to vector<2x32xf32>
    %1002 = arith.addf %1001, %1000 : vector<2x32xf32>
    %1003 = arith.divf %1001, %1002 : vector<2x32xf32>
    %1004 = vector.extract_strided_slice %981 {offsets = [0, 64], sizes = [2, 32], strides = [1, 1]} : vector<2x96xf32> to vector<2x32xf32>
    %1005 = vector.extract_strided_slice %984 {offsets = [0, 64], sizes = [2, 32], strides = [1, 1]} : vector<2x96xf32> to vector<2x32xf32>
    %1006 = arith.mulf %995, %1005 : vector<2x32xf32>
    %1007 = arith.addf %1004, %1006 : vector<2x32xf32>
    %1008 = math.tanh %1007 : vector<2x32xf32>
    %cst_141 = arith.constant 1.000000e+00 : f32
    %1009 = vector.broadcast %cst_141 : f32 to vector<2x32xf32>
    %1010 = arith.subf %1009, %1003 : vector<2x32xf32>
    %1011 = arith.mulf %1010, %1008 : vector<2x32xf32>
    %1012 = arith.mulf %1003, %986 : vector<2x32xf32>
    %1013 = arith.addf %1011, %1012 : vector<2x32xf32>
    %1014 = vector.extract_strided_slice %983 {offsets = [0, 0], sizes = [2, 32], strides = [1, 1]} : vector<2x96xf32> to vector<2x32xf32>
    %1015 = vector.extract_strided_slice %985 {offsets = [0, 0], sizes = [2, 32], strides = [1, 1]} : vector<2x96xf32> to vector<2x32xf32>
    %1016 = arith.addf %1014, %1015 : vector<2x32xf32>
    %1017 = arith.negf %1016 : vector<2x32xf32>
    %1018 = math.exp %1017 : vector<2x32xf32>
    %cst_142 = arith.constant 1.000000e+00 : f32
    %1019 = vector.broadcast %cst_142 : f32 to vector<2x32xf32>
    %1020 = arith.addf %1019, %1018 : vector<2x32xf32>
    %1021 = arith.divf %1019, %1020 : vector<2x32xf32>
    %1022 = vector.extract_strided_slice %983 {offsets = [0, 32], sizes = [2, 32], strides = [1, 1]} : vector<2x96xf32> to vector<2x32xf32>
    %1023 = vector.extract_strided_slice %985 {offsets = [0, 32], sizes = [2, 32], strides = [1, 1]} : vector<2x96xf32> to vector<2x32xf32>
    %1024 = arith.addf %1022, %1023 : vector<2x32xf32>
    %1025 = arith.negf %1024 : vector<2x32xf32>
    %1026 = math.exp %1025 : vector<2x32xf32>
    %cst_143 = arith.constant 1.000000e+00 : f32
    %1027 = vector.broadcast %cst_143 : f32 to vector<2x32xf32>
    %1028 = arith.addf %1027, %1026 : vector<2x32xf32>
    %1029 = arith.divf %1027, %1028 : vector<2x32xf32>
    %1030 = vector.extract_strided_slice %983 {offsets = [0, 64], sizes = [2, 32], strides = [1, 1]} : vector<2x96xf32> to vector<2x32xf32>
    %1031 = vector.extract_strided_slice %985 {offsets = [0, 64], sizes = [2, 32], strides = [1, 1]} : vector<2x96xf32> to vector<2x32xf32>
    %1032 = arith.mulf %1021, %1031 : vector<2x32xf32>
    %1033 = arith.addf %1030, %1032 : vector<2x32xf32>
    %1034 = math.tanh %1033 : vector<2x32xf32>
    %cst_144 = arith.constant 1.000000e+00 : f32
    %1035 = vector.broadcast %cst_144 : f32 to vector<2x32xf32>
    %1036 = arith.subf %1035, %1029 : vector<2x32xf32>
    %1037 = arith.mulf %1036, %1034 : vector<2x32xf32>
    %1038 = arith.mulf %1029, %987 : vector<2x32xf32>
    %1039 = arith.addf %1037, %1038 : vector<2x32xf32>
    %1040 = tpu.concatenate %1013, %1039 in 1 : vector<2x32xf32>, vector<2x32xf32> -> vector<2x64xf32>
    %1041 = arith.truncf %1040 : vector<2x64xf32> to vector<2x64xbf16>
    %cst_145 = arith.constant dense<0.000000e+00> : vector<2x192xf32>
    %1042 = tpu.matmul %1041, %6, %cst_145 {dimension_numbers = #tpu.dot_dimension_numbers<[1], [0], [0], [1], [0, 0, 1, 1], [], []>} : vector<2x64xbf16>, vector<64x192xbf16>, vector<2x192xf32> -> vector<2x192xf32>
    %1043 = vector.broadcast %7 : vector<1x192xf32> to vector<2x192xf32>
    %1044 = arith.addf %1042, %1043 : vector<2x192xf32>
    %1045 = vector.extract_strided_slice %129 {offsets = [14, 0, 0], sizes = [1, 2, 96], strides = [1, 1, 1]} : vector<16x2x192xf32> to vector<1x2x96xf32>
    %1046 = vector.shape_cast %1045 : vector<1x2x96xf32> to vector<2x96xf32>
    %1047 = vector.extract_strided_slice %129 {offsets = [1, 0, 96], sizes = [1, 2, 96], strides = [1, 1, 1]} : vector<16x2x192xf32> to vector<1x2x96xf32>
    %1048 = vector.shape_cast %1047 : vector<1x2x96xf32> to vector<2x96xf32>
    %1049 = vector.extract_strided_slice %1044 {offsets = [0, 0], sizes = [2, 96], strides = [1, 1]} : vector<2x192xf32> to vector<2x96xf32>
    %1050 = vector.extract_strided_slice %1044 {offsets = [0, 96], sizes = [2, 96], strides = [1, 1]} : vector<2x192xf32> to vector<2x96xf32>
    %1051 = vector.extract_strided_slice %1040 {offsets = [0, 0], sizes = [2, 32], strides = [1, 1]} : vector<2x64xf32> to vector<2x32xf32>
    %1052 = vector.extract_strided_slice %1040 {offsets = [0, 32], sizes = [2, 32], strides = [1, 1]} : vector<2x64xf32> to vector<2x32xf32>
    %1053 = vector.extract_strided_slice %1046 {offsets = [0, 0], sizes = [2, 32], strides = [1, 1]} : vector<2x96xf32> to vector<2x32xf32>
    %1054 = vector.extract_strided_slice %1049 {offsets = [0, 0], sizes = [2, 32], strides = [1, 1]} : vector<2x96xf32> to vector<2x32xf32>
    %1055 = arith.addf %1053, %1054 : vector<2x32xf32>
    %1056 = arith.negf %1055 : vector<2x32xf32>
    %1057 = math.exp %1056 : vector<2x32xf32>
    %cst_146 = arith.constant 1.000000e+00 : f32
    %1058 = vector.broadcast %cst_146 : f32 to vector<2x32xf32>
    %1059 = arith.addf %1058, %1057 : vector<2x32xf32>
    %1060 = arith.divf %1058, %1059 : vector<2x32xf32>
    %1061 = vector.extract_strided_slice %1046 {offsets = [0, 32], sizes = [2, 32], strides = [1, 1]} : vector<2x96xf32> to vector<2x32xf32>
    %1062 = vector.extract_strided_slice %1049 {offsets = [0, 32], sizes = [2, 32], strides = [1, 1]} : vector<2x96xf32> to vector<2x32xf32>
    %1063 = arith.addf %1061, %1062 : vector<2x32xf32>
    %1064 = arith.negf %1063 : vector<2x32xf32>
    %1065 = math.exp %1064 : vector<2x32xf32>
    %cst_147 = arith.constant 1.000000e+00 : f32
    %1066 = vector.broadcast %cst_147 : f32 to vector<2x32xf32>
    %1067 = arith.addf %1066, %1065 : vector<2x32xf32>
    %1068 = arith.divf %1066, %1067 : vector<2x32xf32>
    %1069 = vector.extract_strided_slice %1046 {offsets = [0, 64], sizes = [2, 32], strides = [1, 1]} : vector<2x96xf32> to vector<2x32xf32>
    %1070 = vector.extract_strided_slice %1049 {offsets = [0, 64], sizes = [2, 32], strides = [1, 1]} : vector<2x96xf32> to vector<2x32xf32>
    %1071 = arith.mulf %1060, %1070 : vector<2x32xf32>
    %1072 = arith.addf %1069, %1071 : vector<2x32xf32>
    %1073 = math.tanh %1072 : vector<2x32xf32>
    %cst_148 = arith.constant 1.000000e+00 : f32
    %1074 = vector.broadcast %cst_148 : f32 to vector<2x32xf32>
    %1075 = arith.subf %1074, %1068 : vector<2x32xf32>
    %1076 = arith.mulf %1075, %1073 : vector<2x32xf32>
    %1077 = arith.mulf %1068, %1051 : vector<2x32xf32>
    %1078 = arith.addf %1076, %1077 : vector<2x32xf32>
    %1079 = vector.extract_strided_slice %1048 {offsets = [0, 0], sizes = [2, 32], strides = [1, 1]} : vector<2x96xf32> to vector<2x32xf32>
    %1080 = vector.extract_strided_slice %1050 {offsets = [0, 0], sizes = [2, 32], strides = [1, 1]} : vector<2x96xf32> to vector<2x32xf32>
    %1081 = arith.addf %1079, %1080 : vector<2x32xf32>
    %1082 = arith.negf %1081 : vector<2x32xf32>
    %1083 = math.exp %1082 : vector<2x32xf32>
    %cst_149 = arith.constant 1.000000e+00 : f32
    %1084 = vector.broadcast %cst_149 : f32 to vector<2x32xf32>
    %1085 = arith.addf %1084, %1083 : vector<2x32xf32>
    %1086 = arith.divf %1084, %1085 : vector<2x32xf32>
    %1087 = vector.extract_strided_slice %1048 {offsets = [0, 32], sizes = [2, 32], strides = [1, 1]} : vector<2x96xf32> to vector<2x32xf32>
    %1088 = vector.extract_strided_slice %1050 {offsets = [0, 32], sizes = [2, 32], strides = [1, 1]} : vector<2x96xf32> to vector<2x32xf32>
    %1089 = arith.addf %1087, %1088 : vector<2x32xf32>
    %1090 = arith.negf %1089 : vector<2x32xf32>
    %1091 = math.exp %1090 : vector<2x32xf32>
    %cst_150 = arith.constant 1.000000e+00 : f32
    %1092 = vector.broadcast %cst_150 : f32 to vector<2x32xf32>
    %1093 = arith.addf %1092, %1091 : vector<2x32xf32>
    %1094 = arith.divf %1092, %1093 : vector<2x32xf32>
    %1095 = vector.extract_strided_slice %1048 {offsets = [0, 64], sizes = [2, 32], strides = [1, 1]} : vector<2x96xf32> to vector<2x32xf32>
    %1096 = vector.extract_strided_slice %1050 {offsets = [0, 64], sizes = [2, 32], strides = [1, 1]} : vector<2x96xf32> to vector<2x32xf32>
    %1097 = arith.mulf %1086, %1096 : vector<2x32xf32>
    %1098 = arith.addf %1095, %1097 : vector<2x32xf32>
    %1099 = math.tanh %1098 : vector<2x32xf32>
    %cst_151 = arith.constant 1.000000e+00 : f32
    %1100 = vector.broadcast %cst_151 : f32 to vector<2x32xf32>
    %1101 = arith.subf %1100, %1094 : vector<2x32xf32>
    %1102 = arith.mulf %1101, %1099 : vector<2x32xf32>
    %1103 = arith.mulf %1094, %1052 : vector<2x32xf32>
    %1104 = arith.addf %1102, %1103 : vector<2x32xf32>
    %1105 = tpu.concatenate %1078, %1104 in 1 : vector<2x32xf32>, vector<2x32xf32> -> vector<2x64xf32>
    %1106 = arith.truncf %1105 : vector<2x64xf32> to vector<2x64xbf16>
    %cst_152 = arith.constant dense<0.000000e+00> : vector<2x192xf32>
    %1107 = tpu.matmul %1106, %6, %cst_152 {dimension_numbers = #tpu.dot_dimension_numbers<[1], [0], [0], [1], [0, 0, 1, 1], [], []>} : vector<2x64xbf16>, vector<64x192xbf16>, vector<2x192xf32> -> vector<2x192xf32>
    %1108 = vector.broadcast %7 : vector<1x192xf32> to vector<2x192xf32>
    %1109 = arith.addf %1107, %1108 : vector<2x192xf32>
    %1110 = vector.extract_strided_slice %129 {offsets = [15, 0, 0], sizes = [1, 2, 96], strides = [1, 1, 1]} : vector<16x2x192xf32> to vector<1x2x96xf32>
    %1111 = vector.shape_cast %1110 : vector<1x2x96xf32> to vector<2x96xf32>
    %1112 = vector.extract_strided_slice %129 {offsets = [0, 0, 96], sizes = [1, 2, 96], strides = [1, 1, 1]} : vector<16x2x192xf32> to vector<1x2x96xf32>
    %1113 = vector.shape_cast %1112 : vector<1x2x96xf32> to vector<2x96xf32>
    %1114 = vector.extract_strided_slice %1109 {offsets = [0, 0], sizes = [2, 96], strides = [1, 1]} : vector<2x192xf32> to vector<2x96xf32>
    %1115 = vector.extract_strided_slice %1109 {offsets = [0, 96], sizes = [2, 96], strides = [1, 1]} : vector<2x192xf32> to vector<2x96xf32>
    %1116 = vector.extract_strided_slice %1105 {offsets = [0, 0], sizes = [2, 32], strides = [1, 1]} : vector<2x64xf32> to vector<2x32xf32>
    %1117 = vector.extract_strided_slice %1105 {offsets = [0, 32], sizes = [2, 32], strides = [1, 1]} : vector<2x64xf32> to vector<2x32xf32>
    %1118 = vector.extract_strided_slice %1111 {offsets = [0, 0], sizes = [2, 32], strides = [1, 1]} : vector<2x96xf32> to vector<2x32xf32>
    %1119 = vector.extract_strided_slice %1114 {offsets = [0, 0], sizes = [2, 32], strides = [1, 1]} : vector<2x96xf32> to vector<2x32xf32>
    %1120 = arith.addf %1118, %1119 : vector<2x32xf32>
    %1121 = arith.negf %1120 : vector<2x32xf32>
    %1122 = math.exp %1121 : vector<2x32xf32>
    %cst_153 = arith.constant 1.000000e+00 : f32
    %1123 = vector.broadcast %cst_153 : f32 to vector<2x32xf32>
    %1124 = arith.addf %1123, %1122 : vector<2x32xf32>
    %1125 = arith.divf %1123, %1124 : vector<2x32xf32>
    %1126 = vector.extract_strided_slice %1111 {offsets = [0, 32], sizes = [2, 32], strides = [1, 1]} : vector<2x96xf32> to vector<2x32xf32>
    %1127 = vector.extract_strided_slice %1114 {offsets = [0, 32], sizes = [2, 32], strides = [1, 1]} : vector<2x96xf32> to vector<2x32xf32>
    %1128 = arith.addf %1126, %1127 : vector<2x32xf32>
    %1129 = arith.negf %1128 : vector<2x32xf32>
    %1130 = math.exp %1129 : vector<2x32xf32>
    %cst_154 = arith.constant 1.000000e+00 : f32
    %1131 = vector.broadcast %cst_154 : f32 to vector<2x32xf32>
    %1132 = arith.addf %1131, %1130 : vector<2x32xf32>
    %1133 = arith.divf %1131, %1132 : vector<2x32xf32>
    %1134 = vector.extract_strided_slice %1111 {offsets = [0, 64], sizes = [2, 32], strides = [1, 1]} : vector<2x96xf32> to vector<2x32xf32>
    %1135 = vector.extract_strided_slice %1114 {offsets = [0, 64], sizes = [2, 32], strides = [1, 1]} : vector<2x96xf32> to vector<2x32xf32>
    %1136 = arith.mulf %1125, %1135 : vector<2x32xf32>
    %1137 = arith.addf %1134, %1136 : vector<2x32xf32>
    %1138 = math.tanh %1137 : vector<2x32xf32>
    %cst_155 = arith.constant 1.000000e+00 : f32
    %1139 = vector.broadcast %cst_155 : f32 to vector<2x32xf32>
    %1140 = arith.subf %1139, %1133 : vector<2x32xf32>
    %1141 = arith.mulf %1140, %1138 : vector<2x32xf32>
    %1142 = arith.mulf %1133, %1116 : vector<2x32xf32>
    %1143 = arith.addf %1141, %1142 : vector<2x32xf32>
    %1144 = vector.extract_strided_slice %1113 {offsets = [0, 0], sizes = [2, 32], strides = [1, 1]} : vector<2x96xf32> to vector<2x32xf32>
    %1145 = vector.extract_strided_slice %1115 {offsets = [0, 0], sizes = [2, 32], strides = [1, 1]} : vector<2x96xf32> to vector<2x32xf32>
    %1146 = arith.addf %1144, %1145 : vector<2x32xf32>
    %1147 = arith.negf %1146 : vector<2x32xf32>
    %1148 = math.exp %1147 : vector<2x32xf32>
    %cst_156 = arith.constant 1.000000e+00 : f32
    %1149 = vector.broadcast %cst_156 : f32 to vector<2x32xf32>
    %1150 = arith.addf %1149, %1148 : vector<2x32xf32>
    %1151 = arith.divf %1149, %1150 : vector<2x32xf32>
    %1152 = vector.extract_strided_slice %1113 {offsets = [0, 32], sizes = [2, 32], strides = [1, 1]} : vector<2x96xf32> to vector<2x32xf32>
    %1153 = vector.extract_strided_slice %1115 {offsets = [0, 32], sizes = [2, 32], strides = [1, 1]} : vector<2x96xf32> to vector<2x32xf32>
    %1154 = arith.addf %1152, %1153 : vector<2x32xf32>
    %1155 = arith.negf %1154 : vector<2x32xf32>
    %1156 = math.exp %1155 : vector<2x32xf32>
    %cst_157 = arith.constant 1.000000e+00 : f32
    %1157 = vector.broadcast %cst_157 : f32 to vector<2x32xf32>
    %1158 = arith.addf %1157, %1156 : vector<2x32xf32>
    %1159 = arith.divf %1157, %1158 : vector<2x32xf32>
    %1160 = vector.extract_strided_slice %1113 {offsets = [0, 64], sizes = [2, 32], strides = [1, 1]} : vector<2x96xf32> to vector<2x32xf32>
    %1161 = vector.extract_strided_slice %1115 {offsets = [0, 64], sizes = [2, 32], strides = [1, 1]} : vector<2x96xf32> to vector<2x32xf32>
    %1162 = arith.mulf %1151, %1161 : vector<2x32xf32>
    %1163 = arith.addf %1160, %1162 : vector<2x32xf32>
    %1164 = math.tanh %1163 : vector<2x32xf32>
    %cst_158 = arith.constant 1.000000e+00 : f32
    %1165 = vector.broadcast %cst_158 : f32 to vector<2x32xf32>
    %1166 = arith.subf %1165, %1159 : vector<2x32xf32>
    %1167 = arith.mulf %1166, %1164 : vector<2x32xf32>
    %1168 = arith.mulf %1159, %1117 : vector<2x32xf32>
    %1169 = arith.addf %1167, %1168 : vector<2x32xf32>
    %1170 = tpu.concatenate %168, %1169 in 1 : vector<2x32xf32>, vector<2x32xf32> -> vector<2x64xf32>
    %1171 = tpu.concatenate %233, %1104 in 1 : vector<2x32xf32>, vector<2x32xf32> -> vector<2x64xf32>
    %1172 = tpu.concatenate %298, %1039 in 1 : vector<2x32xf32>, vector<2x32xf32> -> vector<2x64xf32>
    %1173 = tpu.concatenate %363, %974 in 1 : vector<2x32xf32>, vector<2x32xf32> -> vector<2x64xf32>
    %1174 = tpu.concatenate %428, %909 in 1 : vector<2x32xf32>, vector<2x32xf32> -> vector<2x64xf32>
    %1175 = tpu.concatenate %493, %844 in 1 : vector<2x32xf32>, vector<2x32xf32> -> vector<2x64xf32>
    %1176 = tpu.concatenate %558, %779 in 1 : vector<2x32xf32>, vector<2x32xf32> -> vector<2x64xf32>
    %1177 = tpu.concatenate %623, %714 in 1 : vector<2x32xf32>, vector<2x32xf32> -> vector<2x64xf32>
    %1178 = tpu.concatenate %688, %649 in 1 : vector<2x32xf32>, vector<2x32xf32> -> vector<2x64xf32>
    %1179 = tpu.concatenate %753, %584 in 1 : vector<2x32xf32>, vector<2x32xf32> -> vector<2x64xf32>
    %1180 = tpu.concatenate %818, %519 in 1 : vector<2x32xf32>, vector<2x32xf32> -> vector<2x64xf32>
    %1181 = tpu.concatenate %883, %454 in 1 : vector<2x32xf32>, vector<2x32xf32> -> vector<2x64xf32>
    %1182 = tpu.concatenate %948, %389 in 1 : vector<2x32xf32>, vector<2x32xf32> -> vector<2x64xf32>
    %1183 = tpu.concatenate %1013, %324 in 1 : vector<2x32xf32>, vector<2x32xf32> -> vector<2x64xf32>
    %1184 = tpu.concatenate %1078, %259 in 1 : vector<2x32xf32>, vector<2x32xf32> -> vector<2x64xf32>
    %1185 = tpu.concatenate %1143, %194 in 1 : vector<2x32xf32>, vector<2x32xf32> -> vector<2x64xf32>
    %1186 = vector.shape_cast %1170 : vector<2x64xf32> to vector<2x1x64xf32>
    %1187 = vector.shape_cast %1171 : vector<2x64xf32> to vector<2x1x64xf32>
    %1188 = vector.shape_cast %1172 : vector<2x64xf32> to vector<2x1x64xf32>
    %1189 = vector.shape_cast %1173 : vector<2x64xf32> to vector<2x1x64xf32>
    %1190 = vector.shape_cast %1174 : vector<2x64xf32> to vector<2x1x64xf32>
    %1191 = vector.shape_cast %1175 : vector<2x64xf32> to vector<2x1x64xf32>
    %1192 = vector.shape_cast %1176 : vector<2x64xf32> to vector<2x1x64xf32>
    %1193 = vector.shape_cast %1177 : vector<2x64xf32> to vector<2x1x64xf32>
    %1194 = vector.shape_cast %1178 : vector<2x64xf32> to vector<2x1x64xf32>
    %1195 = vector.shape_cast %1179 : vector<2x64xf32> to vector<2x1x64xf32>
    %1196 = vector.shape_cast %1180 : vector<2x64xf32> to vector<2x1x64xf32>
    %1197 = vector.shape_cast %1181 : vector<2x64xf32> to vector<2x1x64xf32>
    %1198 = vector.shape_cast %1182 : vector<2x64xf32> to vector<2x1x64xf32>
    %1199 = vector.shape_cast %1183 : vector<2x64xf32> to vector<2x1x64xf32>
    %1200 = vector.shape_cast %1184 : vector<2x64xf32> to vector<2x1x64xf32>
    %1201 = vector.shape_cast %1185 : vector<2x64xf32> to vector<2x1x64xf32>
    %1202 = tpu.concatenate %1186, %1187, %1188, %1189, %1190, %1191, %1192, %1193, %1194, %1195, %1196, %1197, %1198, %1199, %1200, %1201 in 1 : vector<2x1x64xf32>, vector<2x1x64xf32>, vector<2x1x64xf32>, vector<2x1x64xf32>, vector<2x1x64xf32>, vector<2x1x64xf32>, vector<2x1x64xf32>, vector<2x1x64xf32>, vector<2x1x64xf32>, vector<2x1x64xf32>, vector<2x1x64xf32>, vector<2x1x64xf32>, vector<2x1x64xf32>, vector<2x1x64xf32>, vector<2x1x64xf32>, vector<2x1x64xf32> -> vector<2x16x64xf32>
    %cst_159 = arith.constant 0.000000e+00 : f32
    %1203 = vector.broadcast %cst_159 : f32 to vector<2x16x64xf32>
    %1204 = arith.cmpf oge, %1202, %1203 : vector<2x16x64xf32>
    %cst_160 = arith.constant 0.00999999977 : f32
    %1205 = vector.broadcast %cst_160 : f32 to vector<2x16x64xf32>
    %1206 = arith.mulf %1205, %1202 : vector<2x16x64xf32>
    %1207 = arith.select %1204, %1202, %1206 : vector<2x16x64xi1>, vector<2x16x64xf32>
    %c0_161 = arith.constant 0 : index
    %c0_162 = arith.constant 0 : index
    %c0_163 = arith.constant 0 : index
    %1208 = vector.load %arg10[%c0_161, %c0_162, %c0_163] : memref<2x16x64xf32, #tpu.memory_space<vmem>>, vector<2x16x64xf32>
    tpu.vector_store %arg10[%c0_161, %c0_162, %c0_163], %1207 {strides = array<i32>} : memref<2x16x64xf32, #tpu.memory_space<vmem>>, vector<2x16x64xf32>,
    return
  }
  func.func @transform_0(%arg0: i32) -> (i32, i32, i32, i32) {
    %c0_i32 = arith.constant 0 : i32
    %c0_i32_0 = arith.constant 0 : i32
    %c0_i32_1 = arith.constant 0 : i32
    %c0_i32_2 = arith.constant 0 : i32
    return %arg0, %c0_i32, %c0_i32_0, %c0_i32_1 : i32, i32, i32, i32
  }
  func.func @transform_1(%arg0: i32) -> (i32, i32) {
    %c0_i32 = arith.constant 0 : i32
    %c0_i32_0 = arith.constant 0 : i32
    %c0_i32_1 = arith.constant 0 : i32
    return %c0_i32, %c0_i32_0 : i32, i32
  }
  func.func @transform_2(%arg0: i32) -> (i32, i32) {
    %c0_i32 = arith.constant 0 : i32
    %c0_i32_0 = arith.constant 0 : i32
    %c0_i32_1 = arith.constant 0 : i32
    return %c0_i32, %c0_i32_0 : i32, i32
  }
  func.func @transform_3(%arg0: i32) -> (i32, i32) {
    %c0_i32 = arith.constant 0 : i32
    %c0_i32_0 = arith.constant 0 : i32
    %c0_i32_1 = arith.constant 0 : i32
    return %c0_i32, %c0_i32_0 : i32, i32
  }
  func.func @transform_4(%arg0: i32) -> (i32, i32) {
    %c0_i32 = arith.constant 0 : i32
    %c0_i32_0 = arith.constant 0 : i32
    %c0_i32_1 = arith.constant 0 : i32
    return %c0_i32, %c0_i32_0 : i32, i32
  }
  func.func @transform_5(%arg0: i32) -> (i32, i32) {
    %c0_i32 = arith.constant 0 : i32
    %c0_i32_0 = arith.constant 0 : i32
    %c0_i32_1 = arith.constant 0 : i32
    return %c0_i32, %c0_i32_0 : i32, i32
  }
  func.func @transform_6(%arg0: i32) -> (i32, i32) {
    %c0_i32 = arith.constant 0 : i32
    %c0_i32_0 = arith.constant 0 : i32
    %c0_i32_1 = arith.constant 0 : i32
    return %c0_i32, %c0_i32_0 : i32, i32
  }
  func.func @transform_7(%arg0: i32) -> (i32, i32) {
    %c0_i32 = arith.constant 0 : i32
    %c0_i32_0 = arith.constant 0 : i32
    %c0_i32_1 = arith.constant 0 : i32
    return %c0_i32, %c0_i32_0 : i32, i32
  }
  func.func @transform_8(%arg0: i32) -> (i32, i32) {
    %c0_i32 = arith.constant 0 : i32
    %c0_i32_0 = arith.constant 0 : i32
    %c0_i32_1 = arith.constant 0 : i32
    return %c0_i32, %c0_i32_0 : i32, i32
  }
  func.func @transform_9(%arg0: i32) -> (i32, i32, i32) {
    %c0_i32 = arith.constant 0 : i32
    %c0_i32_0 = arith.constant 0 : i32
    %c0_i32_1 = arith.constant 0 : i32
    return %arg0, %c0_i32, %c0_i32_0 : i32, i32, i32
  }
}

</mosaic_0001>

<llo_original>
// kernel: protein_cnn_forward.1
$region0: #{protein_cnn_forward.1}
  #allocation0 [shape = 'u32[]', space=smem, size = 0x4, offset = 0x4, fixed_abs, tag = 'smem constant byte address 0x4 - core index']
  #allocation1 [shape = 'u32[144,128]{1,0:T(1,128)}', space=vmem, size = 0x12000, scoped, tag = 'internal scratch']
  %s0 = inlined_call_operand.vmem [shape: bf16[2,4,12,250], index: 0, kind: input, shape index: {}]
  %s1 = inlined_call_operand.vmem [shape: bf16[8,12], index: 1, kind: input, shape index: {}]
  %s2 = inlined_call_operand.vmem [shape: f32[8,1], index: 2, kind: input, shape index: {}]
  %s3 = inlined_call_operand.vmem [shape: bf16[16,48], index: 3, kind: input, shape index: {}]
  %s4 = inlined_call_operand.vmem [shape: f32[16,1], index: 4, kind: input, shape index: {}]
  %s5 = inlined_call_operand.vmem [shape: bf16[247,192], index: 5, kind: input, shape index: {}]
  %s6 = inlined_call_operand.vmem [shape: f32[1,192], index: 6, kind: input, shape index: {}]
  %s7 = inlined_call_operand.vmem [shape: bf16[64,192], index: 7, kind: input, shape index: {}]
  %s8 = inlined_call_operand.vmem [shape: f32[1,192], index: 8, kind: input, shape index: {}]
  %s9 = inlined_call_operand.hbm [shape: f32[2,16,64], index: 9, kind: output, shape index: {}]
  %s10 = sld [smem:[#allocation0]]
  $region46: #{protein_cnn_forward.1} parent=0
    _
  %s12 = ssub.s32 1, %s10
  %s13 = scalar_select 0, %s12, %s10
  $region1: #{protein_cnn_forward.1} parent=0
    #allocation2 [shape = 'u8[16384]{0}', space=vmem, size = 0x4000, scoped, tag = 'output window, operand 0, single buffered']
    #allocation3 [shape = 's32[1]{0}', space=sflag, size = 0x4, scoped, tag = 'scoped memory for protein_cnn_forward.1']
    %14 = vsyncpa [#allocation3], 0
    // Predicated region
    $region2: #{protein_cnn_forward.1} parent=1 // pred_check
      _
    $region3: #{protein_cnn_forward.1} parent=1 // pred_check_branch
      %16 = sbr.rel (0) target = $region5
    $region4: #{protein_cnn_forward.1} parent=1 // pred_region
      _
    $region5: #{protein_cnn_forward.1} parent=1 // pred_fallthru
      _
    // Predicated region
    $region6: #{protein_cnn_forward.1} parent=1 // pred_check
      _
    $region7: #{protein_cnn_forward.1} parent=1 // pred_check_branch
      %18 = sbr.rel (0) target = $region9
    $region8: #{protein_cnn_forward.1} parent=1 // pred_region
      _
    $region9: #{protein_cnn_forward.1} parent=1 // pred_fallthru
      _
    // Predicated region
    $region10: #{protein_cnn_forward.1} parent=1 // pred_check
      _
    $region11: #{protein_cnn_forward.1} parent=1 // pred_check_branch
      %20 = sbr.rel (0) target = $region13
    $region12: #{protein_cnn_forward.1} parent=1 // pred_region
      _
    $region13: #{protein_cnn_forward.1} parent=1 // pred_fallthru
      _
    // Predicated region
    $region14: #{protein_cnn_forward.1} parent=1 // pred_check
      _
    $region15: #{protein_cnn_forward.1} parent=1 // pred_check_branch
      %22 = sbr.rel (0) target = $region17
    $region16: #{protein_cnn_forward.1} parent=1 // pred_region
      _
    $region17: #{protein_cnn_forward.1} parent=1 // pred_fallthru
      _
    // Predicated region
    $region18: #{protein_cnn_forward.1} parent=1 // pred_check
      _
    $region19: #{protein_cnn_forward.1} parent=1 // pred_check_branch
      %24 = sbr.rel (0) target = $region21
    $region20: #{protein_cnn_forward.1} parent=1 // pred_region
      _
    $region21: #{protein_cnn_forward.1} parent=1 // pred_fallthru
      _
    // Predicated region
    $region22: #{protein_cnn_forward.1} parent=1 // pred_check
      _
    $region23: #{protein_cnn_forward.1} parent=1 // pred_check_branch
      %26 = sbr.rel (0) target = $region25
    $region24: #{protein_cnn_forward.1} parent=1 // pred_region
      _
    $region25: #{protein_cnn_forward.1} parent=1 // pred_fallthru
      _
    // Predicated region
    $region26: #{protein_cnn_forward.1} parent=1 // pred_check
      _
    $region27: #{protein_cnn_forward.1} parent=1 // pred_check_branch
      %28 = sbr.rel (0) target = $region29
    $region28: #{protein_cnn_forward.1} parent=1 // pred_region
      _
    $region29: #{protein_cnn_forward.1} parent=1 // pred_fallthru
      _
    // Predicated region
    $region30: #{protein_cnn_forward.1} parent=1 // pred_check
      _
    $region31: #{protein_cnn_forward.1} parent=1 // pred_check_branch
      %30 = sbr.rel (0) target = $region33
    $region32: #{protein_cnn_forward.1} parent=1 // pred_region
      _
    $region33: #{protein_cnn_forward.1} parent=1 // pred_fallthru
      _
    // Predicated region
    $region34: #{protein_cnn_forward.1} parent=1 // pred_check
      _
    $region35: #{protein_cnn_forward.1} parent=1 // pred_check_branch
      %32 = sbr.rel (0) target = $region37
    $region36: #{protein_cnn_forward.1} parent=1 // pred_region
      _
    $region37: #{protein_cnn_forward.1} parent=1 // pred_fallthru
      _
    %v34 = vld [vmem:[%s1] sm:$0xf]
    %v35 = vld [vmem:[%s3] sm:$0xf]
    %v36 = vld [vmem:[%s3 + $0x4] sm:$0xf]
    %v37 = vld [vmem:[%s2] sm:$0xff]
    %v38 = vld [vmem:[%s4] sm:$0xff]
    %v39 = vld [vmem:[%s4 + $0x8] sm:$0xff]
    %v40 = vld [vmem:[%s5] sm:$0xff]
    %v41 = vld [vmem:[%s5 + $0x8] sm:$0xff]
    %v42 = vld [vmem:[%s5 + $0x10] sm:$0xff]
    %v43 = vld [vmem:[%s5 + $0x18] sm:$0xff]
    %v44 = vld [vmem:[%s5 + $0x20] sm:$0xff]
    %v45 = vld [vmem:[%s5 + $0x28] sm:$0xff]
    %v46 = vld [vmem:[%s5 + $0x30] sm:$0xff]
    %v47 = vld [vmem:[%s5 + $0x38] sm:$0xff]
    %v48 = vld [vmem:[%s5 + $0x40] sm:$0xff]
    %v49 = vld [vmem:[%s5 + $0x48] sm:$0xff]
    %v50 = vld [vmem:[%s5 + $0x50] sm:$0xff]
    %v51 = vld [vmem:[%s5 + $0x58] sm:$0xff]
    %v52 = vld [vmem:[%s5 + $0x60] sm:$0xff]
    %v53 = vld [vmem:[%s5 + $0x68] sm:$0xff]
    %v54 = vld [vmem:[%s5 + $0x70] sm:$0xff]
    %v55 = vld [vmem:[%s5 + $0x78] sm:$0xff]
    %v56 = vld [vmem:[%s5 + $0x80] sm:$0xff]
    %v57 = vld [vmem:[%s5 + $0x88] sm:$0xff]
    %v58 = vld [vmem:[%s5 + $0x90] sm:$0xff]
    %v59 = vld [vmem:[%s5 + $0x98] sm:$0xff]
    %v60 = vld [vmem:[%s5 + $0xa0] sm:$0xff]
    %v61 = vld [vmem:[%s5 + $0xa8] sm:$0xff]
    %v62 = vld [vmem:[%s5 + $0xb0] sm:$0xff]
    %v63 = vld [vmem:[%s5 + $0xb8] sm:$0xff]
    %v64 = vld [vmem:[%s5 + $0xc0] sm:$0xff]
    %v65 = vld [vmem:[%s5 + $0xc8] sm:$0xff]
    %v66 = vld [vmem:[%s5 + $0xd0] sm:$0xff]
    %v67 = vld [vmem:[%s5 + $0xd8] sm:$0xff]
    %v68 = vld [vmem:[%s5 + $0xe0] sm:$0xff]
    %v69 = vld [vmem:[%s5 + $0xe8] sm:$0xff]
    %v70 = vld [vmem:[%s5 + $0xf0] sm:$0xff]
    %v71 = vld [vmem:[%s6] sm:$0x3]
    %v72 = vld [vmem:[%s7] sm:$0xff]
    %v73 = vld [vmem:[%s7 + $0x8] sm:$0xff]
    %v74 = vld [vmem:[%s7 + $0x10] sm:$0xff]
    %v75 = vld [vmem:[%s7 + $0x18] sm:$0xff]
    %v76 = vld [vmem:[%s7 + $0x20] sm:$0xff]
    %v77 = vld [vmem:[%s7 + $0x28] sm:$0xff]
    %v78 = vld [vmem:[%s7 + $0x30] sm:$0xff]
    %v79 = vld [vmem:[%s7 + $0x38] sm:$0xff]
    %v80 = vld [vmem:[%s8] sm:$0x3]
    %v81 = vld [vmem:[%s0] sm:$0xff]
    %v82 = vld [vmem:[%s0 + $0x8] sm:$0x33]
    %v83 = vld [vmem:[%s0 + $0x10] sm:$0xff]
    %v84 = vld [vmem:[%s0 + $0x18] sm:$0x33]
    %v85 = vld [vmem:[%s0 + $0x20] sm:$0xff]
    %v86 = vld [vmem:[%s0 + $0x28] sm:$0x33]
    %v87 = vld [vmem:[%s0 + $0x30] sm:$0xff]
    %v88 = vld [vmem:[%s0 + $0x38] sm:$0x33]
    %v91 = vunpack.c.l.b16 %v81
    %v92 = vunpack.c.h.b16 %v81
    %v93 = vunpack.c.l.b16 %v82
    %v94 = vunpack.c.h.b16 %v82
    %v95 = vpack.c.b16 %v93, %v91
    %v96 = vpack.c.b16 %v94, %v92
    %vm97 = vcmask 97280
    %v99 = vsel %vm97, %v34, 0
    %vm101 = vcmask 1045504
    %v103 = vsel %vm101, %v95, 0
    %v106 = vsel %vm101, %v96, 0
    %108 = vmatprep.subr.bf16.mxu0 0
    %109 = vmatpush1.bf16.msra.mxu0 0
    %110 = vmatprep.subr.bf16.mxu0 0
    %111 = vmatpush1.bf16.msra.mxu0 0
    %112 = vmatprep.subr.bf16.mxu0 0
    %113 = vmatpush1.bf16.msra.mxu0 0
    %114 = vmatprep.subr.bf16.mxu0 0
    %115 = vmatpush1.bf16.msra.mxu0 0
    %116 = vmatprep.subr.bf16.mxu0 0
    %117 = vmatpush1.bf16.msra.mxu0 0
    %118 = vmatprep.subr.bf16.mxu0 0
    %119 = vmatpush1.bf16.msra.mxu0 0
    %120 = vmatprep.subr.bf16.mxu0 0
    %121 = vmatpush1.bf16.msra.mxu0 0
    %122 = vmatprep.subr.bf16.mxu0 %v106
    %123 = vmatpush1.bf16.msra.mxu0 %v103
    %124 = vmatprep.subr.bf16.mxu0 0
    %125 = vmatpush2.bf16.msra.mxu0 0
    %126 = vmatprep.subr.bf16.mxu0 0
    %127 = vmatpush2.bf16.msra.mxu0 0
    %128 = vmatprep.subr.bf16.mxu0 0
    %129 = vmatpush2.bf16.msra.mxu0 0
    %130 = vmatprep.subr.bf16.mxu0 0
    %131 = vmatpush2.bf16.msra.mxu0 0
    %132 = vmatprep.subr.bf16.mxu0 0
    %133 = vmatpush2.bf16.msra.mxu0 0
    %134 = vmatprep.subr.bf16.mxu0 0
    %135 = vmatpush2.bf16.msra.mxu0 0
    %136 = vmatprep.subr.bf16.mxu0 0
    %137 = vmatpush2.bf16.msra.mxu0 0
    %138 = vmatprep.subr.bf16.mxu0 0
    %139 = vmatpush2.bf16.msra.mxu0 0
    %140 = vmatprep.mubr.bf16.mxu0 0
    %141 = vmatmul.mubr.bf16.gmra.mxu0 %v99
    %v142 = vpop.f32.mrf.mxu0
    %v143 = vadd.f32 0.0, %v142
    %v144 = vpop.f32.mrf.mxu0
    %v145 = vadd.f32 0.0, %v144
    %v146 = vpop.f32.mrf.mxu0
    %v147 = vpop.f32.mrf.mxu0
    %148 = vdwg.mxu0
    %v151 = vunpack.c.l.b16 %v83
    %v152 = vunpack.c.h.b16 %v83
    %v153 = vunpack.c.l.b16 %v84
    %v154 = vunpack.c.h.b16 %v84
    %v155 = vpack.c.b16 %v153, %v151
    %v156 = vpack.c.b16 %v154, %v152
    %v158 = vsel %vm101, %v155, 0
    %v161 = vsel %vm101, %v156, 0
    %163 = vmatprep.subr.bf16.mxu0 0
    %164 = vmatpush1.bf16.msra.mxu0 0
    %165 = vmatprep.subr.bf16.mxu0 0
    %166 = vmatpush1.bf16.msra.mxu0 0
    %167 = vmatprep.subr.bf16.mxu0 0
    %168 = vmatpush1.bf16.msra.mxu0 0
    %169 = vmatprep.subr.bf16.mxu0 0
    %170 = vmatpush1.bf16.msra.mxu0 0
    %171 = vmatprep.subr.bf16.mxu0 0
    %172 = vmatpush1.bf16.msra.mxu0 0
    %173 = vmatprep.subr.bf16.mxu0 0
    %174 = vmatpush1.bf16.msra.mxu0 0
    %175 = vmatprep.subr.bf16.mxu0 0
    %176 = vmatpush1.bf16.msra.mxu0 0
    %177 = vmatprep.subr.bf16.mxu0 %v161
    %178 = vmatpush1.bf16.msra.mxu0 %v158
    %179 = vmatprep.subr.bf16.mxu0 0
    %180 = vmatpush2.bf16.msra.mxu0 0
    %181 = vmatprep.subr.bf16.mxu0 0
    %182 = vmatpush2.bf16.msra.mxu0 0
    %183 = vmatprep.subr.bf16.mxu0 0
    %184 = vmatpush2.bf16.msra.mxu0 0
    %185 = vmatprep.subr.bf16.mxu0 0
    %186 = vmatpush2.bf16.msra.mxu0 0
    %187 = vmatprep.subr.bf16.mxu0 0
    %188 = vmatpush2.bf16.msra.mxu0 0
    %189 = vmatprep.subr.bf16.mxu0 0
    %190 = vmatpush2.bf16.msra.mxu0 0
    %191 = vmatprep.subr.bf16.mxu0 0
    %192 = vmatpush2.bf16.msra.mxu0 0
    %193 = vmatprep.subr.bf16.mxu0 0
    %194 = vmatpush2.bf16.msra.mxu0 0
    %195 = vmatprep.mubr.bf16.mxu0 0
    %196 = vmatmul.mubr.bf16.gmra.mxu0 %v99
    %v197 = vpop.f32.mrf.mxu0
    %v198 = vadd.f32 0.0, %v197
    %v199 = vpop.f32.mrf.mxu0
    %v200 = vadd.f32 0.0, %v199
    %v201 = vpop.f32.mrf.mxu0
    %v202 = vpop.f32.mrf.mxu0
    %203 = vdwg.mxu0
    %v204 = vmax.f32 %v143, %v198
    %v205 = vmax.f32 %v145, %v200
    %207 = vset.pattern.permute.xlu0 0
    %208 = vperm.xlu0 %207, %v37
    %v209 = vpop.permute.xlu0 %208
    %v211 = vadd.f32 %v204, %v209
    %v212 = vadd.f32 %v205, %v209
    %vm213 = vcmp.ge.f32.partialorder %v211, 0.0
    %vm214 = vcmp.ge.f32.partialorder %v212, 0.0
    %v215 = vmul.f32 %v211, 0.01
    %v216 = vmul.f32 %v212, 0.01
    %v217 = vsel %vm213, %v211, %v215
    %v218 = vsel %vm214, %v212, %v216
    %v221 = vunpack.c.l.b16 %v85
    %v222 = vunpack.c.h.b16 %v85
    %v223 = vunpack.c.l.b16 %v86
    %v224 = vunpack.c.h.b16 %v86
    %v225 = vpack.c.b16 %v223, %v221
    %v226 = vpack.c.b16 %v224, %v222
    %v228 = vsel %vm101, %v225, 0
    %v231 = vsel %vm101, %v226, 0
    %233 = vmatprep.subr.bf16.mxu0 0
    %234 = vmatpush1.bf16.msra.mxu0 0
    %235 = vmatprep.subr.bf16.mxu0 0
    %236 = vmatpush1.bf16.msra.mxu0 0
    %237 = vmatprep.subr.bf16.mxu0 0
    %238 = vmatpush1.bf16.msra.mxu0 0
    %239 = vmatprep.subr.bf16.mxu0 0
    %240 = vmatpush1.bf16.msra.mxu0 0
    %241 = vmatprep.subr.bf16.mxu0 0
    %242 = vmatpush1.bf16.msra.mxu0 0
    %243 = vmatprep.subr.bf16.mxu0 0
    %244 = vmatpush1.bf16.msra.mxu0 0
    %245 = vmatprep.subr.bf16.mxu0 0
    %246 = vmatpush1.bf16.msra.mxu0 0
    %247 = vmatprep.subr.bf16.mxu0 %v231
    %248 = vmatpush1.bf16.msra.mxu0 %v228
    %249 = vmatprep.subr.bf16.mxu0 0
    %250 = vmatpush2.bf16.msra.mxu0 0
    %251 = vmatprep.subr.bf16.mxu0 0
    %252 = vmatpush2.bf16.msra.mxu0 0
    %253 = vmatprep.subr.bf16.mxu0 0
    %254 = vmatpush2.bf16.msra.mxu0 0
    %255 = vmatprep.subr.bf16.mxu0 0
    %256 = vmatpush2.bf16.msra.mxu0 0
    %257 = vmatprep.subr.bf16.mxu0 0
    %258 = vmatpush2.bf16.msra.mxu0 0
    %259 = vmatprep.subr.bf16.mxu0 0
    %260 = vmatpush2.bf16.msra.mxu0 0
    %261 = vmatprep.subr.bf16.mxu0 0
    %262 = vmatpush2.bf16.msra.mxu0 0
    %263 = vmatprep.subr.bf16.mxu0 0
    %264 = vmatpush2.bf16.msra.mxu0 0
    %265 = vmatprep.mubr.bf16.mxu0 0
    %266 = vmatmul.mubr.bf16.gmra.mxu0 %v99
    %v267 = vpop.f32.mrf.mxu0
    %v268 = vadd.f32 0.0, %v267
    %v269 = vpop.f32.mrf.mxu0
    %v270 = vadd.f32 0.0, %v269
    %v271 = vpop.f32.mrf.mxu0
    %v272 = vpop.f32.mrf.mxu0
    %273 = vdwg.mxu0
    %v276 = vunpack.c.l.b16 %v87
    %v277 = vunpack.c.h.b16 %v87
    %v278 = vunpack.c.l.b16 %v88
    %v279 = vunpack.c.h.b16 %v88
    %v280 = vpack.c.b16 %v278, %v276
    %v281 = vpack.c.b16 %v279, %v277
    %v283 = vsel %vm101, %v280, 0
    %v286 = vsel %vm101, %v281, 0
    %288 = vmatprep.subr.bf16.mxu0 0
    %289 = vmatpush1.bf16.msra.mxu0 0
    %290 = vmatprep.subr.bf16.mxu0 0
    %291 = vmatpush1.bf16.msra.mxu0 0
    %292 = vmatprep.subr.bf16.mxu0 0
    %293 = vmatpush1.bf16.msra.mxu0 0
    %294 = vmatprep.subr.bf16.mxu0 0
    %295 = vmatpush1.bf16.msra.mxu0 0
    %296 = vmatprep.subr.bf16.mxu0 0
    %297 = vmatpush1.bf16.msra.mxu0 0
    %298 = vmatprep.subr.bf16.mxu0 0
    %299 = vmatpush1.bf16.msra.mxu0 0
    %300 = vmatprep.subr.bf16.mxu0 0
    %301 = vmatpush1.bf16.msra.mxu0 0
    %302 = vmatprep.subr.bf16.mxu0 %v286
    %303 = vmatpush1.bf16.msra.mxu0 %v283
    %304 = vmatprep.subr.bf16.mxu0 0
    %305 = vmatpush2.bf16.msra.mxu0 0
    %306 = vmatprep.subr.bf16.mxu0 0
    %307 = vmatpush2.bf16.msra.mxu0 0
    %308 = vmatprep.subr.bf16.mxu0 0
    %309 = vmatpush2.bf16.msra.mxu0 0
    %310 = vmatprep.subr.bf16.mxu0 0
    %311 = vmatpush2.bf16.msra.mxu0 0
    %312 = vmatprep.subr.bf16.mxu0 0
    %313 = vmatpush2.bf16.msra.mxu0 0
    %314 = vmatprep.subr.bf16.mxu0 0
    %315 = vmatpush2.bf16.msra.mxu0 0
    %316 = vmatprep.subr.bf16.mxu0 0
    %317 = vmatpush2.bf16.msra.mxu0 0
    %318 = vmatprep.subr.bf16.mxu0 0
    %319 = vmatpush2.bf16.msra.mxu0 0
    %320 = vmatprep.mubr.bf16.mxu0 0
    %321 = vmatmul.mubr.bf16.gmra.mxu0 %v99
    %v322 = vpop.f32.mrf.mxu0
    %v323 = vadd.f32 0.0, %v322
    %v324 = vpop.f32.mrf.mxu0
    %v325 = vadd.f32 0.0, %v324
    %v326 = vpop.f32.mrf.mxu0
    %v327 = vpop.f32.mrf.mxu0
    %328 = vdwg.mxu0
    %v329 = vmax.f32 %v268, %v323
    %v330 = vmax.f32 %v270, %v325
    %v331 = vadd.f32 %v329, %v209
    %v332 = vadd.f32 %v330, %v209
    %vm333 = vcmp.ge.f32.partialorder %v331, 0.0
    %vm334 = vcmp.ge.f32.partialorder %v332, 0.0
    %v335 = vmul.f32 %v331, 0.01
    %v336 = vmul.f32 %v332, 0.01
    %v337 = vsel %vm333, %v331, %v335
    %v338 = vsel %vm334, %v332, %v336
    %341 = vrot.lane.b32.xlu0 %v217, 127
    %v342 = vpop.permute.xlu0 %341
    %343 = vrot.lane.b32.xlu0 %v218, 127
    %v344 = vpop.permute.xlu0 %343
    %vm345 = vcmask 1039360
    %v346 = vsel %vm345, %v342, %v344
    %351 = vrot.lane.b32.xlu0 %v337, 127
    %v352 = vpop.permute.xlu0 %351
    %353 = vrot.lane.b32.xlu0 %v338, 127
    %v354 = vpop.permute.xlu0 %353
    %v355 = vsel %vm345, %v352, %v354
    %358 = vrot.lane.b32.xlu0 %v217, 126
    %v359 = vpop.permute.xlu0 %358
    %360 = vrot.lane.b32.xlu0 %v218, 126
    %v361 = vpop.permute.xlu0 %360
    %vm362 = vcmask 1031168
    %v363 = vsel %vm362, %v359, %v361
    %366 = vrot.lane.b32.xlu0 %v337, 126
    %v367 = vpop.permute.xlu0 %366
    %368 = vrot.lane.b32.xlu0 %v338, 126
    %v369 = vpop.permute.xlu0 %368
    %v370 = vsel %vm362, %v367, %v369
    %373 = vrot.lane.b32.xlu0 %v217, 125
    %v374 = vpop.permute.xlu0 %373
    %375 = vrot.lane.b32.xlu0 %v218, 125
    %v376 = vpop.permute.xlu0 %375
    %vm377 = vcmask 1022976
    %v378 = vsel %vm377, %v374, %v376
    %v381 = vpack.c.bf16 %v337, %v217
    %v382 = vpack.c.bf16 %v338, %v218
    %v383 = vpack.c.bf16 %v355, %v346
    %v384 = vpack.c.bf16 %v354, %v344
    %v385 = vpack.c.bf16 %v370, %v363
    %v386 = vpack.c.bf16 %v369, %v361
    %v389 = vunpack.c.l.b16 %v35
    %v390 = vunpack.c.l.b16 %v36
    %v391 = vpack.c.b16 %v390, %v389
    %vm392 = vcmask 392192
    %v394 = vsel %vm392, %v391, 0
    %396 = vmatprep.subr.bf16.mxu0 0
    %397 = vmatpush1.bf16.msra.mxu0 0
    %398 = vmatprep.subr.bf16.mxu0 0
    %399 = vmatpush1.bf16.msra.mxu0 0
    %400 = vmatprep.subr.bf16.mxu0 0
    %401 = vmatpush1.bf16.msra.mxu0 0
    %402 = vmatprep.subr.bf16.mxu0 0
    %403 = vmatpush1.bf16.msra.mxu0 0
    %404 = vmatprep.subr.bf16.mxu0 0
    %405 = vmatpush1.bf16.msra.mxu0 0
    %406 = vmatprep.subr.bf16.mxu0 %v386
    %407 = vmatpush1.bf16.msra.mxu0 %v385
    %408 = vmatprep.subr.bf16.mxu0 %v384
    %409 = vmatpush1.bf16.msra.mxu0 %v383
    %410 = vmatprep.subr.bf16.mxu0 %v382
    %411 = vmatpush1.bf16.msra.mxu0 %v381
    %412 = vmatprep.subr.bf16.mxu0 0
    %413 = vmatpush2.bf16.msra.mxu0 0
    %414 = vmatprep.subr.bf16.mxu0 0
    %415 = vmatpush2.bf16.msra.mxu0 0
    %416 = vmatprep.subr.bf16.mxu0 0
    %417 = vmatpush2.bf16.msra.mxu0 0
    %418 = vmatprep.subr.bf16.mxu0 0
    %419 = vmatpush2.bf16.msra.mxu0 0
    %420 = vmatprep.subr.bf16.mxu0 0
    %421 = vmatpush2.bf16.msra.mxu0 0
    %422 = vmatprep.subr.bf16.mxu0 0
    %423 = vmatpush2.bf16.msra.mxu0 0
    %424 = vmatprep.subr.bf16.mxu0 0
    %425 = vmatpush2.bf16.msra.mxu0 0
    %426 = vmatprep.subr.bf16.mxu0 0
    %427 = vmatpush2.bf16.msra.mxu0 0
    %428 = vmatprep.mubr.bf16.mxu0 0
    %429 = vmatmul.mubr.bf16.gmra.mxu0 %v394
    %v430 = vpop.f32.mrf.mxu0
    %v431 = vadd.f32 0.0, %v430
    %v432 = vpop.f32.mrf.mxu0
    %v433 = vadd.f32 0.0, %v432
    %v434 = vpop.f32.mrf.mxu0
    %v435 = vadd.f32 0.0, %v434
    %v436 = vpop.f32.mrf.mxu0
    %v437 = vadd.f32 0.0, %v436
    %438 = vdwg.mxu0
    %v439 = vpack.c.bf16 %v346, %v337
    %v440 = vpack.c.bf16 %v344, %v338
    %v441 = vpack.c.bf16 %v363, %v355
    %v442 = vpack.c.bf16 %v361, %v354
    %v443 = vpack.c.bf16 %v378, %v370
    %v444 = vpack.c.bf16 %v376, %v369
    %445 = vmatprep.subr.bf16.mxu0 0
    %446 = vmatpush1.bf16.msra.mxu0 0
    %447 = vmatprep.subr.bf16.mxu0 0
    %448 = vmatpush1.bf16.msra.mxu0 0
    %449 = vmatprep.subr.bf16.mxu0 0
    %450 = vmatpush1.bf16.msra.mxu0 0
    %451 = vmatprep.subr.bf16.mxu0 0
    %452 = vmatpush1.bf16.msra.mxu0 0
    %453 = vmatprep.subr.bf16.mxu0 0
    %454 = vmatpush1.bf16.msra.mxu0 0
    %455 = vmatprep.subr.bf16.mxu0 %v444
    %456 = vmatpush1.bf16.msra.mxu0 %v443
    %457 = vmatprep.subr.bf16.mxu0 %v442
    %458 = vmatpush1.bf16.msra.mxu0 %v441
    %459 = vmatprep.subr.bf16.mxu0 %v440
    %460 = vmatpush1.bf16.msra.mxu0 %v439
    %461 = vmatprep.subr.bf16.mxu0 0
    %462 = vmatpush2.bf16.msra.mxu0 0
    %463 = vmatprep.subr.bf16.mxu0 0
    %464 = vmatpush2.bf16.msra.mxu0 0
    %465 = vmatprep.subr.bf16.mxu0 0
    %466 = vmatpush2.bf16.msra.mxu0 0
    %467 = vmatprep.subr.bf16.mxu0 0
    %468 = vmatpush2.bf16.msra.mxu0 0
    %469 = vmatprep.subr.bf16.mxu0 0
    %470 = vmatpush2.bf16.msra.mxu0 0
    %471 = vmatprep.subr.bf16.mxu0 0
    %472 = vmatpush2.bf16.msra.mxu0 0
    %473 = vmatprep.subr.bf16.mxu0 0
    %474 = vmatpush2.bf16.msra.mxu0 0
    %475 = vmatprep.subr.bf16.mxu0 0
    %476 = vmatpush2.bf16.msra.mxu0 0
    %477 = vmatprep.mubr.bf16.mxu0 0
    %478 = vmatmul.mubr.bf16.gmra.mxu0 %v394
    %v479 = vpop.f32.mrf.mxu0
    %v480 = vadd.f32 0.0, %v479
    %v481 = vpop.f32.mrf.mxu0
    %v482 = vadd.f32 0.0, %v481
    %v483 = vpop.f32.mrf.mxu0
    %v484 = vadd.f32 0.0, %v483
    %v485 = vpop.f32.mrf.mxu0
    %v486 = vadd.f32 0.0, %v485
    %487 = vdwg.mxu0
    %v488 = vmax.f32 %v431, %v480
    %v489 = vmax.f32 %v433, %v482
    %v490 = vmax.f32 %v435, %v484
    %v491 = vmax.f32 %v437, %v486
    %493 = vset.pattern.permute.xlu0 0
    %494 = vperm.xlu0 %493, %v38
    %v495 = vpop.permute.xlu0 %494
    %498 = vset.pattern.permute.xlu0 0
    %499 = vperm.xlu0 %498, %v39
    %v500 = vpop.permute.xlu0 %499
    %v502 = vadd.f32 %v488, %v495
    %v503 = vadd.f32 %v489, %v495
    %v504 = vadd.f32 %v490, %v500
    %v505 = vadd.f32 %v491, %v500
    %vm506 = vcmp.ge.f32.partialorder %v502, 0.0
    %vm507 = vcmp.ge.f32.partialorder %v503, 0.0
    %vm508 = vcmp.ge.f32.partialorder %v504, 0.0
    %vm509 = vcmp.ge.f32.partialorder %v505, 0.0
    %v510 = vmul.f32 %v502, 0.01
    %v511 = vmul.f32 %v503, 0.01
    %v512 = vmul.f32 %v504, 0.01
    %v513 = vmul.f32 %v505, 0.01
    %v514 = vsel %vm506, %v502, %v510
    %v515 = vsel %vm507, %v503, %v511
    %v516 = vsel %vm508, %v504, %v512
    %v517 = vsel %vm509, %v505, %v513
    %s518 = scalar_lea.vmem %s0, 64
    %v519 = vld [vmem:[%s518] sm:$0xff]
    %v520 = vld [vmem:[%s518 + $0x8] sm:$0x33]
    %v521 = vld [vmem:[%s518 + $0x10] sm:$0xff]
    %v522 = vld [vmem:[%s518 + $0x18] sm:$0x33]
    %v523 = vld [vmem:[%s518 + $0x20] sm:$0xff]
    %v524 = vld [vmem:[%s518 + $0x28] sm:$0x33]
    %v525 = vld [vmem:[%s518 + $0x30] sm:$0xff]
    %v526 = vld [vmem:[%s518 + $0x38] sm:$0x33]
    %v529 = vunpack.c.l.b16 %v519
    %v530 = vunpack.c.h.b16 %v519
    %v531 = vunpack.c.l.b16 %v520
    %v532 = vunpack.c.h.b16 %v520
    %v533 = vpack.c.b16 %v531, %v529
    %v534 = vpack.c.b16 %v532, %v530
    %v536 = vsel %vm101, %v533, 0
    %v539 = vsel %vm101, %v534, 0
    %541 = vmatprep.subr.bf16.mxu0 0
    %542 = vmatpush1.bf16.msra.mxu0 0
    %543 = vmatprep.subr.bf16.mxu0 0
    %544 = vmatpush1.bf16.msra.mxu0 0
    %545 = vmatprep.subr.bf16.mxu0 0
    %546 = vmatpush1.bf16.msra.mxu0 0
    %547 = vmatprep.subr.bf16.mxu0 0
    %548 = vmatpush1.bf16.msra.mxu0 0
    %549 = vmatprep.subr.bf16.mxu0 0
    %550 = vmatpush1.bf16.msra.mxu0 0
    %551 = vmatprep.subr.bf16.mxu0 0
    %552 = vmatpush1.bf16.msra.mxu0 0
    %553 = vmatprep.subr.bf16.mxu0 0
    %554 = vmatpush1.bf16.msra.mxu0 0
    %555 = vmatprep.subr.bf16.mxu0 %v539
    %556 = vmatpush1.bf16.msra.mxu0 %v536
    %557 = vmatprep.subr.bf16.mxu0 0
    %558 = vmatpush2.bf16.msra.mxu0 0
    %559 = vmatprep.subr.bf16.mxu0 0
    %560 = vmatpush2.bf16.msra.mxu0 0
    %561 = vmatprep.subr.bf16.mxu0 0
    %562 = vmatpush2.bf16.msra.mxu0 0
    %563 = vmatprep.subr.bf16.mxu0 0
    %564 = vmatpush2.bf16.msra.mxu0 0
    %565 = vmatprep.subr.bf16.mxu0 0
    %566 = vmatpush2.bf16.msra.mxu0 0
    %567 = vmatprep.subr.bf16.mxu0 0
    %568 = vmatpush2.bf16.msra.mxu0 0
    %569 = vmatprep.subr.bf16.mxu0 0
    %570 = vmatpush2.bf16.msra.mxu0 0
    %571 = vmatprep.subr.bf16.mxu0 0
    %572 = vmatpush2.bf16.msra.mxu0 0
    %573 = vmatprep.mubr.bf16.mxu0 0
    %574 = vmatmul.mubr.bf16.gmra.mxu0 %v99
    %v575 = vpop.f32.mrf.mxu0
    %v576 = vadd.f32 0.0, %v575
    %v577 = vpop.f32.mrf.mxu0
    %v578 = vadd.f32 0.0, %v577
    %v579 = vpop.f32.mrf.mxu0
    %v580 = vpop.f32.mrf.mxu0
    %581 = vdwg.mxu0
    %v584 = vunpack.c.l.b16 %v521
    %v585 = vunpack.c.h.b16 %v521
    %v586 = vunpack.c.l.b16 %v522
    %v587 = vunpack.c.h.b16 %v522
    %v588 = vpack.c.b16 %v586, %v584
    %v589 = vpack.c.b16 %v587, %v585
    %v591 = vsel %vm101, %v588, 0
    %v594 = vsel %vm101, %v589, 0
    %596 = vmatprep.subr.bf16.mxu0 0
    %597 = vmatpush1.bf16.msra.mxu0 0
    %598 = vmatprep.subr.bf16.mxu0 0
    %599 = vmatpush1.bf16.msra.mxu0 0
    %600 = vmatprep.subr.bf16.mxu0 0
    %601 = vmatpush1.bf16.msra.mxu0 0
    %602 = vmatprep.subr.bf16.mxu0 0
    %603 = vmatpush1.bf16.msra.mxu0 0
    %604 = vmatprep.subr.bf16.mxu0 0
    %605 = vmatpush1.bf16.msra.mxu0 0
    %606 = vmatprep.subr.bf16.mxu0 0
    %607 = vmatpush1.bf16.msra.mxu0 0
    %608 = vmatprep.subr.bf16.mxu0 0
    %609 = vmatpush1.bf16.msra.mxu0 0
    %610 = vmatprep.subr.bf16.mxu0 %v594
    %611 = vmatpush1.bf16.msra.mxu0 %v591
    %612 = vmatprep.subr.bf16.mxu0 0
    %613 = vmatpush2.bf16.msra.mxu0 0
    %614 = vmatprep.subr.bf16.mxu0 0
    %615 = vmatpush2.bf16.msra.mxu0 0
    %616 = vmatprep.subr.bf16.mxu0 0
    %617 = vmatpush2.bf16.msra.mxu0 0
    %618 = vmatprep.subr.bf16.mxu0 0
    %619 = vmatpush2.bf16.msra.mxu0 0
    %620 = vmatprep.subr.bf16.mxu0 0
    %621 = vmatpush2.bf16.msra.mxu0 0
    %622 = vmatprep.subr.bf16.mxu0 0
    %623 = vmatpush2.bf16.msra.mxu0 0
    %624 = vmatprep.subr.bf16.mxu0 0
    %625 = vmatpush2.bf16.msra.mxu0 0
    %626 = vmatprep.subr.bf16.mxu0 0
    %627 = vmatpush2.bf16.msra.mxu0 0
    %628 = vmatprep.mubr.bf16.mxu0 0
    %629 = vmatmul.mubr.bf16.gmra.mxu0 %v99
    %v630 = vpop.f32.mrf.mxu0
    %v631 = vadd.f32 0.0, %v630
    %v632 = vpop.f32.mrf.mxu0
    %v633 = vadd.f32 0.0, %v632
    %v634 = vpop.f32.mrf.mxu0
    %v635 = vpop.f32.mrf.mxu0
    %636 = vdwg.mxu0
    %v637 = vmax.f32 %v576, %v631
    %v638 = vmax.f32 %v578, %v633
    %v639 = vadd.f32 %v637, %v209
    %v640 = vadd.f32 %v638, %v209
    %vm641 = vcmp.ge.f32.partialorder %v639, 0.0
    %vm642 = vcmp.ge.f32.partialorder %v640, 0.0
    %v643 = vmul.f32 %v639, 0.01
    %v644 = vmul.f32 %v640, 0.01
    %v645 = vsel %vm641, %v639, %v643
    %v646 = vsel %vm642, %v640, %v644
    %v649 = vunpack.c.l.b16 %v523
    %v650 = vunpack.c.h.b16 %v523
    %v651 = vunpack.c.l.b16 %v524
    %v652 = vunpack.c.h.b16 %v524
    %v653 = vpack.c.b16 %v651, %v649
    %v654 = vpack.c.b16 %v652, %v650
    %v656 = vsel %vm101, %v653, 0
    %v659 = vsel %vm101, %v654, 0
    %661 = vmatprep.subr.bf16.mxu0 0
    %662 = vmatpush1.bf16.msra.mxu0 0
    %663 = vmatprep.subr.bf16.mxu0 0
    %664 = vmatpush1.bf16.msra.mxu0 0
    %665 = vmatprep.subr.bf16.mxu0 0
    %666 = vmatpush1.bf16.msra.mxu0 0
    %667 = vmatprep.subr.bf16.mxu0 0
    %668 = vmatpush1.bf16.msra.mxu0 0
    %669 = vmatprep.subr.bf16.mxu0 0
    %670 = vmatpush1.bf16.msra.mxu0 0
    %671 = vmatprep.subr.bf16.mxu0 0
    %672 = vmatpush1.bf16.msra.mxu0 0
    %673 = vmatprep.subr.bf16.mxu0 0
    %674 = vmatpush1.bf16.msra.mxu0 0
    %675 = vmatprep.subr.bf16.mxu0 %v659
    %676 = vmatpush1.bf16.msra.mxu0 %v656
    %677 = vmatprep.subr.bf16.mxu0 0
    %678 = vmatpush2.bf16.msra.mxu0 0
    %679 = vmatprep.subr.bf16.mxu0 0
    %680 = vmatpush2.bf16.msra.mxu0 0
    %681 = vmatprep.subr.bf16.mxu0 0
    %682 = vmatpush2.bf16.msra.mxu0 0
    %683 = vmatprep.subr.bf16.mxu0 0
    %684 = vmatpush2.bf16.msra.mxu0 0
    %685 = vmatprep.subr.bf16.mxu0 0
    %686 = vmatpush2.bf16.msra.mxu0 0
    %687 = vmatprep.subr.bf16.mxu0 0
    %688 = vmatpush2.bf16.msra.mxu0 0
    %689 = vmatprep.subr.bf16.mxu0 0
    %690 = vmatpush2.bf16.msra.mxu0 0
    %691 = vmatprep.subr.bf16.mxu0 0
    %692 = vmatpush2.bf16.msra.mxu0 0
    %693 = vmatprep.mubr.bf16.mxu0 0
    %694 = vmatmul.mubr.bf16.gmra.mxu0 %v99
    %v695 = vpop.f32.mrf.mxu0
    %v696 = vadd.f32 0.0, %v695
    %v697 = vpop.f32.mrf.mxu0
    %v698 = vadd.f32 0.0, %v697
    %v699 = vpop.f32.mrf.mxu0
    %v700 = vpop.f32.mrf.mxu0
    %701 = vdwg.mxu0
    %v704 = vunpack.c.l.b16 %v525
    %v705 = vunpack.c.h.b16 %v525
    %v706 = vunpack.c.l.b16 %v526
    %v707 = vunpack.c.h.b16 %v526
    %v708 = vpack.c.b16 %v706, %v704
    %v709 = vpack.c.b16 %v707, %v705
    %v711 = vsel %vm101, %v708, 0
    %v714 = vsel %vm101, %v709, 0
    %716 = vmatprep.subr.bf16.mxu0 0
    %717 = vmatpush1.bf16.msra.mxu0 0
    %718 = vmatprep.subr.bf16.mxu0 0
    %719 = vmatpush1.bf16.msra.mxu0 0
    %720 = vmatprep.subr.bf16.mxu0 0
    %721 = vmatpush1.bf16.msra.mxu0 0
    %722 = vmatprep.subr.bf16.mxu0 0
    %723 = vmatpush1.bf16.msra.mxu0 0
    %724 = vmatprep.subr.bf16.mxu0 0
    %725 = vmatpush1.bf16.msra.mxu0 0
    %726 = vmatprep.subr.bf16.mxu0 0
    %727 = vmatpush1.bf16.msra.mxu0 0
    %728 = vmatprep.subr.bf16.mxu0 0
    %729 = vmatpush1.bf16.msra.mxu0 0
    %730 = vmatprep.subr.bf16.mxu0 %v714
    %731 = vmatpush1.bf16.msra.mxu0 %v711
    %732 = vmatprep.subr.bf16.mxu0 0
    %733 = vmatpush2.bf16.msra.mxu0 0
    %734 = vmatprep.subr.bf16.mxu0 0
    %735 = vmatpush2.bf16.msra.mxu0 0
    %736 = vmatprep.subr.bf16.mxu0 0
    %737 = vmatpush2.bf16.msra.mxu0 0
    %738 = vmatprep.subr.bf16.mxu0 0
    %739 = vmatpush2.bf16.msra.mxu0 0
    %740 = vmatprep.subr.bf16.mxu0 0
    %741 = vmatpush2.bf16.msra.mxu0 0
    %742 = vmatprep.subr.bf16.mxu0 0
    %743 = vmatpush2.bf16.msra.mxu0 0
    %744 = vmatprep.subr.bf16.mxu0 0
    %745 = vmatpush2.bf16.msra.mxu0 0
    %746 = vmatprep.subr.bf16.mxu0 0
    %747 = vmatpush2.bf16.msra.mxu0 0
    %748 = vmatprep.mubr.bf16.mxu0 0
    %749 = vmatmul.mubr.bf16.gmra.mxu0 %v99
    %v750 = vpop.f32.mrf.mxu0
    %v751 = vadd.f32 0.0, %v750
    %v752 = vpop.f32.mrf.mxu0
    %v753 = vadd.f32 0.0, %v752
    %v754 = vpop.f32.mrf.mxu0
    %v755 = vpop.f32.mrf.mxu0
    %756 = vdwg.mxu0
    %v757 = vmax.f32 %v696, %v751
    %v758 = vmax.f32 %v698, %v753
    %v759 = vadd.f32 %v757, %v209
    %v760 = vadd.f32 %v758, %v209
    %vm761 = vcmp.ge.f32.partialorder %v759, 0.0
    %vm762 = vcmp.ge.f32.partialorder %v760, 0.0
    %v763 = vmul.f32 %v759, 0.01
    %v764 = vmul.f32 %v760, 0.01
    %v765 = vsel %vm761, %v759, %v763
    %v766 = vsel %vm762, %v760, %v764
    %769 = vrot.lane.b32.xlu0 %v645, 127
    %v770 = vpop.permute.xlu0 %769
    %771 = vrot.lane.b32.xlu0 %v646, 127
    %v772 = vpop.permute.xlu0 %771
    %v773 = vsel %vm345, %v770, %v772
    %778 = vrot.lane.b32.xlu0 %v765, 127
    %v779 = vpop.permute.xlu0 %778
    %780 = vrot.lane.b32.xlu0 %v766, 127
    %v781 = vpop.permute.xlu0 %780
    %v782 = vsel %vm345, %v779, %v781
    %785 = vrot.lane.b32.xlu0 %v645, 126
    %v786 = vpop.permute.xlu0 %785
    %787 = vrot.lane.b32.xlu0 %v646, 126
    %v788 = vpop.permute.xlu0 %787
    %v789 = vsel %vm362, %v786, %v788
    %792 = vrot.lane.b32.xlu0 %v765, 126
    %v793 = vpop.permute.xlu0 %792
    %794 = vrot.lane.b32.xlu0 %v766, 126
    %v795 = vpop.permute.xlu0 %794
    %v796 = vsel %vm362, %v793, %v795
    %799 = vrot.lane.b32.xlu0 %v645, 125
    %v800 = vpop.permute.xlu0 %799
    %801 = vrot.lane.b32.xlu0 %v646, 125
    %v802 = vpop.permute.xlu0 %801
    %v803 = vsel %vm377, %v800, %v802
    %v806 = vpack.c.bf16 %v765, %v645
    %v807 = vpack.c.bf16 %v766, %v646
    %v808 = vpack.c.bf16 %v782, %v773
    %v809 = vpack.c.bf16 %v781, %v772
    %v810 = vpack.c.bf16 %v796, %v789
    %v811 = vpack.c.bf16 %v795, %v788
    %812 = vmatprep.subr.bf16.mxu0 0
    %813 = vmatpush1.bf16.msra.mxu0 0
    %814 = vmatprep.subr.bf16.mxu0 0
    %815 = vmatpush1.bf16.msra.mxu0 0
    %816 = vmatprep.subr.bf16.mxu0 0
    %817 = vmatpush1.bf16.msra.mxu0 0
    %818 = vmatprep.subr.bf16.mxu0 0
    %819 = vmatpush1.bf16.msra.mxu0 0
    %820 = vmatprep.subr.bf16.mxu0 0
    %821 = vmatpush1.bf16.msra.mxu0 0
    %822 = vmatprep.subr.bf16.mxu0 %v811
    %823 = vmatpush1.bf16.msra.mxu0 %v810
    %824 = vmatprep.subr.bf16.mxu0 %v809
    %825 = vmatpush1.bf16.msra.mxu0 %v808
    %826 = vmatprep.subr.bf16.mxu0 %v807
    %827 = vmatpush1.bf16.msra.mxu0 %v806
    %828 = vmatprep.subr.bf16.mxu0 0
    %829 = vmatpush2.bf16.msra.mxu0 0
    %830 = vmatprep.subr.bf16.mxu0 0
    %831 = vmatpush2.bf16.msra.mxu0 0
    %832 = vmatprep.subr.bf16.mxu0 0
    %833 = vmatpush2.bf16.msra.mxu0 0
    %834 = vmatprep.subr.bf16.mxu0 0
    %835 = vmatpush2.bf16.msra.mxu0 0
    %836 = vmatprep.subr.bf16.mxu0 0
    %837 = vmatpush2.bf16.msra.mxu0 0
    %838 = vmatprep.subr.bf16.mxu0 0
    %839 = vmatpush2.bf16.msra.mxu0 0
    %840 = vmatprep.subr.bf16.mxu0 0
    %841 = vmatpush2.bf16.msra.mxu0 0
    %842 = vmatprep.subr.bf16.mxu0 0
    %843 = vmatpush2.bf16.msra.mxu0 0
    %844 = vmatprep.mubr.bf16.mxu0 0
    %845 = vmatmul.mubr.bf16.gmra.mxu0 %v394
    %v846 = vpop.f32.mrf.mxu0
    %v847 = vadd.f32 0.0, %v846
    %v848 = vpop.f32.mrf.mxu0
    %v849 = vadd.f32 0.0, %v848
    %v850 = vpop.f32.mrf.mxu0
    %v851 = vadd.f32 0.0, %v850
    %v852 = vpop.f32.mrf.mxu0
    %v853 = vadd.f32 0.0, %v852
    %854 = vdwg.mxu0
    %v855 = vpack.c.bf16 %v773, %v765
    %v856 = vpack.c.bf16 %v772, %v766
    %v857 = vpack.c.bf16 %v789, %v782
    %v858 = vpack.c.bf16 %v788, %v781
    %v859 = vpack.c.bf16 %v803, %v796
    %v860 = vpack.c.bf16 %v802, %v795
    %861 = vmatprep.subr.bf16.mxu0 0
    %862 = vmatpush1.bf16.msra.mxu0 0
    %863 = vmatprep.subr.bf16.mxu0 0
    %864 = vmatpush1.bf16.msra.mxu0 0
    %865 = vmatprep.subr.bf16.mxu0 0
    %866 = vmatpush1.bf16.msra.mxu0 0
    %867 = vmatprep.subr.bf16.mxu0 0
    %868 = vmatpush1.bf16.msra.mxu0 0
    %869 = vmatprep.subr.bf16.mxu0 0
    %870 = vmatpush1.bf16.msra.mxu0 0
    %871 = vmatprep.subr.bf16.mxu0 %v860
    %872 = vmatpush1.bf16.msra.mxu0 %v859
    %873 = vmatprep.subr.bf16.mxu0 %v858
    %874 = vmatpush1.bf16.msra.mxu0 %v857
    %875 = vmatprep.subr.bf16.mxu0 %v856
    %876 = vmatpush1.bf16.msra.mxu0 %v855
    %877 = vmatprep.subr.bf16.mxu0 0
    %878 = vmatpush2.bf16.msra.mxu0 0
    %879 = vmatprep.subr.bf16.mxu0 0
    %880 = vmatpush2.bf16.msra.mxu0 0
    %881 = vmatprep.subr.bf16.mxu0 0
    %882 = vmatpush2.bf16.msra.mxu0 0
    %883 = vmatprep.subr.bf16.mxu0 0
    %884 = vmatpush2.bf16.msra.mxu0 0
    %885 = vmatprep.subr.bf16.mxu0 0
    %886 = vmatpush2.bf16.msra.mxu0 0
    %887 = vmatprep.subr.bf16.mxu0 0
    %888 = vmatpush2.bf16.msra.mxu0 0
    %889 = vmatprep.subr.bf16.mxu0 0
    %890 = vmatpush2.bf16.msra.mxu0 0
    %891 = vmatprep.subr.bf16.mxu0 0
    %892 = vmatpush2.bf16.msra.mxu0 0
    %893 = vmatprep.mubr.bf16.mxu0 0
    %894 = vmatmul.mubr.bf16.gmra.mxu0 %v394
    %v895 = vpop.f32.mrf.mxu0
    %v896 = vadd.f32 0.0, %v895
    %v897 = vpop.f32.mrf.mxu0
    %v898 = vadd.f32 0.0, %v897
    %v899 = vpop.f32.mrf.mxu0
    %v900 = vadd.f32 0.0, %v899
    %v901 = vpop.f32.mrf.mxu0
    %v902 = vadd.f32 0.0, %v901
    %903 = vdwg.mxu0
    %v904 = vmax.f32 %v847, %v896
    %v905 = vmax.f32 %v849, %v898
    %v906 = vmax.f32 %v851, %v900
    %v907 = vmax.f32 %v853, %v902
    %v908 = vadd.f32 %v904, %v495
    %v909 = vadd.f32 %v905, %v495
    %v910 = vadd.f32 %v906, %v500
    %v911 = vadd.f32 %v907, %v500
    %vm912 = vcmp.ge.f32.partialorder %v908, 0.0
    %vm913 = vcmp.ge.f32.partialorder %v909, 0.0
    %vm914 = vcmp.ge.f32.partialorder %v910, 0.0
    %vm915 = vcmp.ge.f32.partialorder %v911, 0.0
    %v916 = vmul.f32 %v908, 0.01
    %v917 = vmul.f32 %v909, 0.01
    %v918 = vmul.f32 %v910, 0.01
    %v919 = vmul.f32 %v911, 0.01
    %v920 = vsel %vm912, %v908, %v916
    %v921 = vsel %vm913, %v909, %v917
    %v922 = vsel %vm914, %v910, %v918
    %v923 = vsel %vm915, %v911, %v919
    %v924 = vpack.c.bf16 %v516, %v514
    %v925 = vpack.c.bf16 %v517, %v515
    %v926 = vpack.c.bf16 %v922, %v920
    %v927 = vpack.c.bf16 %v923, %v921
    %v929 = vlaneseq
    %v930 = vshrl.u32 %v929, 7
    %v931 = vsub.s32 0, %v930
    %v932 = vrot.slane %v71, %v931
    %v933 = vlaneseq
    %v934 = vshrl.u32 %v933, 7
    %v935 = vsub.s32 1, %v934
    %v936 = vrot.slane %v71, %v935
    %v970 = vunpack.c.l.b16 %v40
    %v971 = vunpack.c.h.b16 %v40
    %v972 = vunpack.c.l.b16 %v41
    %v973 = vunpack.c.h.b16 %v41
    %v974 = vunpack.c.l.b16 %v42
    %v975 = vunpack.c.h.b16 %v42
    %v976 = vunpack.c.l.b16 %v43
    %v977 = vunpack.c.h.b16 %v43
    %v978 = vunpack.c.l.b16 %v44
    %v979 = vunpack.c.h.b16 %v44
    %v980 = vunpack.c.l.b16 %v45
    %v981 = vunpack.c.h.b16 %v45
    %v982 = vunpack.c.l.b16 %v46
    %v983 = vunpack.c.h.b16 %v46
    %v984 = vunpack.c.l.b16 %v47
    %v985 = vunpack.c.h.b16 %v47
    %v986 = vunpack.c.l.b16 %v48
    %v987 = vunpack.c.h.b16 %v48
    %v988 = vunpack.c.l.b16 %v49
    %v989 = vunpack.c.h.b16 %v49
    %v990 = vunpack.c.l.b16 %v50
    %v991 = vunpack.c.h.b16 %v50
    %v992 = vunpack.c.l.b16 %v51
    %v993 = vunpack.c.h.b16 %v51
    %v994 = vunpack.c.l.b16 %v52
    %v995 = vunpack.c.h.b16 %v52
    %v996 = vunpack.c.l.b16 %v53
    %v997 = vunpack.c.h.b16 %v53
    %v998 = vunpack.c.l.b16 %v54
    %v999 = vunpack.c.h.b16 %v54
    %v1000 = vunpack.c.l.b16 %v55
    %v1001 = vunpack.c.h.b16 %v55
    %v1002 = vunpack.c.l.b16 %v56
    %v1003 = vunpack.c.h.b16 %v56
    %v1004 = vunpack.c.l.b16 %v57
    %v1005 = vunpack.c.h.b16 %v57
    %v1006 = vunpack.c.l.b16 %v58
    %v1007 = vunpack.c.h.b16 %v58
    %v1008 = vunpack.c.l.b16 %v59
    %v1009 = vunpack.c.h.b16 %v59
    %v1010 = vunpack.c.l.b16 %v60
    %v1011 = vunpack.c.h.b16 %v60
    %v1012 = vunpack.c.l.b16 %v61
    %v1013 = vunpack.c.h.b16 %v61
    %v1014 = vunpack.c.l.b16 %v62
    %v1015 = vunpack.c.h.b16 %v62
    %v1016 = vunpack.c.l.b16 %v63
    %v1017 = vunpack.c.h.b16 %v63
    %v1018 = vunpack.c.l.b16 %v64
    %v1019 = vunpack.c.h.b16 %v64
    %v1020 = vunpack.c.l.b16 %v65
    %v1021 = vunpack.c.h.b16 %v65
    %v1022 = vunpack.c.l.b16 %v66
    %v1023 = vunpack.c.h.b16 %v66
    %v1024 = vunpack.c.l.b16 %v67
    %v1025 = vunpack.c.h.b16 %v67
    %v1026 = vunpack.c.l.b16 %v68
    %v1027 = vunpack.c.h.b16 %v68
    %v1028 = vunpack.c.l.b16 %v69
    %v1029 = vunpack.c.h.b16 %v69
    %v1030 = vunpack.c.l.b16 %v70
    %v1031 = vunpack.c.h.b16 %v70
    %v1032 = vpack.c.b16 %v972, %v970
    %v1033 = vpack.c.b16 %v973, %v971
    %v1034 = vpack.c.b16 %v976, %v974
    %v1035 = vpack.c.b16 %v977, %v975
    %v1036 = vpack.c.b16 %v980, %v978
    %v1037 = vpack.c.b16 %v981, %v979
    %v1038 = vpack.c.b16 %v984, %v982
    %v1039 = vpack.c.b16 %v985, %v983
    %v1040 = vpack.c.b16 %v988, %v986
    %v1041 = vpack.c.b16 %v989, %v987
    %v1042 = vpack.c.b16 %v992, %v990
    %v1043 = vpack.c.b16 %v993, %v991
    %v1044 = vpack.c.b16 %v996, %v994
    %v1045 = vpack.c.b16 %v997, %v995
    %v1046 = vpack.c.b16 %v1000, %v998
    %v1047 = vpack.c.b16 %v1001, %v999
    %v1048 = vpack.c.b16 %v1004, %v1002
    %v1049 = vpack.c.b16 %v1005, %v1003
    %v1050 = vpack.c.b16 %v1008, %v1006
    %v1051 = vpack.c.b16 %v1009, %v1007
    %v1052 = vpack.c.b16 %v1012, %v1010
    %v1053 = vpack.c.b16 %v1013, %v1011
    %v1054 = vpack.c.b16 %v1016, %v1014
    %v1055 = vpack.c.b16 %v1017, %v1015
    %v1056 = vpack.c.b16 %v1020, %v1018
    %v1057 = vpack.c.b16 %v1021, %v1019
    %v1058 = vpack.c.b16 %v1024, %v1022
    %v1059 = vpack.c.b16 %v1025, %v1023
    %v1060 = vpack.c.b16 %v1028, %v1026
    %v1061 = vpack.c.b16 %v1029, %v1027
    %v1062 = vpack.c.b16 %v1030, %v1030
    %v1063 = vpack.c.b16 %v1031, %v1031
    %vm1094 = vcmask 973824
    %v1096 = vsel %vm1094, %v925, 0
    %v1099 = vsel %vm1094, %v927, 0
    %vm1101 = vcmask 1042432
    %vm1102 = vcmask 1043456
    %v1103 = vsel %vm1101, 4294967295, 65535
    %v1104 = vsel %vm1102, %v1103, 0
    %v1106 = vand.u32 %v1062, %v1104
    %v1109 = vand.u32 %v1063, %v1104
    %1111 = vmatprep.subr.bf16.mxu0 %v1047
    %1112 = vmatpush1.bf16.msra.mxu0 %v1046
    %1113 = vmatprep.subr.bf16.mxu0 %v1045
    %1114 = vmatpush1.bf16.msra.mxu0 %v1044
    %1115 = vmatprep.subr.bf16.mxu0 %v1043
    %1116 = vmatpush1.bf16.msra.mxu0 %v1042
    %1117 = vmatprep.subr.bf16.mxu0 %v1041
    %1118 = vmatpush1.bf16.msra.mxu0 %v1040
    %1119 = vmatprep.subr.bf16.mxu0 %v1039
    %1120 = vmatpush1.bf16.msra.mxu0 %v1038
    %1121 = vmatprep.subr.bf16.mxu0 %v1037
    %1122 = vmatpush1.bf16.msra.mxu0 %v1036
    %1123 = vmatprep.subr.bf16.mxu0 %v1035
    %1124 = vmatpush1.bf16.msra.mxu0 %v1034
    %1125 = vmatprep.subr.bf16.mxu0 %v1033
    %1126 = vmatpush1.bf16.msra.mxu0 %v1032
    %1127 = vmatprep.subr.bf16.mxu0 %v1109
    %1128 = vmatpush2.bf16.msra.mxu0 %v1106
    %1129 = vmatprep.subr.bf16.mxu0 %v1061
    %1130 = vmatpush2.bf16.msra.mxu0 %v1060
    %1131 = vmatprep.subr.bf16.mxu0 %v1059
    %1132 = vmatpush2.bf16.msra.mxu0 %v1058
    %1133 = vmatprep.subr.bf16.mxu0 %v1057
    %1134 = vmatpush2.bf16.msra.mxu0 %v1056
    %1135 = vmatprep.subr.bf16.mxu0 %v1055
    %1136 = vmatpush2.bf16.msra.mxu0 %v1054
    %1137 = vmatprep.subr.bf16.mxu0 %v1053
    %1138 = vmatpush2.bf16.msra.mxu0 %v1052
    %1139 = vmatprep.subr.bf16.mxu0 %v1051
    %1140 = vmatpush2.bf16.msra.mxu0 %v1050
    %1141 = vmatprep.subr.bf16.mxu0 %v1049
    %1142 = vmatpush2.bf16.msra.mxu0 %v1048
    %1143 = vmatprep.mubr.bf16.mxu0 %v1096
    %1144 = vmatmul.mubr.bf16.gmra.mxu0 %v924
    %v1145 = vpop.f32.mrf.mxu0
    %v1146 = vadd.f32 %v932, %v1145
    %v1147 = vpop.f32.mrf.mxu0
    %v1148 = vadd.f32 %v936, %v1147
    %v1149 = vpop.f32.mrf.mxu0
    %v1150 = vadd.f32 %v932, %v1149
    %v1151 = vpop.f32.mrf.mxu0
    %v1152 = vadd.f32 %v936, %v1151
    %1153 = vmatprep.mubr.bf16.mxu0 %v1099
    %1154 = vmatmul.mubr.bf16.gmra.mxu0 %v926
    %v1155 = vpop.f32.mrf.mxu0
    %v1156 = vadd.f32 %v932, %v1155
    %v1157 = vpop.f32.mrf.mxu0
    %v1158 = vadd.f32 %v936, %v1157
    %v1159 = vpop.f32.mrf.mxu0
    %v1160 = vadd.f32 %v932, %v1159
    %v1161 = vpop.f32.mrf.mxu0
    %v1162 = vadd.f32 %v936, %v1161
    %1163 = vdwg.mxu0
    %v1168 = vcombine.low %v1146, %v1148
    %v1169 = vcombine.high %v1146, %v1148
    %v1171 = vunpack.c.l.s4 1966171168
    %v1172 = vunpack.c.0.s8 %v1171
    %v1173 = vlaneseq
    %v1174 = vshrl.u32 %v1173, 7
    %v1175 = vsub.s32 %v1172, %v1174
    %v1176 = vrot.slane %v1168, %v1175
    %v1178 = vunpack.c.l.s4 1966171168
    %v1179 = vunpack.c.0.s8 %v1178
    %v1180 = vlaneseq
    %v1181 = vshrl.u32 %v1180, 7
    %v1182 = vsub.s32 %v1179, %v1181
    %v1183 = vrot.slane %v1169, %v1182
    %v1184 = vcombine.high %v1176, %v1176
    %v1185 = vcombine.high %v1183, %v1183
    %v1187 = vunpack.c.l.s4 1966171168
    %v1188 = vunpack.c.0.s8 %v1187
    %v1189 = vlaneseq
    %v1190 = vshrl.u32 %v1189, 7
    %v1191 = vsub.s32 %v1188, %v1190
    %v1192 = vrot.slane %v1176, %v1191
    %v1194 = vunpack.c.l.s4 1966171168
    %v1195 = vunpack.c.0.s8 %v1194
    %v1196 = vlaneseq
    %v1197 = vshrl.u32 %v1196, 7
    %v1198 = vsub.s32 %v1195, %v1197
    %v1199 = vrot.slane %v1183, %v1198
    %v1201 = vunpack.c.l.s4 1966171168
    %v1202 = vunpack.c.0.s8 %v1201
    %v1203 = vlaneseq
    %v1204 = vshrl.u32 %v1203, 7
    %v1205 = vsub.s32 %v1202, %v1204
    %v1206 = vrot.slane %v1184, %v1205
    %v1208 = vunpack.c.l.s4 1966171168
    %v1209 = vunpack.c.0.s8 %v1208
    %v1210 = vlaneseq
    %v1211 = vshrl.u32 %v1210, 7
    %v1212 = vsub.s32 %v1209, %v1211
    %v1213 = vrot.slane %v1185, %v1212
    %v1214 = vcombine.high %v1192, %v1192
    %v1215 = vcombine.high %v1199, %v1199
    %v1216 = vcombine.high %v1206, %v1206
    %v1217 = vcombine.high %v1213, %v1213
    %v1218 = vcombine.low %v1150, %v1152
    %v1219 = vcombine.high %v1150, %v1152
    %v1221 = vunpack.c.l.s4 1966171168
    %v1222 = vunpack.c.0.s8 %v1221
    %v1223 = vlaneseq
    %v1224 = vshrl.u32 %v1223, 7
    %v1225 = vsub.s32 %v1222, %v1224
    %v1226 = vrot.slane %v1218, %v1225
    %v1228 = vunpack.c.l.s4 1966171168
    %v1229 = vunpack.c.0.s8 %v1228
    %v1230 = vlaneseq
    %v1231 = vshrl.u32 %v1230, 7
    %v1232 = vsub.s32 %v1229, %v1231
    %v1233 = vrot.slane %v1219, %v1232
    %v1234 = vcombine.high %v1226, %v1226
    %v1235 = vcombine.high %v1233, %v1233
    %v1237 = vunpack.c.l.s4 1966171168
    %v1238 = vunpack.c.0.s8 %v1237
    %v1239 = vlaneseq
    %v1240 = vshrl.u32 %v1239, 7
    %v1241 = vsub.s32 %v1238, %v1240
    %v1242 = vrot.slane %v1226, %v1241
    %v1244 = vunpack.c.l.s4 1966171168
    %v1245 = vunpack.c.0.s8 %v1244
    %v1246 = vlaneseq
    %v1247 = vshrl.u32 %v1246, 7
    %v1248 = vsub.s32 %v1245, %v1247
    %v1249 = vrot.slane %v1233, %v1248
    %v1251 = vunpack.c.l.s4 1966171168
    %v1252 = vunpack.c.0.s8 %v1251
    %v1253 = vlaneseq
    %v1254 = vshrl.u32 %v1253, 7
    %v1255 = vsub.s32 %v1252, %v1254
    %v1256 = vrot.slane %v1234, %v1255
    %v1258 = vunpack.c.l.s4 1966171168
    %v1259 = vunpack.c.0.s8 %v1258
    %v1260 = vlaneseq
    %v1261 = vshrl.u32 %v1260, 7
    %v1262 = vsub.s32 %v1259, %v1261
    %v1263 = vrot.slane %v1235, %v1262
    %v1264 = vcombine.high %v1242, %v1242
    %v1265 = vcombine.high %v1249, %v1249
    %v1266 = vcombine.high %v1256, %v1256
    %v1267 = vcombine.high %v1263, %v1263
    %v1272 = vcombine.low %v1156, %v1158
    %v1273 = vcombine.high %v1156, %v1158
    %v1275 = vunpack.c.l.s4 1966171168
    %v1276 = vunpack.c.0.s8 %v1275
    %v1277 = vlaneseq
    %v1278 = vshrl.u32 %v1277, 7
    %v1279 = vsub.s32 %v1276, %v1278
    %v1280 = vrot.slane %v1272, %v1279
    %v1282 = vunpack.c.l.s4 1966171168
    %v1283 = vunpack.c.0.s8 %v1282
    %v1284 = vlaneseq
    %v1285 = vshrl.u32 %v1284, 7
    %v1286 = vsub.s32 %v1283, %v1285
    %v1287 = vrot.slane %v1273, %v1286
    %v1288 = vcombine.high %v1280, %v1280
    %v1289 = vcombine.high %v1287, %v1287
    %v1291 = vunpack.c.l.s4 1966171168
    %v1292 = vunpack.c.0.s8 %v1291
    %v1293 = vlaneseq
    %v1294 = vshrl.u32 %v1293, 7
    %v1295 = vsub.s32 %v1292, %v1294
    %v1296 = vrot.slane %v1280, %v1295
    %v1298 = vunpack.c.l.s4 1966171168
    %v1299 = vunpack.c.0.s8 %v1298
    %v1300 = vlaneseq
    %v1301 = vshrl.u32 %v1300, 7
    %v1302 = vsub.s32 %v1299, %v1301
    %v1303 = vrot.slane %v1287, %v1302
    %v1305 = vunpack.c.l.s4 1966171168
    %v1306 = vunpack.c.0.s8 %v1305
    %v1307 = vlaneseq
    %v1308 = vshrl.u32 %v1307, 7
    %v1309 = vsub.s32 %v1306, %v1308
    %v1310 = vrot.slane %v1288, %v1309
    %v1312 = vunpack.c.l.s4 1966171168
    %v1313 = vunpack.c.0.s8 %v1312
    %v1314 = vlaneseq
    %v1315 = vshrl.u32 %v1314, 7
    %v1316 = vsub.s32 %v1313, %v1315
    %v1317 = vrot.slane %v1289, %v1316
    %v1318 = vcombine.high %v1296, %v1296
    %v1319 = vcombine.high %v1303, %v1303
    %v1320 = vcombine.high %v1310, %v1310
    %v1321 = vcombine.high %v1317, %v1317
    %v1322 = vcombine.low %v1160, %v1162
    %v1323 = vcombine.high %v1160, %v1162
    %v1325 = vunpack.c.l.s4 1966171168
    %v1326 = vunpack.c.0.s8 %v1325
    %v1327 = vlaneseq
    %v1328 = vshrl.u32 %v1327, 7
    %v1329 = vsub.s32 %v1326, %v1328
    %v1330 = vrot.slane %v1322, %v1329
    %v1332 = vunpack.c.l.s4 1966171168
    %v1333 = vunpack.c.0.s8 %v1332
    %v1334 = vlaneseq
    %v1335 = vshrl.u32 %v1334, 7
    %v1336 = vsub.s32 %v1333, %v1335
    %v1337 = vrot.slane %v1323, %v1336
    %v1338 = vcombine.high %v1330, %v1330
    %v1339 = vcombine.high %v1337, %v1337
    %v1341 = vunpack.c.l.s4 1966171168
    %v1342 = vunpack.c.0.s8 %v1341
    %v1343 = vlaneseq
    %v1344 = vshrl.u32 %v1343, 7
    %v1345 = vsub.s32 %v1342, %v1344
    %v1346 = vrot.slane %v1330, %v1345
    %v1348 = vunpack.c.l.s4 1966171168
    %v1349 = vunpack.c.0.s8 %v1348
    %v1350 = vlaneseq
    %v1351 = vshrl.u32 %v1350, 7
    %v1352 = vsub.s32 %v1349, %v1351
    %v1353 = vrot.slane %v1337, %v1352
    %v1355 = vunpack.c.l.s4 1966171168
    %v1356 = vunpack.c.0.s8 %v1355
    %v1357 = vlaneseq
    %v1358 = vshrl.u32 %v1357, 7
    %v1359 = vsub.s32 %v1356, %v1358
    %v1360 = vrot.slane %v1338, %v1359
    %v1362 = vunpack.c.l.s4 1966171168
    %v1363 = vunpack.c.0.s8 %v1362
    %v1364 = vlaneseq
    %v1365 = vshrl.u32 %v1364, 7
    %v1366 = vsub.s32 %v1363, %v1365
    %v1367 = vrot.slane %v1339, %v1366
    %v1368 = vcombine.high %v1346, %v1346
    %v1369 = vcombine.high %v1353, %v1353
    %v1370 = vcombine.high %v1360, %v1360
    %v1371 = vcombine.high %v1367, %v1367
    %v1372 = vlaneseq
    %v1373 = vshrl.u32 %v1372, 7
    %v1374 = vsub.s32 0, %v1373
    %v1375 = vrot.slane %v1192, %v1374
    %v1376 = vlaneseq
    %v1377 = vshrl.u32 %v1376, 7
    %v1378 = vsub.s32 1, %v1377
    %v1379 = vrot.slane %v1192, %v1378
    %v1380 = vlaneseq
    %v1381 = vshrl.u32 %v1380, 7
    %v1382 = vsub.s32 0, %v1381
    %v1383 = vrot.slane %v1206, %v1382
    %v1384 = vlaneseq
    %v1385 = vshrl.u32 %v1384, 7
    %v1386 = vsub.s32 1, %v1385
    %v1387 = vrot.slane %v1206, %v1386
    %v1388 = vlaneseq
    %v1389 = vshrl.u32 %v1388, 7
    %v1390 = vsub.s32 0, %v1389
    %v1391 = vrot.slane %v1214, %v1390
    %v1392 = vlaneseq
    %v1393 = vshrl.u32 %v1392, 7
    %v1394 = vsub.s32 1, %v1393
    %v1395 = vrot.slane %v1214, %v1394
    %v1396 = vlaneseq
    %v1397 = vshrl.u32 %v1396, 7
    %v1398 = vsub.s32 0, %v1397
    %v1399 = vrot.slane %v1216, %v1398
    %v1400 = vlaneseq
    %v1401 = vshrl.u32 %v1400, 7
    %v1402 = vsub.s32 1, %v1401
    %v1403 = vrot.slane %v1216, %v1402
    %v1404 = vlaneseq
    %v1405 = vshrl.u32 %v1404, 7
    %v1406 = vsub.s32 0, %v1405
    %v1407 = vrot.slane %v1199, %v1406
    %v1408 = vlaneseq
    %v1409 = vshrl.u32 %v1408, 7
    %v1410 = vsub.s32 1, %v1409
    %v1411 = vrot.slane %v1199, %v1410
    %v1412 = vlaneseq
    %v1413 = vshrl.u32 %v1412, 7
    %v1414 = vsub.s32 0, %v1413
    %v1415 = vrot.slane %v1213, %v1414
    %v1416 = vlaneseq
    %v1417 = vshrl.u32 %v1416, 7
    %v1418 = vsub.s32 1, %v1417
    %v1419 = vrot.slane %v1213, %v1418
    %v1420 = vlaneseq
    %v1421 = vshrl.u32 %v1420, 7
    %v1422 = vsub.s32 0, %v1421
    %v1423 = vrot.slane %v1215, %v1422
    %v1424 = vlaneseq
    %v1425 = vshrl.u32 %v1424, 7
    %v1426 = vsub.s32 1, %v1425
    %v1427 = vrot.slane %v1215, %v1426
    %v1428 = vlaneseq
    %v1429 = vshrl.u32 %v1428, 7
    %v1430 = vsub.s32 0, %v1429
    %v1431 = vrot.slane %v1217, %v1430
    %v1432 = vlaneseq
    %v1433 = vshrl.u32 %v1432, 7
    %v1434 = vsub.s32 1, %v1433
    %v1435 = vrot.slane %v1217, %v1434
    %v1436 = vlaneseq
    %v1437 = vshrl.u32 %v1436, 7
    %v1438 = vsub.s32 0, %v1437
    %v1439 = vrot.slane %v1242, %v1438
    %v1440 = vlaneseq
    %v1441 = vshrl.u32 %v1440, 7
    %v1442 = vsub.s32 1, %v1441
    %v1443 = vrot.slane %v1242, %v1442
    %v1444 = vlaneseq
    %v1445 = vshrl.u32 %v1444, 7
    %v1446 = vsub.s32 0, %v1445
    %v1447 = vrot.slane %v1256, %v1446
    %v1448 = vlaneseq
    %v1449 = vshrl.u32 %v1448, 7
    %v1450 = vsub.s32 1, %v1449
    %v1451 = vrot.slane %v1256, %v1450
    %v1452 = vlaneseq
    %v1453 = vshrl.u32 %v1452, 7
    %v1454 = vsub.s32 0, %v1453
    %v1455 = vrot.slane %v1264, %v1454
    %v1456 = vlaneseq
    %v1457 = vshrl.u32 %v1456, 7
    %v1458 = vsub.s32 1, %v1457
    %v1459 = vrot.slane %v1264, %v1458
    %v1460 = vlaneseq
    %v1461 = vshrl.u32 %v1460, 7
    %v1462 = vsub.s32 0, %v1461
    %v1463 = vrot.slane %v1266, %v1462
    %v1464 = vlaneseq
    %v1465 = vshrl.u32 %v1464, 7
    %v1466 = vsub.s32 1, %v1465
    %v1467 = vrot.slane %v1266, %v1466
    %v1468 = vlaneseq
    %v1469 = vshrl.u32 %v1468, 7
    %v1470 = vsub.s32 0, %v1469
    %v1471 = vrot.slane %v1249, %v1470
    %v1472 = vlaneseq
    %v1473 = vshrl.u32 %v1472, 7
    %v1474 = vsub.s32 1, %v1473
    %v1475 = vrot.slane %v1249, %v1474
    %v1476 = vlaneseq
    %v1477 = vshrl.u32 %v1476, 7
    %v1478 = vsub.s32 0, %v1477
    %v1479 = vrot.slane %v1263, %v1478
    %v1480 = vlaneseq
    %v1481 = vshrl.u32 %v1480, 7
    %v1482 = vsub.s32 1, %v1481
    %v1483 = vrot.slane %v1263, %v1482
    %v1484 = vlaneseq
    %v1485 = vshrl.u32 %v1484, 7
    %v1486 = vsub.s32 0, %v1485
    %v1487 = vrot.slane %v1265, %v1486
    %v1488 = vlaneseq
    %v1489 = vshrl.u32 %v1488, 7
    %v1490 = vsub.s32 1, %v1489
    %v1491 = vrot.slane %v1265, %v1490
    %v1492 = vlaneseq
    %v1493 = vshrl.u32 %v1492, 7
    %v1494 = vsub.s32 0, %v1493
    %v1495 = vrot.slane %v1267, %v1494
    %v1496 = vlaneseq
    %v1497 = vshrl.u32 %v1496, 7
    %v1498 = vsub.s32 1, %v1497
    %v1499 = vrot.slane %v1267, %v1498
    %v1532 = vlaneseq
    %v1533 = vshrl.u32 %v1532, 7
    %v1534 = vsub.s32 0, %v1533
    %v1535 = vrot.slane %v1296, %v1534
    %v1536 = vlaneseq
    %v1537 = vshrl.u32 %v1536, 7
    %v1538 = vsub.s32 1, %v1537
    %v1539 = vrot.slane %v1296, %v1538
    %v1540 = vlaneseq
    %v1541 = vshrl.u32 %v1540, 7
    %v1542 = vsub.s32 0, %v1541
    %v1543 = vrot.slane %v1310, %v1542
    %v1544 = vlaneseq
    %v1545 = vshrl.u32 %v1544, 7
    %v1546 = vsub.s32 1, %v1545
    %v1547 = vrot.slane %v1310, %v1546
    %v1548 = vlaneseq
    %v1549 = vshrl.u32 %v1548, 7
    %v1550 = vsub.s32 0, %v1549
    %v1551 = vrot.slane %v1318, %v1550
    %v1552 = vlaneseq
    %v1553 = vshrl.u32 %v1552, 7
    %v1554 = vsub.s32 1, %v1553
    %v1555 = vrot.slane %v1318, %v1554
    %v1556 = vlaneseq
    %v1557 = vshrl.u32 %v1556, 7
    %v1558 = vsub.s32 0, %v1557
    %v1559 = vrot.slane %v1320, %v1558
    %v1560 = vlaneseq
    %v1561 = vshrl.u32 %v1560, 7
    %v1562 = vsub.s32 1, %v1561
    %v1563 = vrot.slane %v1320, %v1562
    %v1564 = vlaneseq
    %v1565 = vshrl.u32 %v1564, 7
    %v1566 = vsub.s32 0, %v1565
    %v1567 = vrot.slane %v1303, %v1566
    %v1568 = vlaneseq
    %v1569 = vshrl.u32 %v1568, 7
    %v1570 = vsub.s32 1, %v1569
    %v1571 = vrot.slane %v1303, %v1570
    %v1572 = vlaneseq
    %v1573 = vshrl.u32 %v1572, 7
    %v1574 = vsub.s32 0, %v1573
    %v1575 = vrot.slane %v1317, %v1574
    %v1576 = vlaneseq
    %v1577 = vshrl.u32 %v1576, 7
    %v1578 = vsub.s32 1, %v1577
    %v1579 = vrot.slane %v1317, %v1578
    %v1580 = vlaneseq
    %v1581 = vshrl.u32 %v1580, 7
    %v1582 = vsub.s32 0, %v1581
    %v1583 = vrot.slane %v1319, %v1582
    %v1584 = vlaneseq
    %v1585 = vshrl.u32 %v1584, 7
    %v1586 = vsub.s32 1, %v1585
    %v1587 = vrot.slane %v1319, %v1586
    %v1588 = vlaneseq
    %v1589 = vshrl.u32 %v1588, 7
    %v1590 = vsub.s32 0, %v1589
    %v1591 = vrot.slane %v1321, %v1590
    %v1592 = vlaneseq
    %v1593 = vshrl.u32 %v1592, 7
    %v1594 = vsub.s32 1, %v1593
    %v1595 = vrot.slane %v1321, %v1594
    %v1596 = vlaneseq
    %v1597 = vshrl.u32 %v1596, 7
    %v1598 = vsub.s32 0, %v1597
    %v1599 = vrot.slane %v1346, %v1598
    %v1600 = vlaneseq
    %v1601 = vshrl.u32 %v1600, 7
    %v1602 = vsub.s32 1, %v1601
    %v1603 = vrot.slane %v1346, %v1602
    %v1604 = vlaneseq
    %v1605 = vshrl.u32 %v1604, 7
    %v1606 = vsub.s32 0, %v1605
    %v1607 = vrot.slane %v1360, %v1606
    %v1608 = vlaneseq
    %v1609 = vshrl.u32 %v1608, 7
    %v1610 = vsub.s32 1, %v1609
    %v1611 = vrot.slane %v1360, %v1610
    %v1612 = vlaneseq
    %v1613 = vshrl.u32 %v1612, 7
    %v1614 = vsub.s32 0, %v1613
    %v1615 = vrot.slane %v1368, %v1614
    %v1616 = vlaneseq
    %v1617 = vshrl.u32 %v1616, 7
    %v1618 = vsub.s32 1, %v1617
    %v1619 = vrot.slane %v1368, %v1618
    %v1620 = vlaneseq
    %v1621 = vshrl.u32 %v1620, 7
    %v1622 = vsub.s32 0, %v1621
    %v1623 = vrot.slane %v1370, %v1622
    %v1624 = vlaneseq
    %v1625 = vshrl.u32 %v1624, 7
    %v1626 = vsub.s32 1, %v1625
    %v1627 = vrot.slane %v1370, %v1626
    %v1628 = vlaneseq
    %v1629 = vshrl.u32 %v1628, 7
    %v1630 = vsub.s32 0, %v1629
    %v1631 = vrot.slane %v1353, %v1630
    %v1632 = vlaneseq
    %v1633 = vshrl.u32 %v1632, 7
    %v1634 = vsub.s32 1, %v1633
    %v1635 = vrot.slane %v1353, %v1634
    %v1636 = vlaneseq
    %v1637 = vshrl.u32 %v1636, 7
    %v1638 = vsub.s32 0, %v1637
    %v1639 = vrot.slane %v1367, %v1638
    %v1640 = vlaneseq
    %v1641 = vshrl.u32 %v1640, 7
    %v1642 = vsub.s32 1, %v1641
    %v1643 = vrot.slane %v1367, %v1642
    %v1644 = vlaneseq
    %v1645 = vshrl.u32 %v1644, 7
    %v1646 = vsub.s32 0, %v1645
    %v1647 = vrot.slane %v1369, %v1646
    %v1648 = vlaneseq
    %v1649 = vshrl.u32 %v1648, 7
    %v1650 = vsub.s32 1, %v1649
    %v1651 = vrot.slane %v1369, %v1650
    %v1652 = vlaneseq
    %v1653 = vshrl.u32 %v1652, 7
    %v1654 = vsub.s32 0, %v1653
    %v1655 = vrot.slane %v1371, %v1654
    %v1656 = vlaneseq
    %v1657 = vshrl.u32 %v1656, 7
    %v1658 = vsub.s32 1, %v1657
    %v1659 = vrot.slane %v1371, %v1658
    %vm1692 = vcmask 1040384
    %v1693 = vsel %vm1692, %v1375, %v1535
    %v1694 = vsel %vm1692, %v1379, %v1539
    %v1695 = vsel %vm1692, %v1383, %v1543
    %v1696 = vsel %vm1692, %v1387, %v1547
    %v1697 = vsel %vm1692, %v1391, %v1551
    %v1698 = vsel %vm1692, %v1395, %v1555
    %v1699 = vsel %vm1692, %v1399, %v1559
    %v1700 = vsel %vm1692, %v1403, %v1563
    %v1701 = vsel %vm1692, %v1407, %v1567
    %v1702 = vsel %vm1692, %v1411, %v1571
    %v1703 = vsel %vm1692, %v1415, %v1575
    %v1704 = vsel %vm1692, %v1419, %v1579
    %v1705 = vsel %vm1692, %v1423, %v1583
    %v1706 = vsel %vm1692, %v1427, %v1587
    %v1707 = vsel %vm1692, %v1431, %v1591
    %v1708 = vsel %vm1692, %v1435, %v1595
    %v1709 = vsel %vm1692, %v1439, %v1599
    %v1710 = vsel %vm1692, %v1443, %v1603
    %v1711 = vsel %vm1692, %v1447, %v1607
    %v1712 = vsel %vm1692, %v1451, %v1611
    %v1713 = vsel %vm1692, %v1455, %v1615
    %v1714 = vsel %vm1692, %v1459, %v1619
    %v1715 = vsel %vm1692, %v1463, %v1623
    %v1716 = vsel %vm1692, %v1467, %v1627
    %v1717 = vsel %vm1692, %v1471, %v1631
    %v1718 = vsel %vm1692, %v1475, %v1635
    %v1719 = vsel %vm1692, %v1479, %v1639
    %v1720 = vsel %vm1692, %v1483, %v1643
    %v1721 = vsel %vm1692, %v1487, %v1647
    %v1722 = vsel %vm1692, %v1491, %v1651
    %v1723 = vsel %vm1692, %v1495, %v1655
    %v1724 = vsel %vm1692, %v1499, %v1659
    %v1726 = vlaneseq
    %v1727 = vshrl.u32 %v1726, 7
    %v1728 = vsub.s32 0, %v1727
    %v1729 = vrot.slane %v80, %v1728
    %v1730 = vlaneseq
    %v1731 = vshrl.u32 %v1730, 7
    %v1732 = vsub.s32 1, %v1731
    %v1733 = vrot.slane %v80, %v1732
    %v1744 = vunpack.c.l.b16 %v72
    %v1745 = vunpack.c.h.b16 %v72
    %v1746 = vunpack.c.l.b16 %v73
    %v1747 = vunpack.c.h.b16 %v73
    %v1748 = vunpack.c.l.b16 %v74
    %v1749 = vunpack.c.h.b16 %v74
    %v1750 = vunpack.c.l.b16 %v75
    %v1751 = vunpack.c.h.b16 %v75
    %v1752 = vunpack.c.l.b16 %v76
    %v1753 = vunpack.c.h.b16 %v76
    %v1754 = vunpack.c.l.b16 %v77
    %v1755 = vunpack.c.h.b16 %v77
    %v1756 = vunpack.c.l.b16 %v78
    %v1757 = vunpack.c.h.b16 %v78
    %v1758 = vunpack.c.l.b16 %v79
    %v1759 = vunpack.c.h.b16 %v79
    %v1760 = vpack.c.b16 %v1746, %v1744
    %v1761 = vpack.c.b16 %v1747, %v1745
    %v1762 = vpack.c.b16 %v1750, %v1748
    %v1763 = vpack.c.b16 %v1751, %v1749
    %v1764 = vpack.c.b16 %v1754, %v1752
    %v1765 = vpack.c.b16 %v1755, %v1753
    %v1766 = vpack.c.b16 %v1758, %v1756
    %v1767 = vpack.c.b16 %v1759, %v1757
    %vm1776 = vcmask 523264
    %v1778 = vsel %vm1776, 0, 0
    %1780 = vmatprep.subr.bf16.mxu0 0
    %1781 = vmatpush1.bf16.msra.mxu0 0
    %1782 = vmatprep.subr.bf16.mxu0 0
    %1783 = vmatpush1.bf16.msra.mxu0 0
    %1784 = vmatprep.subr.bf16.mxu0 0
    %1785 = vmatpush1.bf16.msra.mxu0 0
    %1786 = vmatprep.subr.bf16.mxu0 0
    %1787 = vmatpush1.bf16.msra.mxu0 0
    %1788 = vmatprep.subr.bf16.mxu0 %v1767
    %1789 = vmatpush1.bf16.msra.mxu0 %v1766
    %1790 = vmatprep.subr.bf16.mxu0 %v1765
    %1791 = vmatpush1.bf16.msra.mxu0 %v1764
    %1792 = vmatprep.subr.bf16.mxu0 %v1763
    %1793 = vmatpush1.bf16.msra.mxu0 %v1762
    %1794 = vmatprep.subr.bf16.mxu0 %v1761
    %1795 = vmatpush1.bf16.msra.mxu0 %v1760
    %1796 = vmatprep.subr.bf16.mxu0 0
    %1797 = vmatpush2.bf16.msra.mxu0 0
    %1798 = vmatprep.subr.bf16.mxu0 0
    %1799 = vmatpush2.bf16.msra.mxu0 0
    %1800 = vmatprep.subr.bf16.mxu0 0
    %1801 = vmatpush2.bf16.msra.mxu0 0
    %1802 = vmatprep.subr.bf16.mxu0 0
    %1803 = vmatpush2.bf16.msra.mxu0 0
    %1804 = vmatprep.subr.bf16.mxu0 0
    %1805 = vmatpush2.bf16.msra.mxu0 0
    %1806 = vmatprep.subr.bf16.mxu0 0
    %1807 = vmatpush2.bf16.msra.mxu0 0
    %1808 = vmatprep.subr.bf16.mxu0 0
    %1809 = vmatpush2.bf16.msra.mxu0 0
    %1810 = vmatprep.subr.bf16.mxu0 0
    %1811 = vmatpush2.bf16.msra.mxu0 0
    %1812 = vmatprep.mubr.bf16.mxu0 0
    %1813 = vmatmul.mubr.bf16.gmra.mxu0 %v1778
    %v1814 = vpop.f32.mrf.mxu0
    %v1815 = vadd.f32 %v1729, %v1814
    %v1816 = vpop.f32.mrf.mxu0
    %v1817 = vadd.f32 %v1733, %v1816
    %v1818 = vpop.f32.mrf.mxu0
    %v1819 = vpop.f32.mrf.mxu0
    %1820 = vdwg.mxu0
    %v1821 = vadd.f32 %v1693, %v1815
    %v1822 = vxor.u32 %v1821, 2147483648
    %v1823 = vmul.f32 %v1822, 1.442695
    %v1824 = vpow.pop %v1823
    %v1825 = vadd.f32 %v1824, 1.0
    %v1826 = vrcp.pop %v1825
    %v1827 = vmul.f32 1.0, %v1826
    %1829 = vrot.lane.b32.xlu0 %v1815, 64
    %v1830 = vpop.permute.xlu0 %1829
    %v1832 = vmul.f32 %v1827, %v1830
    %1834 = vrot.lane.b32.xlu0 %v1832, 64
    %v1835 = vpop.permute.xlu0 %1834
    %v1837 = vadd.f32 %v1693, %v1835
    %v1838 = vtanh.pop %v1837
    %v1839 = vsub.f32 1.0, %v1827
    %1841 = vrot.lane.b32.xlu0 %v1838, 96
    %v1842 = vpop.permute.xlu0 %1841
    %v1844 = vmul.f32 %v1839, %v1842
    %v1845 = vmul.f32 %v1827, 0.0
    %v1846 = vadd.f32 %v1844, %v1845
    %v1847 = vadd.f32 %v1723, %v1815
    %v1848 = vxor.u32 %v1847, 2147483648
    %v1849 = vmul.f32 %v1848, 1.442695
    %v1850 = vpow.pop %v1849
    %v1851 = vadd.f32 %v1850, 1.0
    %v1852 = vrcp.pop %v1851
    %v1853 = vmul.f32 1.0, %v1852
    %v1854 = vadd.f32 %v1724, %v1817
    %v1855 = vxor.u32 %v1854, 2147483648
    %v1856 = vmul.f32 %v1855, 1.442695
    %v1857 = vpow.pop %v1856
    %v1858 = vadd.f32 %v1857, 1.0
    %v1859 = vrcp.pop %v1858
    %v1860 = vmul.f32 1.0, %v1859
    %1862 = vrot.lane.b32.xlu0 %v1817, 64
    %v1863 = vpop.permute.xlu0 %1862
    %v1865 = vmul.f32 %v1853, %v1863
    %1867 = vrot.lane.b32.xlu0 %v1865, 64
    %v1868 = vpop.permute.xlu0 %1867
    %v1870 = vadd.f32 %v1724, %v1868
    %v1871 = vtanh.pop %v1870
    %v1872 = vsub.f32 1.0, %v1860
    %1874 = vrot.lane.b32.xlu0 %v1871, 96
    %v1875 = vpop.permute.xlu0 %1874
    %v1877 = vmul.f32 %v1872, %v1875
    %v1878 = vmul.f32 %v1860, 0.0
    %v1879 = vadd.f32 %v1877, %v1878
    %1881 = vrot.lane.b32.xlu0 %v1846, 96
    %v1882 = vpop.permute.xlu0 %1881
    %1885 = vrot.lane.b32.xlu0 %v1879, 32
    %v1886 = vpop.permute.xlu0 %1885
    %vm1888 = vcmask 261120
    %v1889 = vsel %vm1888, %v1882, %v1886
    %v1890 = vpack.c.bf16 %v1889, %v1889
    %v1892 = vsel %vm1776, %v1890, 0
    %1894 = vmatprep.subr.bf16.mxu0 0
    %1895 = vmatpush1.bf16.msra.mxu0 0
    %1896 = vmatprep.subr.bf16.mxu0 0
    %1897 = vmatpush1.bf16.msra.mxu0 0
    %1898 = vmatprep.subr.bf16.mxu0 0
    %1899 = vmatpush1.bf16.msra.mxu0 0
    %1900 = vmatprep.subr.bf16.mxu0 0
    %1901 = vmatpush1.bf16.msra.mxu0 0
    %1902 = vmatprep.subr.bf16.mxu0 %v1767
    %1903 = vmatpush1.bf16.msra.mxu0 %v1766
    %1904 = vmatprep.subr.bf16.mxu0 %v1765
    %1905 = vmatpush1.bf16.msra.mxu0 %v1764
    %1906 = vmatprep.subr.bf16.mxu0 %v1763
    %1907 = vmatpush1.bf16.msra.mxu0 %v1762
    %1908 = vmatprep.subr.bf16.mxu0 %v1761
    %1909 = vmatpush1.bf16.msra.mxu0 %v1760
    %1910 = vmatprep.subr.bf16.mxu0 0
    %1911 = vmatpush2.bf16.msra.mxu0 0
    %1912 = vmatprep.subr.bf16.mxu0 0
    %1913 = vmatpush2.bf16.msra.mxu0 0
    %1914 = vmatprep.subr.bf16.mxu0 0
    %1915 = vmatpush2.bf16.msra.mxu0 0
    %1916 = vmatprep.subr.bf16.mxu0 0
    %1917 = vmatpush2.bf16.msra.mxu0 0
    %1918 = vmatprep.subr.bf16.mxu0 0
    %1919 = vmatpush2.bf16.msra.mxu0 0
    %1920 = vmatprep.subr.bf16.mxu0 0
    %1921 = vmatpush2.bf16.msra.mxu0 0
    %1922 = vmatprep.subr.bf16.mxu0 0
    %1923 = vmatpush2.bf16.msra.mxu0 0
    %1924 = vmatprep.subr.bf16.mxu0 0
    %1925 = vmatpush2.bf16.msra.mxu0 0
    %1926 = vmatprep.mubr.bf16.mxu0 0
    %1927 = vmatmul.mubr.bf16.gmra.mxu0 %v1892
    %v1928 = vpop.f32.mrf.mxu0
    %v1929 = vadd.f32 %v1729, %v1928
    %v1930 = vpop.f32.mrf.mxu0
    %v1931 = vadd.f32 %v1733, %v1930
    %v1932 = vpop.f32.mrf.mxu0
    %v1933 = vpop.f32.mrf.mxu0
    %1934 = vdwg.mxu0
    %v1935 = vadd.f32 %v1695, %v1929
    %v1936 = vxor.u32 %v1935, 2147483648
    %v1937 = vmul.f32 %v1936, 1.442695
    %v1938 = vpow.pop %v1937
    %v1939 = vadd.f32 %v1938, 1.0
    %v1940 = vrcp.pop %v1939
    %v1941 = vmul.f32 1.0, %v1940
    %1943 = vrot.lane.b32.xlu0 %v1929, 64
    %v1944 = vpop.permute.xlu0 %1943
    %v1946 = vmul.f32 %v1941, %v1944
    %1948 = vrot.lane.b32.xlu0 %v1946, 64
    %v1949 = vpop.permute.xlu0 %1948
    %v1951 = vadd.f32 %v1695, %v1949
    %v1952 = vtanh.pop %v1951
    %v1953 = vsub.f32 1.0, %v1941
    %1955 = vrot.lane.b32.xlu0 %v1952, 96
    %v1956 = vpop.permute.xlu0 %1955
    %v1958 = vmul.f32 %v1953, %v1956
    %1960 = vrot.lane.b32.xlu0 %v1889, 32
    %v1961 = vpop.permute.xlu0 %1960
    %v1963 = vmul.f32 %v1941, %v1961
    %v1964 = vadd.f32 %v1958, %v1963
    %v1965 = vadd.f32 %v1721, %v1929
    %v1966 = vxor.u32 %v1965, 2147483648
    %v1967 = vmul.f32 %v1966, 1.442695
    %v1968 = vpow.pop %v1967
    %v1969 = vadd.f32 %v1968, 1.0
    %v1970 = vrcp.pop %v1969
    %v1971 = vmul.f32 1.0, %v1970
    %v1972 = vadd.f32 %v1722, %v1931
    %v1973 = vxor.u32 %v1972, 2147483648
    %v1974 = vmul.f32 %v1973, 1.442695
    %v1975 = vpow.pop %v1974
    %v1976 = vadd.f32 %v1975, 1.0
    %v1977 = vrcp.pop %v1976
    %v1978 = vmul.f32 1.0, %v1977
    %1980 = vrot.lane.b32.xlu0 %v1931, 64
    %v1981 = vpop.permute.xlu0 %1980
    %v1983 = vmul.f32 %v1971, %v1981
    %1985 = vrot.lane.b32.xlu0 %v1983, 64
    %v1986 = vpop.permute.xlu0 %1985
    %v1988 = vadd.f32 %v1722, %v1986
    %v1989 = vtanh.pop %v1988
    %v1990 = vsub.f32 1.0, %v1978
    %1992 = vrot.lane.b32.xlu0 %v1989, 96
    %v1993 = vpop.permute.xlu0 %1992
    %v1995 = vmul.f32 %v1990, %v1993
    %1996 = vrot.lane.b32.xlu0 %v1889, 96
    %v1997 = vpop.permute.xlu0 %1996
    %v1999 = vmul.f32 %v1978, %v1997
    %v2000 = vadd.f32 %v1995, %v1999
    %2002 = vrot.lane.b32.xlu0 %v1964, 96
    %v2003 = vpop.permute.xlu0 %2002
    %2006 = vrot.lane.b32.xlu0 %v2000, 32
    %v2007 = vpop.permute.xlu0 %2006
    %v2009 = vsel %vm1888, %v2003, %v2007
    %v2010 = vpack.c.bf16 %v2009, %v2009
    %v2012 = vsel %vm1776, %v2010, 0
    %2014 = vmatprep.subr.bf16.mxu0 0
    %2015 = vmatpush1.bf16.msra.mxu0 0
    %2016 = vmatprep.subr.bf16.mxu0 0
    %2017 = vmatpush1.bf16.msra.mxu0 0
    %2018 = vmatprep.subr.bf16.mxu0 0
    %2019 = vmatpush1.bf16.msra.mxu0 0
    %2020 = vmatprep.subr.bf16.mxu0 0
    %2021 = vmatpush1.bf16.msra.mxu0 0
    %2022 = vmatprep.subr.bf16.mxu0 %v1767
    %2023 = vmatpush1.bf16.msra.mxu0 %v1766
    %2024 = vmatprep.subr.bf16.mxu0 %v1765
    %2025 = vmatpush1.bf16.msra.mxu0 %v1764
    %2026 = vmatprep.subr.bf16.mxu0 %v1763
    %2027 = vmatpush1.bf16.msra.mxu0 %v1762
    %2028 = vmatprep.subr.bf16.mxu0 %v1761
    %2029 = vmatpush1.bf16.msra.mxu0 %v1760
    %2030 = vmatprep.subr.bf16.mxu0 0
    %2031 = vmatpush2.bf16.msra.mxu0 0
    %2032 = vmatprep.subr.bf16.mxu0 0
    %2033 = vmatpush2.bf16.msra.mxu0 0
    %2034 = vmatprep.subr.bf16.mxu0 0
    %2035 = vmatpush2.bf16.msra.mxu0 0
    %2036 = vmatprep.subr.bf16.mxu0 0
    %2037 = vmatpush2.bf16.msra.mxu0 0
    %2038 = vmatprep.subr.bf16.mxu0 0
    %2039 = vmatpush2.bf16.msra.mxu0 0
    %2040 = vmatprep.subr.bf16.mxu0 0
    %2041 = vmatpush2.bf16.msra.mxu0 0
    %2042 = vmatprep.subr.bf16.mxu0 0
    %2043 = vmatpush2.bf16.msra.mxu0 0
    %2044 = vmatprep.subr.bf16.mxu0 0
    %2045 = vmatpush2.bf16.msra.mxu0 0
    %2046 = vmatprep.mubr.bf16.mxu0 0
    %2047 = vmatmul.mubr.bf16.gmra.mxu0 %v2012
    %v2048 = vpop.f32.mrf.mxu0
    %v2049 = vadd.f32 %v1729, %v2048
    %v2050 = vpop.f32.mrf.mxu0
    %v2051 = vadd.f32 %v1733, %v2050
    %v2052 = vpop.f32.mrf.mxu0
    %v2053 = vpop.f32.mrf.mxu0
    %2054 = vdwg.mxu0
    %v2055 = vadd.f32 %v1697, %v2049
    %v2056 = vxor.u32 %v2055, 2147483648
    %v2057 = vmul.f32 %v2056, 1.442695
    %v2058 = vpow.pop %v2057
    %v2059 = vadd.f32 %v2058, 1.0
    %v2060 = vrcp.pop %v2059
    %v2061 = vmul.f32 1.0, %v2060
    %2063 = vrot.lane.b32.xlu0 %v2049, 64
    %v2064 = vpop.permute.xlu0 %2063
    %v2066 = vmul.f32 %v2061, %v2064
    %2068 = vrot.lane.b32.xlu0 %v2066, 64
    %v2069 = vpop.permute.xlu0 %2068
    %v2071 = vadd.f32 %v1697, %v2069
    %v2072 = vtanh.pop %v2071
    %v2073 = vsub.f32 1.0, %v2061
    %2075 = vrot.lane.b32.xlu0 %v2072, 96
    %v2076 = vpop.permute.xlu0 %2075
    %v2078 = vmul.f32 %v2073, %v2076
    %2080 = vrot.lane.b32.xlu0 %v2009, 32
    %v2081 = vpop.permute.xlu0 %2080
    %v2083 = vmul.f32 %v2061, %v2081
    %v2084 = vadd.f32 %v2078, %v2083
    %v2085 = vadd.f32 %v1719, %v2049
    %v2086 = vxor.u32 %v2085, 2147483648
    %v2087 = vmul.f32 %v2086, 1.442695
    %v2088 = vpow.pop %v2087
    %v2089 = vadd.f32 %v2088, 1.0
    %v2090 = vrcp.pop %v2089
    %v2091 = vmul.f32 1.0, %v2090
    %v2092 = vadd.f32 %v1720, %v2051
    %v2093 = vxor.u32 %v2092, 2147483648
    %v2094 = vmul.f32 %v2093, 1.442695
    %v2095 = vpow.pop %v2094
    %v2096 = vadd.f32 %v2095, 1.0
    %v2097 = vrcp.pop %v2096
    %v2098 = vmul.f32 1.0, %v2097
    %2100 = vrot.lane.b32.xlu0 %v2051, 64
    %v2101 = vpop.permute.xlu0 %2100
    %v2103 = vmul.f32 %v2091, %v2101
    %2105 = vrot.lane.b32.xlu0 %v2103, 64
    %v2106 = vpop.permute.xlu0 %2105
    %v2108 = vadd.f32 %v1720, %v2106
    %v2109 = vtanh.pop %v2108
    %v2110 = vsub.f32 1.0, %v2098
    %2112 = vrot.lane.b32.xlu0 %v2109, 96
    %v2113 = vpop.permute.xlu0 %2112
    %v2115 = vmul.f32 %v2110, %v2113
    %2116 = vrot.lane.b32.xlu0 %v2009, 96
    %v2117 = vpop.permute.xlu0 %2116
    %v2119 = vmul.f32 %v2098, %v2117
    %v2120 = vadd.f32 %v2115, %v2119
    %2122 = vrot.lane.b32.xlu0 %v2084, 96
    %v2123 = vpop.permute.xlu0 %2122
    %2126 = vrot.lane.b32.xlu0 %v2120, 32
    %v2127 = vpop.permute.xlu0 %2126
    %v2129 = vsel %vm1888, %v2123, %v2127
    %v2130 = vpack.c.bf16 %v2129, %v2129
    %v2132 = vsel %vm1776, %v2130, 0
    %2134 = vmatprep.subr.bf16.mxu0 0
    %2135 = vmatpush1.bf16.msra.mxu0 0
    %2136 = vmatprep.subr.bf16.mxu0 0
    %2137 = vmatpush1.bf16.msra.mxu0 0
    %2138 = vmatprep.subr.bf16.mxu0 0
    %2139 = vmatpush1.bf16.msra.mxu0 0
    %2140 = vmatprep.subr.bf16.mxu0 0
    %2141 = vmatpush1.bf16.msra.mxu0 0
    %2142 = vmatprep.subr.bf16.mxu0 %v1767
    %2143 = vmatpush1.bf16.msra.mxu0 %v1766
    %2144 = vmatprep.subr.bf16.mxu0 %v1765
    %2145 = vmatpush1.bf16.msra.mxu0 %v1764
    %2146 = vmatprep.subr.bf16.mxu0 %v1763
    %2147 = vmatpush1.bf16.msra.mxu0 %v1762
    %2148 = vmatprep.subr.bf16.mxu0 %v1761
    %2149 = vmatpush1.bf16.msra.mxu0 %v1760
    %2150 = vmatprep.subr.bf16.mxu0 0
    %2151 = vmatpush2.bf16.msra.mxu0 0
    %2152 = vmatprep.subr.bf16.mxu0 0
    %2153 = vmatpush2.bf16.msra.mxu0 0
    %2154 = vmatprep.subr.bf16.mxu0 0
    %2155 = vmatpush2.bf16.msra.mxu0 0
    %2156 = vmatprep.subr.bf16.mxu0 0
    %2157 = vmatpush2.bf16.msra.mxu0 0
    %2158 = vmatprep.subr.bf16.mxu0 0
    %2159 = vmatpush2.bf16.msra.mxu0 0
    %2160 = vmatprep.subr.bf16.mxu0 0
    %2161 = vmatpush2.bf16.msra.mxu0 0
    %2162 = vmatprep.subr.bf16.mxu0 0
    %2163 = vmatpush2.bf16.msra.mxu0 0
    %2164 = vmatprep.subr.bf16.mxu0 0
    %2165 = vmatpush2.bf16.msra.mxu0 0
    %2166 = vmatprep.mubr.bf16.mxu0 0
    %2167 = vmatmul.mubr.bf16.gmra.mxu0 %v2132
    %v2168 = vpop.f32.mrf.mxu0
    %v2169 = vadd.f32 %v1729, %v2168
    %v2170 = vpop.f32.mrf.mxu0
    %v2171 = vadd.f32 %v1733, %v2170
    %v2172 = vpop.f32.mrf.mxu0
    %v2173 = vpop.f32.mrf.mxu0
    %2174 = vdwg.mxu0
    %v2175 = vadd.f32 %v1699, %v2169
    %v2176 = vxor.u32 %v2175, 2147483648
    %v2177 = vmul.f32 %v2176, 1.442695
    %v2178 = vpow.pop %v2177
    %v2179 = vadd.f32 %v2178, 1.0
    %v2180 = vrcp.pop %v2179
    %v2181 = vmul.f32 1.0, %v2180
    %2183 = vrot.lane.b32.xlu0 %v2169, 64
    %v2184 = vpop.permute.xlu0 %2183
    %v2186 = vmul.f32 %v2181, %v2184
    %2188 = vrot.lane.b32.xlu0 %v2186, 64
    %v2189 = vpop.permute.xlu0 %2188
    %v2191 = vadd.f32 %v1699, %v2189
    %v2192 = vtanh.pop %v2191
    %v2193 = vsub.f32 1.0, %v2181
    %2195 = vrot.lane.b32.xlu0 %v2192, 96
    %v2196 = vpop.permute.xlu0 %2195
    %v2198 = vmul.f32 %v2193, %v2196
    %2200 = vrot.lane.b32.xlu0 %v2129, 32
    %v2201 = vpop.permute.xlu0 %2200
    %v2203 = vmul.f32 %v2181, %v2201
    %v2204 = vadd.f32 %v2198, %v2203
    %v2205 = vadd.f32 %v1717, %v2169
    %v2206 = vxor.u32 %v2205, 2147483648
    %v2207 = vmul.f32 %v2206, 1.442695
    %v2208 = vpow.pop %v2207
    %v2209 = vadd.f32 %v2208, 1.0
    %v2210 = vrcp.pop %v2209
    %v2211 = vmul.f32 1.0, %v2210
    %v2212 = vadd.f32 %v1718, %v2171
    %v2213 = vxor.u32 %v2212, 2147483648
    %v2214 = vmul.f32 %v2213, 1.442695
    %v2215 = vpow.pop %v2214
    %v2216 = vadd.f32 %v2215, 1.0
    %v2217 = vrcp.pop %v2216
    %v2218 = vmul.f32 1.0, %v2217
    %2220 = vrot.lane.b32.xlu0 %v2171, 64
    %v2221 = vpop.permute.xlu0 %2220
    %v2223 = vmul.f32 %v2211, %v2221
    %2225 = vrot.lane.b32.xlu0 %v2223, 64
    %v2226 = vpop.permute.xlu0 %2225
    %v2228 = vadd.f32 %v1718, %v2226
    %v2229 = vtanh.pop %v2228
    %v2230 = vsub.f32 1.0, %v2218
    %2232 = vrot.lane.b32.xlu0 %v2229, 96
    %v2233 = vpop.permute.xlu0 %2232
    %v2235 = vmul.f32 %v2230, %v2233
    %2236 = vrot.lane.b32.xlu0 %v2129, 96
    %v2237 = vpop.permute.xlu0 %2236
    %v2239 = vmul.f32 %v2218, %v2237
    %v2240 = vadd.f32 %v2235, %v2239
    %2242 = vrot.lane.b32.xlu0 %v2204, 96
    %v2243 = vpop.permute.xlu0 %2242
    %2246 = vrot.lane.b32.xlu0 %v2240, 32
    %v2247 = vpop.permute.xlu0 %2246
    %v2249 = vsel %vm1888, %v2243, %v2247
    %v2250 = vpack.c.bf16 %v2249, %v2249
    %v2252 = vsel %vm1776, %v2250, 0
    %2254 = vmatprep.subr.bf16.mxu0 0
    %2255 = vmatpush1.bf16.msra.mxu0 0
    %2256 = vmatprep.subr.bf16.mxu0 0
    %2257 = vmatpush1.bf16.msra.mxu0 0
    %2258 = vmatprep.subr.bf16.mxu0 0
    %2259 = vmatpush1.bf16.msra.mxu0 0
    %2260 = vmatprep.subr.bf16.mxu0 0
    %2261 = vmatpush1.bf16.msra.mxu0 0
    %2262 = vmatprep.subr.bf16.mxu0 %v1767
    %2263 = vmatpush1.bf16.msra.mxu0 %v1766
    %2264 = vmatprep.subr.bf16.mxu0 %v1765
    %2265 = vmatpush1.bf16.msra.mxu0 %v1764
    %2266 = vmatprep.subr.bf16.mxu0 %v1763
    %2267 = vmatpush1.bf16.msra.mxu0 %v1762
    %2268 = vmatprep.subr.bf16.mxu0 %v1761
    %2269 = vmatpush1.bf16.msra.mxu0 %v1760
    %2270 = vmatprep.subr.bf16.mxu0 0
    %2271 = vmatpush2.bf16.msra.mxu0 0
    %2272 = vmatprep.subr.bf16.mxu0 0
    %2273 = vmatpush2.bf16.msra.mxu0 0
    %2274 = vmatprep.subr.bf16.mxu0 0
    %2275 = vmatpush2.bf16.msra.mxu0 0
    %2276 = vmatprep.subr.bf16.mxu0 0
    %2277 = vmatpush2.bf16.msra.mxu0 0
    %2278 = vmatprep.subr.bf16.mxu0 0
    %2279 = vmatpush2.bf16.msra.mxu0 0
    %2280 = vmatprep.subr.bf16.mxu0 0
    %2281 = vmatpush2.bf16.msra.mxu0 0
    %2282 = vmatprep.subr.bf16.mxu0 0
    %2283 = vmatpush2.bf16.msra.mxu0 0
    %2284 = vmatprep.subr.bf16.mxu0 0
    %2285 = vmatpush2.bf16.msra.mxu0 0
    %2286 = vmatprep.mubr.bf16.mxu0 0
    %2287 = vmatmul.mubr.bf16.gmra.mxu0 %v2252
    %v2288 = vpop.f32.mrf.mxu0
    %v2289 = vadd.f32 %v1729, %v2288
    %v2290 = vpop.f32.mrf.mxu0
    %v2291 = vadd.f32 %v1733, %v2290
    %v2292 = vpop.f32.mrf.mxu0
    %v2293 = vpop.f32.mrf.mxu0
    %2294 = vdwg.mxu0
    %v2295 = vadd.f32 %v1701, %v2289
    %v2296 = vxor.u32 %v2295, 2147483648
    %v2297 = vmul.f32 %v2296, 1.442695
    %v2298 = vpow.pop %v2297
    %v2299 = vadd.f32 %v2298, 1.0
    %v2300 = vrcp.pop %v2299
    %v2301 = vmul.f32 1.0, %v2300
    %2303 = vrot.lane.b32.xlu0 %v2289, 64
    %v2304 = vpop.permute.xlu0 %2303
    %v2306 = vmul.f32 %v2301, %v2304
    %2308 = vrot.lane.b32.xlu0 %v2306, 64
    %v2309 = vpop.permute.xlu0 %2308
    %v2311 = vadd.f32 %v1701, %v2309
    %v2312 = vtanh.pop %v2311
    %v2313 = vsub.f32 1.0, %v2301
    %2315 = vrot.lane.b32.xlu0 %v2312, 96
    %v2316 = vpop.permute.xlu0 %2315
    %v2318 = vmul.f32 %v2313, %v2316
    %2320 = vrot.lane.b32.xlu0 %v2249, 32
    %v2321 = vpop.permute.xlu0 %2320
    %v2323 = vmul.f32 %v2301, %v2321
    %v2324 = vadd.f32 %v2318, %v2323
    %v2325 = vadd.f32 %v1715, %v2289
    %v2326 = vxor.u32 %v2325, 2147483648
    %v2327 = vmul.f32 %v2326, 1.442695
    %v2328 = vpow.pop %v2327
    %v2329 = vadd.f32 %v2328, 1.0
    %v2330 = vrcp.pop %v2329
    %v2331 = vmul.f32 1.0, %v2330
    %v2332 = vadd.f32 %v1716, %v2291
    %v2333 = vxor.u32 %v2332, 2147483648
    %v2334 = vmul.f32 %v2333, 1.442695
    %v2335 = vpow.pop %v2334
    %v2336 = vadd.f32 %v2335, 1.0
    %v2337 = vrcp.pop %v2336
    %v2338 = vmul.f32 1.0, %v2337
    %2340 = vrot.lane.b32.xlu0 %v2291, 64
    %v2341 = vpop.permute.xlu0 %2340
    %v2343 = vmul.f32 %v2331, %v2341
    %2345 = vrot.lane.b32.xlu0 %v2343, 64
    %v2346 = vpop.permute.xlu0 %2345
    %v2348 = vadd.f32 %v1716, %v2346
    %v2349 = vtanh.pop %v2348
    %v2350 = vsub.f32 1.0, %v2338
    %2352 = vrot.lane.b32.xlu0 %v2349, 96
    %v2353 = vpop.permute.xlu0 %2352
    %v2355 = vmul.f32 %v2350, %v2353
    %2356 = vrot.lane.b32.xlu0 %v2249, 96
    %v2357 = vpop.permute.xlu0 %2356
    %v2359 = vmul.f32 %v2338, %v2357
    %v2360 = vadd.f32 %v2355, %v2359
    %2362 = vrot.lane.b32.xlu0 %v2324, 96
    %v2363 = vpop.permute.xlu0 %2362
    %2366 = vrot.lane.b32.xlu0 %v2360, 32
    %v2367 = vpop.permute.xlu0 %2366
    %v2369 = vsel %vm1888, %v2363, %v2367
    %v2370 = vpack.c.bf16 %v2369, %v2369
    %v2372 = vsel %vm1776, %v2370, 0
    %2374 = vmatprep.subr.bf16.mxu0 0
    %2375 = vmatpush1.bf16.msra.mxu0 0
    %2376 = vmatprep.subr.bf16.mxu0 0
    %2377 = vmatpush1.bf16.msra.mxu0 0
    %2378 = vmatprep.subr.bf16.mxu0 0
    %2379 = vmatpush1.bf16.msra.mxu0 0
    %2380 = vmatprep.subr.bf16.mxu0 0
    %2381 = vmatpush1.bf16.msra.mxu0 0
    %2382 = vmatprep.subr.bf16.mxu0 %v1767
    %2383 = vmatpush1.bf16.msra.mxu0 %v1766
    %2384 = vmatprep.subr.bf16.mxu0 %v1765
    %2385 = vmatpush1.bf16.msra.mxu0 %v1764
    %2386 = vmatprep.subr.bf16.mxu0 %v1763
    %2387 = vmatpush1.bf16.msra.mxu0 %v1762
    %2388 = vmatprep.subr.bf16.mxu0 %v1761
    %2389 = vmatpush1.bf16.msra.mxu0 %v1760
    %2390 = vmatprep.subr.bf16.mxu0 0
    %2391 = vmatpush2.bf16.msra.mxu0 0
    %2392 = vmatprep.subr.bf16.mxu0 0
    %2393 = vmatpush2.bf16.msra.mxu0 0
    %2394 = vmatprep.subr.bf16.mxu0 0
    %2395 = vmatpush2.bf16.msra.mxu0 0
    %2396 = vmatprep.subr.bf16.mxu0 0
    %2397 = vmatpush2.bf16.msra.mxu0 0
    %2398 = vmatprep.subr.bf16.mxu0 0
    %2399 = vmatpush2.bf16.msra.mxu0 0
    %2400 = vmatprep.subr.bf16.mxu0 0
    %2401 = vmatpush2.bf16.msra.mxu0 0
    %2402 = vmatprep.subr.bf16.mxu0 0
    %2403 = vmatpush2.bf16.msra.mxu0 0
    %2404 = vmatprep.subr.bf16.mxu0 0
    %2405 = vmatpush2.bf16.msra.mxu0 0
    %2406 = vmatprep.mubr.bf16.mxu0 0
    %2407 = vmatmul.mubr.bf16.gmra.mxu0 %v2372
    %v2408 = vpop.f32.mrf.mxu0
    %v2409 = vadd.f32 %v1729, %v2408
    %v2410 = vpop.f32.mrf.mxu0
    %v2411 = vadd.f32 %v1733, %v2410
    %v2412 = vpop.f32.mrf.mxu0
    %v2413 = vpop.f32.mrf.mxu0
    %2414 = vdwg.mxu0
    %v2415 = vadd.f32 %v1703, %v2409
    %v2416 = vxor.u32 %v2415, 2147483648
    %v2417 = vmul.f32 %v2416, 1.442695
    %v2418 = vpow.pop %v2417
    %v2419 = vadd.f32 %v2418, 1.0
    %v2420 = vrcp.pop %v2419
    %v2421 = vmul.f32 1.0, %v2420
    %2423 = vrot.lane.b32.xlu0 %v2409, 64
    %v2424 = vpop.permute.xlu0 %2423
    %v2426 = vmul.f32 %v2421, %v2424
    %2428 = vrot.lane.b32.xlu0 %v2426, 64
    %v2429 = vpop.permute.xlu0 %2428
    %v2431 = vadd.f32 %v1703, %v2429
    %v2432 = vtanh.pop %v2431
    %v2433 = vsub.f32 1.0, %v2421
    %2435 = vrot.lane.b32.xlu0 %v2432, 96
    %v2436 = vpop.permute.xlu0 %2435
    %v2438 = vmul.f32 %v2433, %v2436
    %2440 = vrot.lane.b32.xlu0 %v2369, 32
    %v2441 = vpop.permute.xlu0 %2440
    %v2443 = vmul.f32 %v2421, %v2441
    %v2444 = vadd.f32 %v2438, %v2443
    %v2445 = vadd.f32 %v1713, %v2409
    %v2446 = vxor.u32 %v2445, 2147483648
    %v2447 = vmul.f32 %v2446, 1.442695
    %v2448 = vpow.pop %v2447
    %v2449 = vadd.f32 %v2448, 1.0
    %v2450 = vrcp.pop %v2449
    %v2451 = vmul.f32 1.0, %v2450
    %v2452 = vadd.f32 %v1714, %v2411
    %v2453 = vxor.u32 %v2452, 2147483648
    %v2454 = vmul.f32 %v2453, 1.442695
    %v2455 = vpow.pop %v2454
    %v2456 = vadd.f32 %v2455, 1.0
    %v2457 = vrcp.pop %v2456
    %v2458 = vmul.f32 1.0, %v2457
    %2460 = vrot.lane.b32.xlu0 %v2411, 64
    %v2461 = vpop.permute.xlu0 %2460
    %v2463 = vmul.f32 %v2451, %v2461
    %2465 = vrot.lane.b32.xlu0 %v2463, 64
    %v2466 = vpop.permute.xlu0 %2465
    %v2468 = vadd.f32 %v1714, %v2466
    %v2469 = vtanh.pop %v2468
    %v2470 = vsub.f32 1.0, %v2458
    %2472 = vrot.lane.b32.xlu0 %v2469, 96
    %v2473 = vpop.permute.xlu0 %2472
    %v2475 = vmul.f32 %v2470, %v2473
    %2476 = vrot.lane.b32.xlu0 %v2369, 96
    %v2477 = vpop.permute.xlu0 %2476
    %v2479 = vmul.f32 %v2458, %v2477
    %v2480 = vadd.f32 %v2475, %v2479
    %2482 = vrot.lane.b32.xlu0 %v2444, 96
    %v2483 = vpop.permute.xlu0 %2482
    %2486 = vrot.lane.b32.xlu0 %v2480, 32
    %v2487 = vpop.permute.xlu0 %2486
    %v2489 = vsel %vm1888, %v2483, %v2487
    %v2490 = vpack.c.bf16 %v2489, %v2489
    %v2492 = vsel %vm1776, %v2490, 0
    %2494 = vmatprep.subr.bf16.mxu0 0
    %2495 = vmatpush1.bf16.msra.mxu0 0
    %2496 = vmatprep.subr.bf16.mxu0 0
    %2497 = vmatpush1.bf16.msra.mxu0 0
    %2498 = vmatprep.subr.bf16.mxu0 0
    %2499 = vmatpush1.bf16.msra.mxu0 0
    %2500 = vmatprep.subr.bf16.mxu0 0
    %2501 = vmatpush1.bf16.msra.mxu0 0
    %2502 = vmatprep.subr.bf16.mxu0 %v1767
    %2503 = vmatpush1.bf16.msra.mxu0 %v1766
    %2504 = vmatprep.subr.bf16.mxu0 %v1765
    %2505 = vmatpush1.bf16.msra.mxu0 %v1764
    %2506 = vmatprep.subr.bf16.mxu0 %v1763
    %2507 = vmatpush1.bf16.msra.mxu0 %v1762
    %2508 = vmatprep.subr.bf16.mxu0 %v1761
    %2509 = vmatpush1.bf16.msra.mxu0 %v1760
    %2510 = vmatprep.subr.bf16.mxu0 0
    %2511 = vmatpush2.bf16.msra.mxu0 0
    %2512 = vmatprep.subr.bf16.mxu0 0
    %2513 = vmatpush2.bf16.msra.mxu0 0
    %2514 = vmatprep.subr.bf16.mxu0 0
    %2515 = vmatpush2.bf16.msra.mxu0 0
    %2516 = vmatprep.subr.bf16.mxu0 0
    %2517 = vmatpush2.bf16.msra.mxu0 0
    %2518 = vmatprep.subr.bf16.mxu0 0
    %2519 = vmatpush2.bf16.msra.mxu0 0
    %2520 = vmatprep.subr.bf16.mxu0 0
    %2521 = vmatpush2.bf16.msra.mxu0 0
    %2522 = vmatprep.subr.bf16.mxu0 0
    %2523 = vmatpush2.bf16.msra.mxu0 0
    %2524 = vmatprep.subr.bf16.mxu0 0
    %2525 = vmatpush2.bf16.msra.mxu0 0
    %2526 = vmatprep.mubr.bf16.mxu0 0
    %2527 = vmatmul.mubr.bf16.gmra.mxu0 %v2492
    %v2528 = vpop.f32.mrf.mxu0
    %v2529 = vadd.f32 %v1729, %v2528
    %v2530 = vpop.f32.mrf.mxu0
    %v2531 = vadd.f32 %v1733, %v2530
    %v2532 = vpop.f32.mrf.mxu0
    %v2533 = vpop.f32.mrf.mxu0
    %2534 = vdwg.mxu0
    %v2535 = vadd.f32 %v1705, %v2529
    %v2536 = vxor.u32 %v2535, 2147483648
    %v2537 = vmul.f32 %v2536, 1.442695
    %v2538 = vpow.pop %v2537
    %v2539 = vadd.f32 %v2538, 1.0
    %v2540 = vrcp.pop %v2539
    %v2541 = vmul.f32 1.0, %v2540
    %2543 = vrot.lane.b32.xlu0 %v2529, 64
    %v2544 = vpop.permute.xlu0 %2543
    %v2546 = vmul.f32 %v2541, %v2544
    %2548 = vrot.lane.b32.xlu0 %v2546, 64
    %v2549 = vpop.permute.xlu0 %2548
    %v2551 = vadd.f32 %v1705, %v2549
    %v2552 = vtanh.pop %v2551
    %v2553 = vsub.f32 1.0, %v2541
    %2555 = vrot.lane.b32.xlu0 %v2552, 96
    %v2556 = vpop.permute.xlu0 %2555
    %v2558 = vmul.f32 %v2553, %v2556
    %2560 = vrot.lane.b32.xlu0 %v2489, 32
    %v2561 = vpop.permute.xlu0 %2560
    %v2563 = vmul.f32 %v2541, %v2561
    %v2564 = vadd.f32 %v2558, %v2563
    %v2565 = vadd.f32 %v1711, %v2529
    %v2566 = vxor.u32 %v2565, 2147483648
    %v2567 = vmul.f32 %v2566, 1.442695
    %v2568 = vpow.pop %v2567
    %v2569 = vadd.f32 %v2568, 1.0
    %v2570 = vrcp.pop %v2569
    %v2571 = vmul.f32 1.0, %v2570
    %v2572 = vadd.f32 %v1712, %v2531
    %v2573 = vxor.u32 %v2572, 2147483648
    %v2574 = vmul.f32 %v2573, 1.442695
    %v2575 = vpow.pop %v2574
    %v2576 = vadd.f32 %v2575, 1.0
    %v2577 = vrcp.pop %v2576
    %v2578 = vmul.f32 1.0, %v2577
    %2580 = vrot.lane.b32.xlu0 %v2531, 64
    %v2581 = vpop.permute.xlu0 %2580
    %v2583 = vmul.f32 %v2571, %v2581
    %2585 = vrot.lane.b32.xlu0 %v2583, 64
    %v2586 = vpop.permute.xlu0 %2585
    %v2588 = vadd.f32 %v1712, %v2586
    %v2589 = vtanh.pop %v2588
    %v2590 = vsub.f32 1.0, %v2578
    %2592 = vrot.lane.b32.xlu0 %v2589, 96
    %v2593 = vpop.permute.xlu0 %2592
    %v2595 = vmul.f32 %v2590, %v2593
    %2596 = vrot.lane.b32.xlu0 %v2489, 96
    %v2597 = vpop.permute.xlu0 %2596
    %v2599 = vmul.f32 %v2578, %v2597
    %v2600 = vadd.f32 %v2595, %v2599
    %2602 = vrot.lane.b32.xlu0 %v2564, 96
    %v2603 = vpop.permute.xlu0 %2602
    %2606 = vrot.lane.b32.xlu0 %v2600, 32
    %v2607 = vpop.permute.xlu0 %2606
    %v2609 = vsel %vm1888, %v2603, %v2607
    %v2610 = vpack.c.bf16 %v2609, %v2609
    %v2612 = vsel %vm1776, %v2610, 0
    %2614 = vmatprep.subr.bf16.mxu0 0
    %2615 = vmatpush1.bf16.msra.mxu0 0
    %2616 = vmatprep.subr.bf16.mxu0 0
    %2617 = vmatpush1.bf16.msra.mxu0 0
    %2618 = vmatprep.subr.bf16.mxu0 0
    %2619 = vmatpush1.bf16.msra.mxu0 0
    %2620 = vmatprep.subr.bf16.mxu0 0
    %2621 = vmatpush1.bf16.msra.mxu0 0
    %2622 = vmatprep.subr.bf16.mxu0 %v1767
    %2623 = vmatpush1.bf16.msra.mxu0 %v1766
    %2624 = vmatprep.subr.bf16.mxu0 %v1765
    %2625 = vmatpush1.bf16.msra.mxu0 %v1764
    %2626 = vmatprep.subr.bf16.mxu0 %v1763
    %2627 = vmatpush1.bf16.msra.mxu0 %v1762
    %2628 = vmatprep.subr.bf16.mxu0 %v1761
    %2629 = vmatpush1.bf16.msra.mxu0 %v1760
    %2630 = vmatprep.subr.bf16.mxu0 0
    %2631 = vmatpush2.bf16.msra.mxu0 0
    %2632 = vmatprep.subr.bf16.mxu0 0
    %2633 = vmatpush2.bf16.msra.mxu0 0
    %2634 = vmatprep.subr.bf16.mxu0 0
    %2635 = vmatpush2.bf16.msra.mxu0 0
    %2636 = vmatprep.subr.bf16.mxu0 0
    %2637 = vmatpush2.bf16.msra.mxu0 0
    %2638 = vmatprep.subr.bf16.mxu0 0
    %2639 = vmatpush2.bf16.msra.mxu0 0
    %2640 = vmatprep.subr.bf16.mxu0 0
    %2641 = vmatpush2.bf16.msra.mxu0 0
    %2642 = vmatprep.subr.bf16.mxu0 0
    %2643 = vmatpush2.bf16.msra.mxu0 0
    %2644 = vmatprep.subr.bf16.mxu0 0
    %2645 = vmatpush2.bf16.msra.mxu0 0
    %2646 = vmatprep.mubr.bf16.mxu0 0
    %2647 = vmatmul.mubr.bf16.gmra.mxu0 %v2612
    %v2648 = vpop.f32.mrf.mxu0
    %v2649 = vadd.f32 %v1729, %v2648
    %v2650 = vpop.f32.mrf.mxu0
    %v2651 = vadd.f32 %v1733, %v2650
    %v2652 = vpop.f32.mrf.mxu0
    %v2653 = vpop.f32.mrf.mxu0
    %2654 = vdwg.mxu0
    %v2655 = vadd.f32 %v1707, %v2649
    %v2656 = vxor.u32 %v2655, 2147483648
    %v2657 = vmul.f32 %v2656, 1.442695
    %v2658 = vpow.pop %v2657
    %v2659 = vadd.f32 %v2658, 1.0
    %v2660 = vrcp.pop %v2659
    %v2661 = vmul.f32 1.0, %v2660
    %2663 = vrot.lane.b32.xlu0 %v2649, 64
    %v2664 = vpop.permute.xlu0 %2663
    %v2666 = vmul.f32 %v2661, %v2664
    %2668 = vrot.lane.b32.xlu0 %v2666, 64
    %v2669 = vpop.permute.xlu0 %2668
    %v2671 = vadd.f32 %v1707, %v2669
    %v2672 = vtanh.pop %v2671
    %v2673 = vsub.f32 1.0, %v2661
    %2675 = vrot.lane.b32.xlu0 %v2672, 96
    %v2676 = vpop.permute.xlu0 %2675
    %v2678 = vmul.f32 %v2673, %v2676
    %2680 = vrot.lane.b32.xlu0 %v2609, 32
    %v2681 = vpop.permute.xlu0 %2680
    %v2683 = vmul.f32 %v2661, %v2681
    %v2684 = vadd.f32 %v2678, %v2683
    %v2685 = vadd.f32 %v1709, %v2649
    %v2686 = vxor.u32 %v2685, 2147483648
    %v2687 = vmul.f32 %v2686, 1.442695
    %v2688 = vpow.pop %v2687
    %v2689 = vadd.f32 %v2688, 1.0
    %v2690 = vrcp.pop %v2689
    %v2691 = vmul.f32 1.0, %v2690
    %v2692 = vadd.f32 %v1710, %v2651
    %v2693 = vxor.u32 %v2692, 2147483648
    %v2694 = vmul.f32 %v2693, 1.442695
    %v2695 = vpow.pop %v2694
    %v2696 = vadd.f32 %v2695, 1.0
    %v2697 = vrcp.pop %v2696
    %v2698 = vmul.f32 1.0, %v2697
    %2700 = vrot.lane.b32.xlu0 %v2651, 64
    %v2701 = vpop.permute.xlu0 %2700
    %v2703 = vmul.f32 %v2691, %v2701
    %2705 = vrot.lane.b32.xlu0 %v2703, 64
    %v2706 = vpop.permute.xlu0 %2705
    %v2708 = vadd.f32 %v1710, %v2706
    %v2709 = vtanh.pop %v2708
    %v2710 = vsub.f32 1.0, %v2698
    %2712 = vrot.lane.b32.xlu0 %v2709, 96
    %v2713 = vpop.permute.xlu0 %2712
    %v2715 = vmul.f32 %v2710, %v2713
    %2716 = vrot.lane.b32.xlu0 %v2609, 96
    %v2717 = vpop.permute.xlu0 %2716
    %v2719 = vmul.f32 %v2698, %v2717
    %v2720 = vadd.f32 %v2715, %v2719
    %2722 = vrot.lane.b32.xlu0 %v2684, 96
    %v2723 = vpop.permute.xlu0 %2722
    %2726 = vrot.lane.b32.xlu0 %v2720, 32
    %v2727 = vpop.permute.xlu0 %2726
    %v2729 = vsel %vm1888, %v2723, %v2727
    %v2730 = vpack.c.bf16 %v2729, %v2729
    %v2732 = vsel %vm1776, %v2730, 0
    %2734 = vmatprep.subr.bf16.mxu0 0
    %2735 = vmatpush1.bf16.msra.mxu0 0
    %2736 = vmatprep.subr.bf16.mxu0 0
    %2737 = vmatpush1.bf16.msra.mxu0 0
    %2738 = vmatprep.subr.bf16.mxu0 0
    %2739 = vmatpush1.bf16.msra.mxu0 0
    %2740 = vmatprep.subr.bf16.mxu0 0
    %2741 = vmatpush1.bf16.msra.mxu0 0
    %2742 = vmatprep.subr.bf16.mxu0 %v1767
    %2743 = vmatpush1.bf16.msra.mxu0 %v1766
    %2744 = vmatprep.subr.bf16.mxu0 %v1765
    %2745 = vmatpush1.bf16.msra.mxu0 %v1764
    %2746 = vmatprep.subr.bf16.mxu0 %v1763
    %2747 = vmatpush1.bf16.msra.mxu0 %v1762
    %2748 = vmatprep.subr.bf16.mxu0 %v1761
    %2749 = vmatpush1.bf16.msra.mxu0 %v1760
    %2750 = vmatprep.subr.bf16.mxu0 0
    %2751 = vmatpush2.bf16.msra.mxu0 0
    %2752 = vmatprep.subr.bf16.mxu0 0
    %2753 = vmatpush2.bf16.msra.mxu0 0
    %2754 = vmatprep.subr.bf16.mxu0 0
    %2755 = vmatpush2.bf16.msra.mxu0 0
    %2756 = vmatprep.subr.bf16.mxu0 0
    %2757 = vmatpush2.bf16.msra.mxu0 0
    %2758 = vmatprep.subr.bf16.mxu0 0
    %2759 = vmatpush2.bf16.msra.mxu0 0
    %2760 = vmatprep.subr.bf16.mxu0 0
    %2761 = vmatpush2.bf16.msra.mxu0 0
    %2762 = vmatprep.subr.bf16.mxu0 0
    %2763 = vmatpush2.bf16.msra.mxu0 0
    %2764 = vmatprep.subr.bf16.mxu0 0
    %2765 = vmatpush2.bf16.msra.mxu0 0
    %2766 = vmatprep.mubr.bf16.mxu0 0
    %2767 = vmatmul.mubr.bf16.gmra.mxu0 %v2732
    %v2768 = vpop.f32.mrf.mxu0
    %v2769 = vadd.f32 %v1729, %v2768
    %v2770 = vpop.f32.mrf.mxu0
    %v2771 = vadd.f32 %v1733, %v2770
    %v2772 = vpop.f32.mrf.mxu0
    %v2773 = vpop.f32.mrf.mxu0
    %2774 = vdwg.mxu0
    %v2775 = vadd.f32 %v1709, %v2769
    %v2776 = vxor.u32 %v2775, 2147483648
    %v2777 = vmul.f32 %v2776, 1.442695
    %v2778 = vpow.pop %v2777
    %v2779 = vadd.f32 %v2778, 1.0
    %v2780 = vrcp.pop %v2779
    %v2781 = vmul.f32 1.0, %v2780
    %2783 = vrot.lane.b32.xlu0 %v2769, 64
    %v2784 = vpop.permute.xlu0 %2783
    %v2786 = vmul.f32 %v2781, %v2784
    %2788 = vrot.lane.b32.xlu0 %v2786, 64
    %v2789 = vpop.permute.xlu0 %2788
    %v2791 = vadd.f32 %v1709, %v2789
    %v2792 = vtanh.pop %v2791
    %v2793 = vsub.f32 1.0, %v2781
    %2795 = vrot.lane.b32.xlu0 %v2792, 96
    %v2796 = vpop.permute.xlu0 %2795
    %v2798 = vmul.f32 %v2793, %v2796
    %2800 = vrot.lane.b32.xlu0 %v2729, 32
    %v2801 = vpop.permute.xlu0 %2800
    %v2803 = vmul.f32 %v2781, %v2801
    %v2804 = vadd.f32 %v2798, %v2803
    %v2805 = vadd.f32 %v1707, %v2769
    %v2806 = vxor.u32 %v2805, 2147483648
    %v2807 = vmul.f32 %v2806, 1.442695
    %v2808 = vpow.pop %v2807
    %v2809 = vadd.f32 %v2808, 1.0
    %v2810 = vrcp.pop %v2809
    %v2811 = vmul.f32 1.0, %v2810
    %v2812 = vadd.f32 %v1708, %v2771
    %v2813 = vxor.u32 %v2812, 2147483648
    %v2814 = vmul.f32 %v2813, 1.442695
    %v2815 = vpow.pop %v2814
    %v2816 = vadd.f32 %v2815, 1.0
    %v2817 = vrcp.pop %v2816
    %v2818 = vmul.f32 1.0, %v2817
    %2820 = vrot.lane.b32.xlu0 %v2771, 64
    %v2821 = vpop.permute.xlu0 %2820
    %v2823 = vmul.f32 %v2811, %v2821
    %2825 = vrot.lane.b32.xlu0 %v2823, 64
    %v2826 = vpop.permute.xlu0 %2825
    %v2828 = vadd.f32 %v1708, %v2826
    %v2829 = vtanh.pop %v2828
    %v2830 = vsub.f32 1.0, %v2818
    %2832 = vrot.lane.b32.xlu0 %v2829, 96
    %v2833 = vpop.permute.xlu0 %2832
    %v2835 = vmul.f32 %v2830, %v2833
    %2836 = vrot.lane.b32.xlu0 %v2729, 96
    %v2837 = vpop.permute.xlu0 %2836
    %v2839 = vmul.f32 %v2818, %v2837
    %v2840 = vadd.f32 %v2835, %v2839
    %2842 = vrot.lane.b32.xlu0 %v2804, 96
    %v2843 = vpop.permute.xlu0 %2842
    %2846 = vrot.lane.b32.xlu0 %v2840, 32
    %v2847 = vpop.permute.xlu0 %2846
    %v2849 = vsel %vm1888, %v2843, %v2847
    %v2850 = vpack.c.bf16 %v2849, %v2849
    %v2852 = vsel %vm1776, %v2850, 0
    %2854 = vmatprep.subr.bf16.mxu0 0
    %2855 = vmatpush1.bf16.msra.mxu0 0
    %2856 = vmatprep.subr.bf16.mxu0 0
    %2857 = vmatpush1.bf16.msra.mxu0 0
    %2858 = vmatprep.subr.bf16.mxu0 0
    %2859 = vmatpush1.bf16.msra.mxu0 0
    %2860 = vmatprep.subr.bf16.mxu0 0
    %2861 = vmatpush1.bf16.msra.mxu0 0
    %2862 = vmatprep.subr.bf16.mxu0 %v1767
    %2863 = vmatpush1.bf16.msra.mxu0 %v1766
    %2864 = vmatprep.subr.bf16.mxu0 %v1765
    %2865 = vmatpush1.bf16.msra.mxu0 %v1764
    %2866 = vmatprep.subr.bf16.mxu0 %v1763
    %2867 = vmatpush1.bf16.msra.mxu0 %v1762
    %2868 = vmatprep.subr.bf16.mxu0 %v1761
    %2869 = vmatpush1.bf16.msra.mxu0 %v1760
    %2870 = vmatprep.subr.bf16.mxu0 0
    %2871 = vmatpush2.bf16.msra.mxu0 0
    %2872 = vmatprep.subr.bf16.mxu0 0
    %2873 = vmatpush2.bf16.msra.mxu0 0
    %2874 = vmatprep.subr.bf16.mxu0 0
    %2875 = vmatpush2.bf16.msra.mxu0 0
    %2876 = vmatprep.subr.bf16.mxu0 0
    %2877 = vmatpush2.bf16.msra.mxu0 0
    %2878 = vmatprep.subr.bf16.mxu0 0
    %2879 = vmatpush2.bf16.msra.mxu0 0
    %2880 = vmatprep.subr.bf16.mxu0 0
    %2881 = vmatpush2.bf16.msra.mxu0 0
    %2882 = vmatprep.subr.bf16.mxu0 0
    %2883 = vmatpush2.bf16.msra.mxu0 0
    %2884 = vmatprep.subr.bf16.mxu0 0
    %2885 = vmatpush2.bf16.msra.mxu0 0
    %2886 = vmatprep.mubr.bf16.mxu0 0
    %2887 = vmatmul.mubr.bf16.gmra.mxu0 %v2852
    %v2888 = vpop.f32.mrf.mxu0
    %v2889 = vadd.f32 %v1729, %v2888
    %v2890 = vpop.f32.mrf.mxu0
    %v2891 = vadd.f32 %v1733, %v2890
    %v2892 = vpop.f32.mrf.mxu0
    %v2893 = vpop.f32.mrf.mxu0
    %2894 = vdwg.mxu0
    %v2895 = vadd.f32 %v1711, %v2889
    %v2896 = vxor.u32 %v2895, 2147483648
    %v2897 = vmul.f32 %v2896, 1.442695
    %v2898 = vpow.pop %v2897
    %v2899 = vadd.f32 %v2898, 1.0
    %v2900 = vrcp.pop %v2899
    %v2901 = vmul.f32 1.0, %v2900
    %2903 = vrot.lane.b32.xlu0 %v2889, 64
    %v2904 = vpop.permute.xlu0 %2903
    %v2906 = vmul.f32 %v2901, %v2904
    %2908 = vrot.lane.b32.xlu0 %v2906, 64
    %v2909 = vpop.permute.xlu0 %2908
    %v2911 = vadd.f32 %v1711, %v2909
    %v2912 = vtanh.pop %v2911
    %v2913 = vsub.f32 1.0, %v2901
    %2915 = vrot.lane.b32.xlu0 %v2912, 96
    %v2916 = vpop.permute.xlu0 %2915
    %v2918 = vmul.f32 %v2913, %v2916
    %2920 = vrot.lane.b32.xlu0 %v2849, 32
    %v2921 = vpop.permute.xlu0 %2920
    %v2923 = vmul.f32 %v2901, %v2921
    %v2924 = vadd.f32 %v2918, %v2923
    %v2925 = vadd.f32 %v1705, %v2889
    %v2926 = vxor.u32 %v2925, 2147483648
    %v2927 = vmul.f32 %v2926, 1.442695
    %v2928 = vpow.pop %v2927
    %v2929 = vadd.f32 %v2928, 1.0
    %v2930 = vrcp.pop %v2929
    %v2931 = vmul.f32 1.0, %v2930
    %v2932 = vadd.f32 %v1706, %v2891
    %v2933 = vxor.u32 %v2932, 2147483648
    %v2934 = vmul.f32 %v2933, 1.442695
    %v2935 = vpow.pop %v2934
    %v2936 = vadd.f32 %v2935, 1.0
    %v2937 = vrcp.pop %v2936
    %v2938 = vmul.f32 1.0, %v2937
    %2940 = vrot.lane.b32.xlu0 %v2891, 64
    %v2941 = vpop.permute.xlu0 %2940
    %v2943 = vmul.f32 %v2931, %v2941
    %2945 = vrot.lane.b32.xlu0 %v2943, 64
    %v2946 = vpop.permute.xlu0 %2945
    %v2948 = vadd.f32 %v1706, %v2946
    %v2949 = vtanh.pop %v2948
    %v2950 = vsub.f32 1.0, %v2938
    %2952 = vrot.lane.b32.xlu0 %v2949, 96
    %v2953 = vpop.permute.xlu0 %2952
    %v2955 = vmul.f32 %v2950, %v2953
    %2956 = vrot.lane.b32.xlu0 %v2849, 96
    %v2957 = vpop.permute.xlu0 %2956
    %v2959 = vmul.f32 %v2938, %v2957
    %v2960 = vadd.f32 %v2955, %v2959
    %2962 = vrot.lane.b32.xlu0 %v2924, 96
    %v2963 = vpop.permute.xlu0 %2962
    %2966 = vrot.lane.b32.xlu0 %v2960, 32
    %v2967 = vpop.permute.xlu0 %2966
    %v2969 = vsel %vm1888, %v2963, %v2967
    %v2970 = vpack.c.bf16 %v2969, %v2969
    %v2972 = vsel %vm1776, %v2970, 0
    %2974 = vmatprep.subr.bf16.mxu0 0
    %2975 = vmatpush1.bf16.msra.mxu0 0
    %2976 = vmatprep.subr.bf16.mxu0 0
    %2977 = vmatpush1.bf16.msra.mxu0 0
    %2978 = vmatprep.subr.bf16.mxu0 0
    %2979 = vmatpush1.bf16.msra.mxu0 0
    %2980 = vmatprep.subr.bf16.mxu0 0
    %2981 = vmatpush1.bf16.msra.mxu0 0
    %2982 = vmatprep.subr.bf16.mxu0 %v1767
    %2983 = vmatpush1.bf16.msra.mxu0 %v1766
    %2984 = vmatprep.subr.bf16.mxu0 %v1765
    %2985 = vmatpush1.bf16.msra.mxu0 %v1764
    %2986 = vmatprep.subr.bf16.mxu0 %v1763
    %2987 = vmatpush1.bf16.msra.mxu0 %v1762
    %2988 = vmatprep.subr.bf16.mxu0 %v1761
    %2989 = vmatpush1.bf16.msra.mxu0 %v1760
    %2990 = vmatprep.subr.bf16.mxu0 0
    %2991 = vmatpush2.bf16.msra.mxu0 0
    %2992 = vmatprep.subr.bf16.mxu0 0
    %2993 = vmatpush2.bf16.msra.mxu0 0
    %2994 = vmatprep.subr.bf16.mxu0 0
    %2995 = vmatpush2.bf16.msra.mxu0 0
    %2996 = vmatprep.subr.bf16.mxu0 0
    %2997 = vmatpush2.bf16.msra.mxu0 0
    %2998 = vmatprep.subr.bf16.mxu0 0
    %2999 = vmatpush2.bf16.msra.mxu0 0
    %3000 = vmatprep.subr.bf16.mxu0 0
    %3001 = vmatpush2.bf16.msra.mxu0 0
    %3002 = vmatprep.subr.bf16.mxu0 0
    %3003 = vmatpush2.bf16.msra.mxu0 0
    %3004 = vmatprep.subr.bf16.mxu0 0
    %3005 = vmatpush2.bf16.msra.mxu0 0
    %3006 = vmatprep.mubr.bf16.mxu0 0
    %3007 = vmatmul.mubr.bf16.gmra.mxu0 %v2972
    %v3008 = vpop.f32.mrf.mxu0
    %v3009 = vadd.f32 %v1729, %v3008
    %v3010 = vpop.f32.mrf.mxu0
    %v3011 = vadd.f32 %v1733, %v3010
    %v3012 = vpop.f32.mrf.mxu0
    %v3013 = vpop.f32.mrf.mxu0
    %3014 = vdwg.mxu0
    %v3015 = vadd.f32 %v1713, %v3009
    %v3016 = vxor.u32 %v3015, 2147483648
    %v3017 = vmul.f32 %v3016, 1.442695
    %v3018 = vpow.pop %v3017
    %v3019 = vadd.f32 %v3018, 1.0
    %v3020 = vrcp.pop %v3019
    %v3021 = vmul.f32 1.0, %v3020
    %3023 = vrot.lane.b32.xlu0 %v3009, 64
    %v3024 = vpop.permute.xlu0 %3023
    %v3026 = vmul.f32 %v3021, %v3024
    %3028 = vrot.lane.b32.xlu0 %v3026, 64
    %v3029 = vpop.permute.xlu0 %3028
    %v3031 = vadd.f32 %v1713, %v3029
    %v3032 = vtanh.pop %v3031
    %v3033 = vsub.f32 1.0, %v3021
    %3035 = vrot.lane.b32.xlu0 %v3032, 96
    %v3036 = vpop.permute.xlu0 %3035
    %v3038 = vmul.f32 %v3033, %v3036
    %3040 = vrot.lane.b32.xlu0 %v2969, 32
    %v3041 = vpop.permute.xlu0 %3040
    %v3043 = vmul.f32 %v3021, %v3041
    %v3044 = vadd.f32 %v3038, %v3043
    %v3045 = vadd.f32 %v1703, %v3009
    %v3046 = vxor.u32 %v3045, 2147483648
    %v3047 = vmul.f32 %v3046, 1.442695
    %v3048 = vpow.pop %v3047
    %v3049 = vadd.f32 %v3048, 1.0
    %v3050 = vrcp.pop %v3049
    %v3051 = vmul.f32 1.0, %v3050
    %v3052 = vadd.f32 %v1704, %v3011
    %v3053 = vxor.u32 %v3052, 2147483648
    %v3054 = vmul.f32 %v3053, 1.442695
    %v3055 = vpow.pop %v3054
    %v3056 = vadd.f32 %v3055, 1.0
    %v3057 = vrcp.pop %v3056
    %v3058 = vmul.f32 1.0, %v3057
    %3060 = vrot.lane.b32.xlu0 %v3011, 64
    %v3061 = vpop.permute.xlu0 %3060
    %v3063 = vmul.f32 %v3051, %v3061
    %3065 = vrot.lane.b32.xlu0 %v3063, 64
    %v3066 = vpop.permute.xlu0 %3065
    %v3068 = vadd.f32 %v1704, %v3066
    %v3069 = vtanh.pop %v3068
    %v3070 = vsub.f32 1.0, %v3058
    %3072 = vrot.lane.b32.xlu0 %v3069, 96
    %v3073 = vpop.permute.xlu0 %3072
    %v3075 = vmul.f32 %v3070, %v3073
    %3076 = vrot.lane.b32.xlu0 %v2969, 96
    %v3077 = vpop.permute.xlu0 %3076
    %v3079 = vmul.f32 %v3058, %v3077
    %v3080 = vadd.f32 %v3075, %v3079
    %3082 = vrot.lane.b32.xlu0 %v3044, 96
    %v3083 = vpop.permute.xlu0 %3082
    %3086 = vrot.lane.b32.xlu0 %v3080, 32
    %v3087 = vpop.permute.xlu0 %3086
    %v3089 = vsel %vm1888, %v3083, %v3087
    %v3090 = vpack.c.bf16 %v3089, %v3089
    %v3092 = vsel %vm1776, %v3090, 0
    %3094 = vmatprep.subr.bf16.mxu0 0
    %3095 = vmatpush1.bf16.msra.mxu0 0
    %3096 = vmatprep.subr.bf16.mxu0 0
    %3097 = vmatpush1.bf16.msra.mxu0 0
    %3098 = vmatprep.subr.bf16.mxu0 0
    %3099 = vmatpush1.bf16.msra.mxu0 0
    %3100 = vmatprep.subr.bf16.mxu0 0
    %3101 = vmatpush1.bf16.msra.mxu0 0
    %3102 = vmatprep.subr.bf16.mxu0 %v1767
    %3103 = vmatpush1.bf16.msra.mxu0 %v1766
    %3104 = vmatprep.subr.bf16.mxu0 %v1765
    %3105 = vmatpush1.bf16.msra.mxu0 %v1764
    %3106 = vmatprep.subr.bf16.mxu0 %v1763
    %3107 = vmatpush1.bf16.msra.mxu0 %v1762
    %3108 = vmatprep.subr.bf16.mxu0 %v1761
    %3109 = vmatpush1.bf16.msra.mxu0 %v1760
    %3110 = vmatprep.subr.bf16.mxu0 0
    %3111 = vmatpush2.bf16.msra.mxu0 0
    %3112 = vmatprep.subr.bf16.mxu0 0
    %3113 = vmatpush2.bf16.msra.mxu0 0
    %3114 = vmatprep.subr.bf16.mxu0 0
    %3115 = vmatpush2.bf16.msra.mxu0 0
    %3116 = vmatprep.subr.bf16.mxu0 0
    %3117 = vmatpush2.bf16.msra.mxu0 0
    %3118 = vmatprep.subr.bf16.mxu0 0
    %3119 = vmatpush2.bf16.msra.mxu0 0
    %3120 = vmatprep.subr.bf16.mxu0 0
    %3121 = vmatpush2.bf16.msra.mxu0 0
    %3122 = vmatprep.subr.bf16.mxu0 0
    %3123 = vmatpush2.bf16.msra.mxu0 0
    %3124 = vmatprep.subr.bf16.mxu0 0
    %3125 = vmatpush2.bf16.msra.mxu0 0
    %3126 = vmatprep.mubr.bf16.mxu0 0
    %3127 = vmatmul.mubr.bf16.gmra.mxu0 %v3092
    %v3128 = vpop.f32.mrf.mxu0
    %v3129 = vadd.f32 %v1729, %v3128
    %v3130 = vpop.f32.mrf.mxu0
    %v3131 = vadd.f32 %v1733, %v3130
    %v3132 = vpop.f32.mrf.mxu0
    %v3133 = vpop.f32.mrf.mxu0
    %3134 = vdwg.mxu0
    %v3135 = vadd.f32 %v1715, %v3129
    %v3136 = vxor.u32 %v3135, 2147483648
    %v3137 = vmul.f32 %v3136, 1.442695
    %v3138 = vpow.pop %v3137
    %v3139 = vadd.f32 %v3138, 1.0
    %v3140 = vrcp.pop %v3139
    %v3141 = vmul.f32 1.0, %v3140
    %3143 = vrot.lane.b32.xlu0 %v3129, 64
    %v3144 = vpop.permute.xlu0 %3143
    %v3146 = vmul.f32 %v3141, %v3144
    %3148 = vrot.lane.b32.xlu0 %v3146, 64
    %v3149 = vpop.permute.xlu0 %3148
    %v3151 = vadd.f32 %v1715, %v3149
    %v3152 = vtanh.pop %v3151
    %v3153 = vsub.f32 1.0, %v3141
    %3155 = vrot.lane.b32.xlu0 %v3152, 96
    %v3156 = vpop.permute.xlu0 %3155
    %v3158 = vmul.f32 %v3153, %v3156
    %3160 = vrot.lane.b32.xlu0 %v3089, 32
    %v3161 = vpop.permute.xlu0 %3160
    %v3163 = vmul.f32 %v3141, %v3161
    %v3164 = vadd.f32 %v3158, %v3163
    %v3165 = vadd.f32 %v1701, %v3129
    %v3166 = vxor.u32 %v3165, 2147483648
    %v3167 = vmul.f32 %v3166, 1.442695
    %v3168 = vpow.pop %v3167
    %v3169 = vadd.f32 %v3168, 1.0
    %v3170 = vrcp.pop %v3169
    %v3171 = vmul.f32 1.0, %v3170
    %v3172 = vadd.f32 %v1702, %v3131
    %v3173 = vxor.u32 %v3172, 2147483648
    %v3174 = vmul.f32 %v3173, 1.442695
    %v3175 = vpow.pop %v3174
    %v3176 = vadd.f32 %v3175, 1.0
    %v3177 = vrcp.pop %v3176
    %v3178 = vmul.f32 1.0, %v3177
    %3180 = vrot.lane.b32.xlu0 %v3131, 64
    %v3181 = vpop.permute.xlu0 %3180
    %v3183 = vmul.f32 %v3171, %v3181
    %3185 = vrot.lane.b32.xlu0 %v3183, 64
    %v3186 = vpop.permute.xlu0 %3185
    %v3188 = vadd.f32 %v1702, %v3186
    %v3189 = vtanh.pop %v3188
    %v3190 = vsub.f32 1.0, %v3178
    %3192 = vrot.lane.b32.xlu0 %v3189, 96
    %v3193 = vpop.permute.xlu0 %3192
    %v3195 = vmul.f32 %v3190, %v3193
    %3196 = vrot.lane.b32.xlu0 %v3089, 96
    %v3197 = vpop.permute.xlu0 %3196
    %v3199 = vmul.f32 %v3178, %v3197
    %v3200 = vadd.f32 %v3195, %v3199
    %3202 = vrot.lane.b32.xlu0 %v3164, 96
    %v3203 = vpop.permute.xlu0 %3202
    %3206 = vrot.lane.b32.xlu0 %v3200, 32
    %v3207 = vpop.permute.xlu0 %3206
    %v3209 = vsel %vm1888, %v3203, %v3207
    %v3210 = vpack.c.bf16 %v3209, %v3209
    %v3212 = vsel %vm1776, %v3210, 0
    %3214 = vmatprep.subr.bf16.mxu0 0
    %3215 = vmatpush1.bf16.msra.mxu0 0
    %3216 = vmatprep.subr.bf16.mxu0 0
    %3217 = vmatpush1.bf16.msra.mxu0 0
    %3218 = vmatprep.subr.bf16.mxu0 0
    %3219 = vmatpush1.bf16.msra.mxu0 0
    %3220 = vmatprep.subr.bf16.mxu0 0
    %3221 = vmatpush1.bf16.msra.mxu0 0
    %3222 = vmatprep.subr.bf16.mxu0 %v1767
    %3223 = vmatpush1.bf16.msra.mxu0 %v1766
    %3224 = vmatprep.subr.bf16.mxu0 %v1765
    %3225 = vmatpush1.bf16.msra.mxu0 %v1764
    %3226 = vmatprep.subr.bf16.mxu0 %v1763
    %3227 = vmatpush1.bf16.msra.mxu0 %v1762
    %3228 = vmatprep.subr.bf16.mxu0 %v1761
    %3229 = vmatpush1.bf16.msra.mxu0 %v1760
    %3230 = vmatprep.subr.bf16.mxu0 0
    %3231 = vmatpush2.bf16.msra.mxu0 0
    %3232 = vmatprep.subr.bf16.mxu0 0
    %3233 = vmatpush2.bf16.msra.mxu0 0
    %3234 = vmatprep.subr.bf16.mxu0 0
    %3235 = vmatpush2.bf16.msra.mxu0 0
    %3236 = vmatprep.subr.bf16.mxu0 0
    %3237 = vmatpush2.bf16.msra.mxu0 0
    %3238 = vmatprep.subr.bf16.mxu0 0
    %3239 = vmatpush2.bf16.msra.mxu0 0
    %3240 = vmatprep.subr.bf16.mxu0 0
    %3241 = vmatpush2.bf16.msra.mxu0 0
    %3242 = vmatprep.subr.bf16.mxu0 0
    %3243 = vmatpush2.bf16.msra.mxu0 0
    %3244 = vmatprep.subr.bf16.mxu0 0
    %3245 = vmatpush2.bf16.msra.mxu0 0
    %3246 = vmatprep.mubr.bf16.mxu0 0
    %3247 = vmatmul.mubr.bf16.gmra.mxu0 %v3212
    %v3248 = vpop.f32.mrf.mxu0
    %v3249 = vadd.f32 %v1729, %v3248
    %v3250 = vpop.f32.mrf.mxu0
    %v3251 = vadd.f32 %v1733, %v3250
    %v3252 = vpop.f32.mrf.mxu0
    %v3253 = vpop.f32.mrf.mxu0
    %3254 = vdwg.mxu0
    %v3255 = vadd.f32 %v1717, %v3249
    %v3256 = vxor.u32 %v3255, 2147483648
    %v3257 = vmul.f32 %v3256, 1.442695
    %v3258 = vpow.pop %v3257
    %v3259 = vadd.f32 %v3258, 1.0
    %v3260 = vrcp.pop %v3259
    %v3261 = vmul.f32 1.0, %v3260
    %3263 = vrot.lane.b32.xlu0 %v3249, 64
    %v3264 = vpop.permute.xlu0 %3263
    %v3266 = vmul.f32 %v3261, %v3264
    %3268 = vrot.lane.b32.xlu0 %v3266, 64
    %v3269 = vpop.permute.xlu0 %3268
    %v3271 = vadd.f32 %v1717, %v3269
    %v3272 = vtanh.pop %v3271
    %v3273 = vsub.f32 1.0, %v3261
    %3275 = vrot.lane.b32.xlu0 %v3272, 96
    %v3276 = vpop.permute.xlu0 %3275
    %v3278 = vmul.f32 %v3273, %v3276
    %3280 = vrot.lane.b32.xlu0 %v3209, 32
    %v3281 = vpop.permute.xlu0 %3280
    %v3283 = vmul.f32 %v3261, %v3281
    %v3284 = vadd.f32 %v3278, %v3283
    %v3285 = vadd.f32 %v1699, %v3249
    %v3286 = vxor.u32 %v3285, 2147483648
    %v3287 = vmul.f32 %v3286, 1.442695
    %v3288 = vpow.pop %v3287
    %v3289 = vadd.f32 %v3288, 1.0
    %v3290 = vrcp.pop %v3289
    %v3291 = vmul.f32 1.0, %v3290
    %v3292 = vadd.f32 %v1700, %v3251
    %v3293 = vxor.u32 %v3292, 2147483648
    %v3294 = vmul.f32 %v3293, 1.442695
    %v3295 = vpow.pop %v3294
    %v3296 = vadd.f32 %v3295, 1.0
    %v3297 = vrcp.pop %v3296
    %v3298 = vmul.f32 1.0, %v3297
    %3300 = vrot.lane.b32.xlu0 %v3251, 64
    %v3301 = vpop.permute.xlu0 %3300
    %v3303 = vmul.f32 %v3291, %v3301
    %3305 = vrot.lane.b32.xlu0 %v3303, 64
    %v3306 = vpop.permute.xlu0 %3305
    %v3308 = vadd.f32 %v1700, %v3306
    %v3309 = vtanh.pop %v3308
    %v3310 = vsub.f32 1.0, %v3298
    %3312 = vrot.lane.b32.xlu0 %v3309, 96
    %v3313 = vpop.permute.xlu0 %3312
    %v3315 = vmul.f32 %v3310, %v3313
    %3316 = vrot.lane.b32.xlu0 %v3209, 96
    %v3317 = vpop.permute.xlu0 %3316
    %v3319 = vmul.f32 %v3298, %v3317
    %v3320 = vadd.f32 %v3315, %v3319
    %3322 = vrot.lane.b32.xlu0 %v3284, 96
    %v3323 = vpop.permute.xlu0 %3322
    %3326 = vrot.lane.b32.xlu0 %v3320, 32
    %v3327 = vpop.permute.xlu0 %3326
    %v3329 = vsel %vm1888, %v3323, %v3327
    %v3330 = vpack.c.bf16 %v3329, %v3329
    %v3332 = vsel %vm1776, %v3330, 0
    %3334 = vmatprep.subr.bf16.mxu0 0
    %3335 = vmatpush1.bf16.msra.mxu0 0
    %3336 = vmatprep.subr.bf16.mxu0 0
    %3337 = vmatpush1.bf16.msra.mxu0 0
    %3338 = vmatprep.subr.bf16.mxu0 0
    %3339 = vmatpush1.bf16.msra.mxu0 0
    %3340 = vmatprep.subr.bf16.mxu0 0
    %3341 = vmatpush1.bf16.msra.mxu0 0
    %3342 = vmatprep.subr.bf16.mxu0 %v1767
    %3343 = vmatpush1.bf16.msra.mxu0 %v1766
    %3344 = vmatprep.subr.bf16.mxu0 %v1765
    %3345 = vmatpush1.bf16.msra.mxu0 %v1764
    %3346 = vmatprep.subr.bf16.mxu0 %v1763
    %3347 = vmatpush1.bf16.msra.mxu0 %v1762
    %3348 = vmatprep.subr.bf16.mxu0 %v1761
    %3349 = vmatpush1.bf16.msra.mxu0 %v1760
    %3350 = vmatprep.subr.bf16.mxu0 0
    %3351 = vmatpush2.bf16.msra.mxu0 0
    %3352 = vmatprep.subr.bf16.mxu0 0
    %3353 = vmatpush2.bf16.msra.mxu0 0
    %3354 = vmatprep.subr.bf16.mxu0 0
    %3355 = vmatpush2.bf16.msra.mxu0 0
    %3356 = vmatprep.subr.bf16.mxu0 0
    %3357 = vmatpush2.bf16.msra.mxu0 0
    %3358 = vmatprep.subr.bf16.mxu0 0
    %3359 = vmatpush2.bf16.msra.mxu0 0
    %3360 = vmatprep.subr.bf16.mxu0 0
    %3361 = vmatpush2.bf16.msra.mxu0 0
    %3362 = vmatprep.subr.bf16.mxu0 0
    %3363 = vmatpush2.bf16.msra.mxu0 0
    %3364 = vmatprep.subr.bf16.mxu0 0
    %3365 = vmatpush2.bf16.msra.mxu0 0
    %3366 = vmatprep.mubr.bf16.mxu0 0
    %3367 = vmatmul.mubr.bf16.gmra.mxu0 %v3332
    %v3368 = vpop.f32.mrf.mxu0
    %v3369 = vadd.f32 %v1729, %v3368
    %v3370 = vpop.f32.mrf.mxu0
    %v3371 = vadd.f32 %v1733, %v3370
    %v3372 = vpop.f32.mrf.mxu0
    %v3373 = vpop.f32.mrf.mxu0
    %3374 = vdwg.mxu0
    %v3375 = vadd.f32 %v1719, %v3369
    %v3376 = vxor.u32 %v3375, 2147483648
    %v3377 = vmul.f32 %v3376, 1.442695
    %v3378 = vpow.pop %v3377
    %v3379 = vadd.f32 %v3378, 1.0
    %v3380 = vrcp.pop %v3379
    %v3381 = vmul.f32 1.0, %v3380
    %3383 = vrot.lane.b32.xlu0 %v3369, 64
    %v3384 = vpop.permute.xlu0 %3383
    %v3386 = vmul.f32 %v3381, %v3384
    %3388 = vrot.lane.b32.xlu0 %v3386, 64
    %v3389 = vpop.permute.xlu0 %3388
    %v3391 = vadd.f32 %v1719, %v3389
    %v3392 = vtanh.pop %v3391
    %v3393 = vsub.f32 1.0, %v3381
    %3395 = vrot.lane.b32.xlu0 %v3392, 96
    %v3396 = vpop.permute.xlu0 %3395
    %v3398 = vmul.f32 %v3393, %v3396
    %3400 = vrot.lane.b32.xlu0 %v3329, 32
    %v3401 = vpop.permute.xlu0 %3400
    %v3403 = vmul.f32 %v3381, %v3401
    %v3404 = vadd.f32 %v3398, %v3403
    %v3405 = vadd.f32 %v1697, %v3369
    %v3406 = vxor.u32 %v3405, 2147483648
    %v3407 = vmul.f32 %v3406, 1.442695
    %v3408 = vpow.pop %v3407
    %v3409 = vadd.f32 %v3408, 1.0
    %v3410 = vrcp.pop %v3409
    %v3411 = vmul.f32 1.0, %v3410
    %v3412 = vadd.f32 %v1698, %v3371
    %v3413 = vxor.u32 %v3412, 2147483648
    %v3414 = vmul.f32 %v3413, 1.442695
    %v3415 = vpow.pop %v3414
    %v3416 = vadd.f32 %v3415, 1.0
    %v3417 = vrcp.pop %v3416
    %v3418 = vmul.f32 1.0, %v3417
    %3420 = vrot.lane.b32.xlu0 %v3371, 64
    %v3421 = vpop.permute.xlu0 %3420
    %v3423 = vmul.f32 %v3411, %v3421
    %3425 = vrot.lane.b32.xlu0 %v3423, 64
    %v3426 = vpop.permute.xlu0 %3425
    %v3428 = vadd.f32 %v1698, %v3426
    %v3429 = vtanh.pop %v3428
    %v3430 = vsub.f32 1.0, %v3418
    %3432 = vrot.lane.b32.xlu0 %v3429, 96
    %v3433 = vpop.permute.xlu0 %3432
    %v3435 = vmul.f32 %v3430, %v3433
    %3436 = vrot.lane.b32.xlu0 %v3329, 96
    %v3437 = vpop.permute.xlu0 %3436
    %v3439 = vmul.f32 %v3418, %v3437
    %v3440 = vadd.f32 %v3435, %v3439
    %3442 = vrot.lane.b32.xlu0 %v3404, 96
    %v3443 = vpop.permute.xlu0 %3442
    %3446 = vrot.lane.b32.xlu0 %v3440, 32
    %v3447 = vpop.permute.xlu0 %3446
    %v3449 = vsel %vm1888, %v3443, %v3447
    %v3450 = vpack.c.bf16 %v3449, %v3449
    %v3452 = vsel %vm1776, %v3450, 0
    %3454 = vmatprep.subr.bf16.mxu0 0
    %3455 = vmatpush1.bf16.msra.mxu0 0
    %3456 = vmatprep.subr.bf16.mxu0 0
    %3457 = vmatpush1.bf16.msra.mxu0 0
    %3458 = vmatprep.subr.bf16.mxu0 0
    %3459 = vmatpush1.bf16.msra.mxu0 0
    %3460 = vmatprep.subr.bf16.mxu0 0
    %3461 = vmatpush1.bf16.msra.mxu0 0
    %3462 = vmatprep.subr.bf16.mxu0 %v1767
    %3463 = vmatpush1.bf16.msra.mxu0 %v1766
    %3464 = vmatprep.subr.bf16.mxu0 %v1765
    %3465 = vmatpush1.bf16.msra.mxu0 %v1764
    %3466 = vmatprep.subr.bf16.mxu0 %v1763
    %3467 = vmatpush1.bf16.msra.mxu0 %v1762
    %3468 = vmatprep.subr.bf16.mxu0 %v1761
    %3469 = vmatpush1.bf16.msra.mxu0 %v1760
    %3470 = vmatprep.subr.bf16.mxu0 0
    %3471 = vmatpush2.bf16.msra.mxu0 0
    %3472 = vmatprep.subr.bf16.mxu0 0
    %3473 = vmatpush2.bf16.msra.mxu0 0
    %3474 = vmatprep.subr.bf16.mxu0 0
    %3475 = vmatpush2.bf16.msra.mxu0 0
    %3476 = vmatprep.subr.bf16.mxu0 0
    %3477 = vmatpush2.bf16.msra.mxu0 0
    %3478 = vmatprep.subr.bf16.mxu0 0
    %3479 = vmatpush2.bf16.msra.mxu0 0
    %3480 = vmatprep.subr.bf16.mxu0 0
    %3481 = vmatpush2.bf16.msra.mxu0 0
    %3482 = vmatprep.subr.bf16.mxu0 0
    %3483 = vmatpush2.bf16.msra.mxu0 0
    %3484 = vmatprep.subr.bf16.mxu0 0
    %3485 = vmatpush2.bf16.msra.mxu0 0
    %3486 = vmatprep.mubr.bf16.mxu0 0
    %3487 = vmatmul.mubr.bf16.gmra.mxu0 %v3452
    %v3488 = vpop.f32.mrf.mxu0
    %v3489 = vadd.f32 %v1729, %v3488
    %v3490 = vpop.f32.mrf.mxu0
    %v3491 = vadd.f32 %v1733, %v3490
    %v3492 = vpop.f32.mrf.mxu0
    %v3493 = vpop.f32.mrf.mxu0
    %3494 = vdwg.mxu0
    %v3495 = vadd.f32 %v1721, %v3489
    %v3496 = vxor.u32 %v3495, 2147483648
    %v3497 = vmul.f32 %v3496, 1.442695
    %v3498 = vpow.pop %v3497
    %v3499 = vadd.f32 %v3498, 1.0
    %v3500 = vrcp.pop %v3499
    %v3501 = vmul.f32 1.0, %v3500
    %3503 = vrot.lane.b32.xlu0 %v3489, 64
    %v3504 = vpop.permute.xlu0 %3503
    %v3506 = vmul.f32 %v3501, %v3504
    %3508 = vrot.lane.b32.xlu0 %v3506, 64
    %v3509 = vpop.permute.xlu0 %3508
    %v3511 = vadd.f32 %v1721, %v3509
    %v3512 = vtanh.pop %v3511
    %v3513 = vsub.f32 1.0, %v3501
    %3515 = vrot.lane.b32.xlu0 %v3512, 96
    %v3516 = vpop.permute.xlu0 %3515
    %v3518 = vmul.f32 %v3513, %v3516
    %3520 = vrot.lane.b32.xlu0 %v3449, 32
    %v3521 = vpop.permute.xlu0 %3520
    %v3523 = vmul.f32 %v3501, %v3521
    %v3524 = vadd.f32 %v3518, %v3523
    %v3525 = vadd.f32 %v1695, %v3489
    %v3526 = vxor.u32 %v3525, 2147483648
    %v3527 = vmul.f32 %v3526, 1.442695
    %v3528 = vpow.pop %v3527
    %v3529 = vadd.f32 %v3528, 1.0
    %v3530 = vrcp.pop %v3529
    %v3531 = vmul.f32 1.0, %v3530
    %v3532 = vadd.f32 %v1696, %v3491
    %v3533 = vxor.u32 %v3532, 2147483648
    %v3534 = vmul.f32 %v3533, 1.442695
    %v3535 = vpow.pop %v3534
    %v3536 = vadd.f32 %v3535, 1.0
    %v3537 = vrcp.pop %v3536
    %v3538 = vmul.f32 1.0, %v3537
    %3540 = vrot.lane.b32.xlu0 %v3491, 64
    %v3541 = vpop.permute.xlu0 %3540
    %v3543 = vmul.f32 %v3531, %v3541
    %3545 = vrot.lane.b32.xlu0 %v3543, 64
    %v3546 = vpop.permute.xlu0 %3545
    %v3548 = vadd.f32 %v1696, %v3546
    %v3549 = vtanh.pop %v3548
    %v3550 = vsub.f32 1.0, %v3538
    %3552 = vrot.lane.b32.xlu0 %v3549, 96
    %v3553 = vpop.permute.xlu0 %3552
    %v3555 = vmul.f32 %v3550, %v3553
    %3556 = vrot.lane.b32.xlu0 %v3449, 96
    %v3557 = vpop.permute.xlu0 %3556
    %v3559 = vmul.f32 %v3538, %v3557
    %v3560 = vadd.f32 %v3555, %v3559
    %3562 = vrot.lane.b32.xlu0 %v3524, 96
    %v3563 = vpop.permute.xlu0 %3562
    %3566 = vrot.lane.b32.xlu0 %v3560, 32
    %v3567 = vpop.permute.xlu0 %3566
    %v3569 = vsel %vm1888, %v3563, %v3567
    %v3570 = vpack.c.bf16 %v3569, %v3569
    %v3572 = vsel %vm1776, %v3570, 0
    %3574 = vmatprep.subr.bf16.mxu0 0
    %3575 = vmatpush1.bf16.msra.mxu0 0
    %3576 = vmatprep.subr.bf16.mxu0 0
    %3577 = vmatpush1.bf16.msra.mxu0 0
    %3578 = vmatprep.subr.bf16.mxu0 0
    %3579 = vmatpush1.bf16.msra.mxu0 0
    %3580 = vmatprep.subr.bf16.mxu0 0
    %3581 = vmatpush1.bf16.msra.mxu0 0
    %3582 = vmatprep.subr.bf16.mxu0 %v1767
    %3583 = vmatpush1.bf16.msra.mxu0 %v1766
    %3584 = vmatprep.subr.bf16.mxu0 %v1765
    %3585 = vmatpush1.bf16.msra.mxu0 %v1764
    %3586 = vmatprep.subr.bf16.mxu0 %v1763
    %3587 = vmatpush1.bf16.msra.mxu0 %v1762
    %3588 = vmatprep.subr.bf16.mxu0 %v1761
    %3589 = vmatpush1.bf16.msra.mxu0 %v1760
    %3590 = vmatprep.subr.bf16.mxu0 0
    %3591 = vmatpush2.bf16.msra.mxu0 0
    %3592 = vmatprep.subr.bf16.mxu0 0
    %3593 = vmatpush2.bf16.msra.mxu0 0
    %3594 = vmatprep.subr.bf16.mxu0 0
    %3595 = vmatpush2.bf16.msra.mxu0 0
    %3596 = vmatprep.subr.bf16.mxu0 0
    %3597 = vmatpush2.bf16.msra.mxu0 0
    %3598 = vmatprep.subr.bf16.mxu0 0
    %3599 = vmatpush2.bf16.msra.mxu0 0
    %3600 = vmatprep.subr.bf16.mxu0 0
    %3601 = vmatpush2.bf16.msra.mxu0 0
    %3602 = vmatprep.subr.bf16.mxu0 0
    %3603 = vmatpush2.bf16.msra.mxu0 0
    %3604 = vmatprep.subr.bf16.mxu0 0
    %3605 = vmatpush2.bf16.msra.mxu0 0
    %3606 = vmatprep.mubr.bf16.mxu0 0
    %3607 = vmatmul.mubr.bf16.gmra.mxu0 %v3572
    %v3608 = vpop.f32.mrf.mxu0
    %v3609 = vadd.f32 %v1729, %v3608
    %v3610 = vpop.f32.mrf.mxu0
    %v3611 = vadd.f32 %v1733, %v3610
    %v3612 = vpop.f32.mrf.mxu0
    %v3613 = vpop.f32.mrf.mxu0
    %3614 = vdwg.mxu0
    %v3615 = vadd.f32 %v1723, %v3609
    %v3616 = vxor.u32 %v3615, 2147483648
    %v3617 = vmul.f32 %v3616, 1.442695
    %v3618 = vpow.pop %v3617
    %v3619 = vadd.f32 %v3618, 1.0
    %v3620 = vrcp.pop %v3619
    %v3621 = vmul.f32 1.0, %v3620
    %3623 = vrot.lane.b32.xlu0 %v3609, 64
    %v3624 = vpop.permute.xlu0 %3623
    %v3626 = vmul.f32 %v3621, %v3624
    %3628 = vrot.lane.b32.xlu0 %v3626, 64
    %v3629 = vpop.permute.xlu0 %3628
    %v3631 = vadd.f32 %v1723, %v3629
    %v3632 = vtanh.pop %v3631
    %v3633 = vsub.f32 1.0, %v3621
    %3635 = vrot.lane.b32.xlu0 %v3632, 96
    %v3636 = vpop.permute.xlu0 %3635
    %v3638 = vmul.f32 %v3633, %v3636
    %3640 = vrot.lane.b32.xlu0 %v3569, 32
    %v3641 = vpop.permute.xlu0 %3640
    %v3643 = vmul.f32 %v3621, %v3641
    %v3644 = vadd.f32 %v3638, %v3643
    %v3645 = vadd.f32 %v1693, %v3609
    %v3646 = vxor.u32 %v3645, 2147483648
    %v3647 = vmul.f32 %v3646, 1.442695
    %v3648 = vpow.pop %v3647
    %v3649 = vadd.f32 %v3648, 1.0
    %v3650 = vrcp.pop %v3649
    %v3651 = vmul.f32 1.0, %v3650
    %v3652 = vadd.f32 %v1694, %v3611
    %v3653 = vxor.u32 %v3652, 2147483648
    %v3654 = vmul.f32 %v3653, 1.442695
    %v3655 = vpow.pop %v3654
    %v3656 = vadd.f32 %v3655, 1.0
    %v3657 = vrcp.pop %v3656
    %v3658 = vmul.f32 1.0, %v3657
    %3660 = vrot.lane.b32.xlu0 %v3611, 64
    %v3661 = vpop.permute.xlu0 %3660
    %v3663 = vmul.f32 %v3651, %v3661
    %3665 = vrot.lane.b32.xlu0 %v3663, 64
    %v3666 = vpop.permute.xlu0 %3665
    %v3668 = vadd.f32 %v1694, %v3666
    %v3669 = vtanh.pop %v3668
    %v3670 = vsub.f32 1.0, %v3658
    %3672 = vrot.lane.b32.xlu0 %v3669, 96
    %v3673 = vpop.permute.xlu0 %3672
    %v3675 = vmul.f32 %v3670, %v3673
    %3676 = vrot.lane.b32.xlu0 %v3569, 96
    %v3677 = vpop.permute.xlu0 %3676
    %v3679 = vmul.f32 %v3658, %v3677
    %v3680 = vadd.f32 %v3675, %v3679
    %3682 = vrot.lane.b32.xlu0 %v3680, 32
    %v3683 = vpop.permute.xlu0 %3682
    %v3685 = vsel %vm1888, %v1882, %v3683
    %v3686 = vsel %vm1888, %v2003, %v3567
    %v3687 = vsel %vm1888, %v2123, %v3447
    %v3688 = vsel %vm1888, %v2243, %v3327
    %v3689 = vsel %vm1888, %v2363, %v3207
    %v3690 = vsel %vm1888, %v2483, %v3087
    %v3691 = vsel %vm1888, %v2603, %v2967
    %v3692 = vsel %vm1888, %v2723, %v2847
    %v3693 = vsel %vm1888, %v2843, %v2727
    %v3694 = vsel %vm1888, %v2963, %v2607
    %v3695 = vsel %vm1888, %v3083, %v2487
    %v3696 = vsel %vm1888, %v3203, %v2367
    %v3697 = vsel %vm1888, %v3323, %v2247
    %v3698 = vsel %vm1888, %v3443, %v2127
    %v3699 = vsel %vm1888, %v3563, %v2007
    %3701 = vrot.lane.b32.xlu0 %v3644, 96
    %v3702 = vpop.permute.xlu0 %3701
    %v3704 = vsel %vm1888, %v3702, %v1886
    %v3707 = vunpack.c.l.s4 1966171168
    %v3708 = vunpack.c.0.s8 %v3707
    %v3709 = vlaneseq
    %v3710 = vshrl.u32 %v3709, 7
    %v3711 = vsub.s32 %v3708, %v3710
    %v3712 = vrot.slane %v3685, %v3711
    %v3713 = vcombine.high %v3712, %v3712
    %v3715 = vunpack.c.l.s4 1966171168
    %v3716 = vunpack.c.0.s8 %v3715
    %v3717 = vlaneseq
    %v3718 = vshrl.u32 %v3717, 7
    %v3719 = vsub.s32 %v3716, %v3718
    %v3720 = vrot.slane %v3712, %v3719
    %v3722 = vunpack.c.l.s4 1966171168
    %v3723 = vunpack.c.0.s8 %v3722
    %v3724 = vlaneseq
    %v3725 = vshrl.u32 %v3724, 7
    %v3726 = vsub.s32 %v3723, %v3725
    %v3727 = vrot.slane %v3713, %v3726
    %v3732 = vunpack.c.l.s4 1966171168
    %v3733 = vunpack.c.0.s8 %v3732
    %v3734 = vlaneseq
    %v3735 = vshrl.u32 %v3734, 7
    %v3736 = vsub.s32 %v3733, %v3735
    %v3737 = vrot.slane %v3686, %v3736
    %v3738 = vcombine.high %v3737, %v3737
    %v3740 = vunpack.c.l.s4 1966171168
    %v3741 = vunpack.c.0.s8 %v3740
    %v3742 = vlaneseq
    %v3743 = vshrl.u32 %v3742, 7
    %v3744 = vsub.s32 %v3741, %v3743
    %v3745 = vrot.slane %v3737, %v3744
    %v3747 = vunpack.c.l.s4 1966171168
    %v3748 = vunpack.c.0.s8 %v3747
    %v3749 = vlaneseq
    %v3750 = vshrl.u32 %v3749, 7
    %v3751 = vsub.s32 %v3748, %v3750
    %v3752 = vrot.slane %v3738, %v3751
    %v3755 = vunpack.c.l.s4 1966171168
    %v3756 = vunpack.c.0.s8 %v3755
    %v3757 = vlaneseq
    %v3758 = vshrl.u32 %v3757, 7
    %v3759 = vsub.s32 %v3756, %v3758
    %v3760 = vrot.slane %v3687, %v3759
    %v3761 = vcombine.high %v3760, %v3760
    %v3763 = vunpack.c.l.s4 1966171168
    %v3764 = vunpack.c.0.s8 %v3763
    %v3765 = vlaneseq
    %v3766 = vshrl.u32 %v3765, 7
    %v3767 = vsub.s32 %v3764, %v3766
    %v3768 = vrot.slane %v3760, %v3767
    %v3770 = vunpack.c.l.s4 1966171168
    %v3771 = vunpack.c.0.s8 %v3770
    %v3772 = vlaneseq
    %v3773 = vshrl.u32 %v3772, 7
    %v3774 = vsub.s32 %v3771, %v3773
    %v3775 = vrot.slane %v3761, %v3774
    %v3778 = vunpack.c.l.s4 1966171168
    %v3779 = vunpack.c.0.s8 %v3778
    %v3780 = vlaneseq
    %v3781 = vshrl.u32 %v3780, 7
    %v3782 = vsub.s32 %v3779, %v3781
    %v3783 = vrot.slane %v3688, %v3782
    %v3784 = vcombine.high %v3783, %v3783
    %v3786 = vunpack.c.l.s4 1966171168
    %v3787 = vunpack.c.0.s8 %v3786
    %v3788 = vlaneseq
    %v3789 = vshrl.u32 %v3788, 7
    %v3790 = vsub.s32 %v3787, %v3789
    %v3791 = vrot.slane %v3783, %v3790
    %v3793 = vunpack.c.l.s4 1966171168
    %v3794 = vunpack.c.0.s8 %v3793
    %v3795 = vlaneseq
    %v3796 = vshrl.u32 %v3795, 7
    %v3797 = vsub.s32 %v3794, %v3796
    %v3798 = vrot.slane %v3784, %v3797
    %v3801 = vunpack.c.l.s4 1966171168
    %v3802 = vunpack.c.0.s8 %v3801
    %v3803 = vlaneseq
    %v3804 = vshrl.u32 %v3803, 7
    %v3805 = vsub.s32 %v3802, %v3804
    %v3806 = vrot.slane %v3689, %v3805
    %v3807 = vcombine.high %v3806, %v3806
    %v3809 = vunpack.c.l.s4 1966171168
    %v3810 = vunpack.c.0.s8 %v3809
    %v3811 = vlaneseq
    %v3812 = vshrl.u32 %v3811, 7
    %v3813 = vsub.s32 %v3810, %v3812
    %v3814 = vrot.slane %v3806, %v3813
    %v3816 = vunpack.c.l.s4 1966171168
    %v3817 = vunpack.c.0.s8 %v3816
    %v3818 = vlaneseq
    %v3819 = vshrl.u32 %v3818, 7
    %v3820 = vsub.s32 %v3817, %v3819
    %v3821 = vrot.slane %v3807, %v3820
    %v3824 = vunpack.c.l.s4 1966171168
    %v3825 = vunpack.c.0.s8 %v3824
    %v3826 = vlaneseq
    %v3827 = vshrl.u32 %v3826, 7
    %v3828 = vsub.s32 %v3825, %v3827
    %v3829 = vrot.slane %v3690, %v3828
    %v3830 = vcombine.high %v3829, %v3829
    %v3832 = vunpack.c.l.s4 1966171168
    %v3833 = vunpack.c.0.s8 %v3832
    %v3834 = vlaneseq
    %v3835 = vshrl.u32 %v3834, 7
    %v3836 = vsub.s32 %v3833, %v3835
    %v3837 = vrot.slane %v3829, %v3836
    %v3839 = vunpack.c.l.s4 1966171168
    %v3840 = vunpack.c.0.s8 %v3839
    %v3841 = vlaneseq
    %v3842 = vshrl.u32 %v3841, 7
    %v3843 = vsub.s32 %v3840, %v3842
    %v3844 = vrot.slane %v3830, %v3843
    %v3847 = vunpack.c.l.s4 1966171168
    %v3848 = vunpack.c.0.s8 %v3847
    %v3849 = vlaneseq
    %v3850 = vshrl.u32 %v3849, 7
    %v3851 = vsub.s32 %v3848, %v3850
    %v3852 = vrot.slane %v3691, %v3851
    %v3853 = vcombine.high %v3852, %v3852
    %v3855 = vunpack.c.l.s4 1966171168
    %v3856 = vunpack.c.0.s8 %v3855
    %v3857 = vlaneseq
    %v3858 = vshrl.u32 %v3857, 7
    %v3859 = vsub.s32 %v3856, %v3858
    %v3860 = vrot.slane %v3852, %v3859
    %v3862 = vunpack.c.l.s4 1966171168
    %v3863 = vunpack.c.0.s8 %v3862
    %v3864 = vlaneseq
    %v3865 = vshrl.u32 %v3864, 7
    %v3866 = vsub.s32 %v3863, %v3865
    %v3867 = vrot.slane %v3853, %v3866
    %v3870 = vunpack.c.l.s4 1966171168
    %v3871 = vunpack.c.0.s8 %v3870
    %v3872 = vlaneseq
    %v3873 = vshrl.u32 %v3872, 7
    %v3874 = vsub.s32 %v3871, %v3873
    %v3875 = vrot.slane %v3692, %v3874
    %v3876 = vcombine.high %v3875, %v3875
    %v3878 = vunpack.c.l.s4 1966171168
    %v3879 = vunpack.c.0.s8 %v3878
    %v3880 = vlaneseq
    %v3881 = vshrl.u32 %v3880, 7
    %v3882 = vsub.s32 %v3879, %v3881
    %v3883 = vrot.slane %v3875, %v3882
    %v3885 = vunpack.c.l.s4 1966171168
    %v3886 = vunpack.c.0.s8 %v3885
    %v3887 = vlaneseq
    %v3888 = vshrl.u32 %v3887, 7
    %v3889 = vsub.s32 %v3886, %v3888
    %v3890 = vrot.slane %v3876, %v3889
    %v3893 = vunpack.c.l.s4 1966171168
    %v3894 = vunpack.c.0.s8 %v3893
    %v3895 = vlaneseq
    %v3896 = vshrl.u32 %v3895, 7
    %v3897 = vsub.s32 %v3894, %v3896
    %v3898 = vrot.slane %v3693, %v3897
    %v3899 = vcombine.high %v3898, %v3898
    %v3901 = vunpack.c.l.s4 1966171168
    %v3902 = vunpack.c.0.s8 %v3901
    %v3903 = vlaneseq
    %v3904 = vshrl.u32 %v3903, 7
    %v3905 = vsub.s32 %v3902, %v3904
    %v3906 = vrot.slane %v3898, %v3905
    %v3908 = vunpack.c.l.s4 1966171168
    %v3909 = vunpack.c.0.s8 %v3908
    %v3910 = vlaneseq
    %v3911 = vshrl.u32 %v3910, 7
    %v3912 = vsub.s32 %v3909, %v3911
    %v3913 = vrot.slane %v3899, %v3912
    %v3918 = vunpack.c.l.s4 1966171168
    %v3919 = vunpack.c.0.s8 %v3918
    %v3920 = vlaneseq
    %v3921 = vshrl.u32 %v3920, 7
    %v3922 = vsub.s32 %v3919, %v3921
    %v3923 = vrot.slane %v3694, %v3922
    %v3924 = vcombine.high %v3923, %v3923
    %v3926 = vunpack.c.l.s4 1966171168
    %v3927 = vunpack.c.0.s8 %v3926
    %v3928 = vlaneseq
    %v3929 = vshrl.u32 %v3928, 7
    %v3930 = vsub.s32 %v3927, %v3929
    %v3931 = vrot.slane %v3923, %v3930
    %v3933 = vunpack.c.l.s4 1966171168
    %v3934 = vunpack.c.0.s8 %v3933
    %v3935 = vlaneseq
    %v3936 = vshrl.u32 %v3935, 7
    %v3937 = vsub.s32 %v3934, %v3936
    %v3938 = vrot.slane %v3924, %v3937
    %v3941 = vunpack.c.l.s4 1966171168
    %v3942 = vunpack.c.0.s8 %v3941
    %v3943 = vlaneseq
    %v3944 = vshrl.u32 %v3943, 7
    %v3945 = vsub.s32 %v3942, %v3944
    %v3946 = vrot.slane %v3695, %v3945
    %v3947 = vcombine.high %v3946, %v3946
    %v3949 = vunpack.c.l.s4 1966171168
    %v3950 = vunpack.c.0.s8 %v3949
    %v3951 = vlaneseq
    %v3952 = vshrl.u32 %v3951, 7
    %v3953 = vsub.s32 %v3950, %v3952
    %v3954 = vrot.slane %v3946, %v3953
    %v3956 = vunpack.c.l.s4 1966171168
    %v3957 = vunpack.c.0.s8 %v3956
    %v3958 = vlaneseq
    %v3959 = vshrl.u32 %v3958, 7
    %v3960 = vsub.s32 %v3957, %v3959
    %v3961 = vrot.slane %v3947, %v3960
    %v3964 = vunpack.c.l.s4 1966171168
    %v3965 = vunpack.c.0.s8 %v3964
    %v3966 = vlaneseq
    %v3967 = vshrl.u32 %v3966, 7
    %v3968 = vsub.s32 %v3965, %v3967
    %v3969 = vrot.slane %v3696, %v3968
    %v3970 = vcombine.high %v3969, %v3969
    %v3972 = vunpack.c.l.s4 1966171168
    %v3973 = vunpack.c.0.s8 %v3972
    %v3974 = vlaneseq
    %v3975 = vshrl.u32 %v3974, 7
    %v3976 = vsub.s32 %v3973, %v3975
    %v3977 = vrot.slane %v3969, %v3976
    %v3979 = vunpack.c.l.s4 1966171168
    %v3980 = vunpack.c.0.s8 %v3979
    %v3981 = vlaneseq
    %v3982 = vshrl.u32 %v3981, 7
    %v3983 = vsub.s32 %v3980, %v3982
    %v3984 = vrot.slane %v3970, %v3983
    %v3987 = vunpack.c.l.s4 1966171168
    %v3988 = vunpack.c.0.s8 %v3987
    %v3989 = vlaneseq
    %v3990 = vshrl.u32 %v3989, 7
    %v3991 = vsub.s32 %v3988, %v3990
    %v3992 = vrot.slane %v3697, %v3991
    %v3993 = vcombine.high %v3992, %v3992
    %v3995 = vunpack.c.l.s4 1966171168
    %v3996 = vunpack.c.0.s8 %v3995
    %v3997 = vlaneseq
    %v3998 = vshrl.u32 %v3997, 7
    %v3999 = vsub.s32 %v3996, %v3998
    %v4000 = vrot.slane %v3992, %v3999
    %v4002 = vunpack.c.l.s4 1966171168
    %v4003 = vunpack.c.0.s8 %v4002
    %v4004 = vlaneseq
    %v4005 = vshrl.u32 %v4004, 7
    %v4006 = vsub.s32 %v4003, %v4005
    %v4007 = vrot.slane %v3993, %v4006
    %v4010 = vunpack.c.l.s4 1966171168
    %v4011 = vunpack.c.0.s8 %v4010
    %v4012 = vlaneseq
    %v4013 = vshrl.u32 %v4012, 7
    %v4014 = vsub.s32 %v4011, %v4013
    %v4015 = vrot.slane %v3698, %v4014
    %v4016 = vcombine.high %v4015, %v4015
    %v4018 = vunpack.c.l.s4 1966171168
    %v4019 = vunpack.c.0.s8 %v4018
    %v4020 = vlaneseq
    %v4021 = vshrl.u32 %v4020, 7
    %v4022 = vsub.s32 %v4019, %v4021
    %v4023 = vrot.slane %v4015, %v4022
    %v4025 = vunpack.c.l.s4 1966171168
    %v4026 = vunpack.c.0.s8 %v4025
    %v4027 = vlaneseq
    %v4028 = vshrl.u32 %v4027, 7
    %v4029 = vsub.s32 %v4026, %v4028
    %v4030 = vrot.slane %v4016, %v4029
    %v4033 = vunpack.c.l.s4 1966171168
    %v4034 = vunpack.c.0.s8 %v4033
    %v4035 = vlaneseq
    %v4036 = vshrl.u32 %v4035, 7
    %v4037 = vsub.s32 %v4034, %v4036
    %v4038 = vrot.slane %v3699, %v4037
    %v4039 = vcombine.high %v4038, %v4038
    %v4041 = vunpack.c.l.s4 1966171168
    %v4042 = vunpack.c.0.s8 %v4041
    %v4043 = vlaneseq
    %v4044 = vshrl.u32 %v4043, 7
    %v4045 = vsub.s32 %v4042, %v4044
    %v4046 = vrot.slane %v4038, %v4045
    %v4048 = vunpack.c.l.s4 1966171168
    %v4049 = vunpack.c.0.s8 %v4048
    %v4050 = vlaneseq
    %v4051 = vshrl.u32 %v4050, 7
    %v4052 = vsub.s32 %v4049, %v4051
    %v4053 = vrot.slane %v4039, %v4052
    %v4056 = vunpack.c.l.s4 1966171168
    %v4057 = vunpack.c.0.s8 %v4056
    %v4058 = vlaneseq
    %v4059 = vshrl.u32 %v4058, 7
    %v4060 = vsub.s32 %v4057, %v4059
    %v4061 = vrot.slane %v3704, %v4060
    %v4062 = vcombine.high %v4061, %v4061
    %v4064 = vunpack.c.l.s4 1966171168
    %v4065 = vunpack.c.0.s8 %v4064
    %v4066 = vlaneseq
    %v4067 = vshrl.u32 %v4066, 7
    %v4068 = vsub.s32 %v4065, %v4067
    %v4069 = vrot.slane %v4061, %v4068
    %v4071 = vunpack.c.l.s4 1966171168
    %v4072 = vunpack.c.0.s8 %v4071
    %v4073 = vlaneseq
    %v4074 = vshrl.u32 %v4073, 7
    %v4075 = vsub.s32 %v4072, %v4074
    %v4076 = vrot.slane %v4062, %v4075
    %v4077 = vlaneseq
    %v4078 = vshrl.u32 %v4077, 7
    %v4079 = vsub.s32 0, %v4078
    %v4080 = vrot.slane %v3745, %v4079
    %v4081 = vlaneseq
    %v4082 = vshrl.u32 %v4081, 7
    %v4083 = vsub.s32 0, %v4082
    %v4084 = vrot.slane %v3752, %v4083
    %v4087 = vlaneseq
    %v4088 = vshrl.u32 %v4087, 7
    %v4089 = vsub.s32 0, %v4088
    %v4090 = vrot.slane %v3768, %v4089
    %v4091 = vlaneseq
    %v4092 = vshrl.u32 %v4091, 7
    %v4093 = vsub.s32 0, %v4092
    %v4094 = vrot.slane %v3775, %v4093
    %v4097 = vlaneseq
    %v4098 = vshrl.u32 %v4097, 7
    %v4099 = vsub.s32 0, %v4098
    %v4100 = vrot.slane %v3791, %v4099
    %v4101 = vlaneseq
    %v4102 = vshrl.u32 %v4101, 7
    %v4103 = vsub.s32 0, %v4102
    %v4104 = vrot.slane %v3798, %v4103
    %v4107 = vlaneseq
    %v4108 = vshrl.u32 %v4107, 7
    %v4109 = vsub.s32 0, %v4108
    %v4110 = vrot.slane %v3814, %v4109
    %v4111 = vlaneseq
    %v4112 = vshrl.u32 %v4111, 7
    %v4113 = vsub.s32 0, %v4112
    %v4114 = vrot.slane %v3821, %v4113
    %v4117 = vlaneseq
    %v4118 = vshrl.u32 %v4117, 7
    %v4119 = vsub.s32 0, %v4118
    %v4120 = vrot.slane %v3837, %v4119
    %v4121 = vlaneseq
    %v4122 = vshrl.u32 %v4121, 7
    %v4123 = vsub.s32 0, %v4122
    %v4124 = vrot.slane %v3844, %v4123
    %v4127 = vlaneseq
    %v4128 = vshrl.u32 %v4127, 7
    %v4129 = vsub.s32 0, %v4128
    %v4130 = vrot.slane %v3860, %v4129
    %v4131 = vlaneseq
    %v4132 = vshrl.u32 %v4131, 7
    %v4133 = vsub.s32 0, %v4132
    %v4134 = vrot.slane %v3867, %v4133
    %v4137 = vlaneseq
    %v4138 = vshrl.u32 %v4137, 7
    %v4139 = vsub.s32 0, %v4138
    %v4140 = vrot.slane %v3883, %v4139
    %v4141 = vlaneseq
    %v4142 = vshrl.u32 %v4141, 7
    %v4143 = vsub.s32 0, %v4142
    %v4144 = vrot.slane %v3890, %v4143
    %v4147 = vlaneseq
    %v4148 = vshrl.u32 %v4147, 7
    %v4149 = vsub.s32 0, %v4148
    %v4150 = vrot.slane %v3931, %v4149
    %v4151 = vlaneseq
    %v4152 = vshrl.u32 %v4151, 7
    %v4153 = vsub.s32 0, %v4152
    %v4154 = vrot.slane %v3938, %v4153
    %v4157 = vlaneseq
    %v4158 = vshrl.u32 %v4157, 7
    %v4159 = vsub.s32 0, %v4158
    %v4160 = vrot.slane %v3954, %v4159
    %v4161 = vlaneseq
    %v4162 = vshrl.u32 %v4161, 7
    %v4163 = vsub.s32 0, %v4162
    %v4164 = vrot.slane %v3961, %v4163
    %v4167 = vlaneseq
    %v4168 = vshrl.u32 %v4167, 7
    %v4169 = vsub.s32 0, %v4168
    %v4170 = vrot.slane %v3977, %v4169
    %v4171 = vlaneseq
    %v4172 = vshrl.u32 %v4171, 7
    %v4173 = vsub.s32 0, %v4172
    %v4174 = vrot.slane %v3984, %v4173
    %v4177 = vlaneseq
    %v4178 = vshrl.u32 %v4177, 7
    %v4179 = vsub.s32 0, %v4178
    %v4180 = vrot.slane %v4000, %v4179
    %v4181 = vlaneseq
    %v4182 = vshrl.u32 %v4181, 7
    %v4183 = vsub.s32 0, %v4182
    %v4184 = vrot.slane %v4007, %v4183
    %v4187 = vlaneseq
    %v4188 = vshrl.u32 %v4187, 7
    %v4189 = vsub.s32 0, %v4188
    %v4190 = vrot.slane %v4023, %v4189
    %v4191 = vlaneseq
    %v4192 = vshrl.u32 %v4191, 7
    %v4193 = vsub.s32 0, %v4192
    %v4194 = vrot.slane %v4030, %v4193
    %v4197 = vlaneseq
    %v4198 = vshrl.u32 %v4197, 7
    %v4199 = vsub.s32 0, %v4198
    %v4200 = vrot.slane %v4046, %v4199
    %v4201 = vlaneseq
    %v4202 = vshrl.u32 %v4201, 7
    %v4203 = vsub.s32 0, %v4202
    %v4204 = vrot.slane %v4053, %v4203
    %v4207 = vlaneseq
    %v4208 = vshrl.u32 %v4207, 7
    %v4209 = vsub.s32 0, %v4208
    %v4210 = vrot.slane %v4069, %v4209
    %v4211 = vlaneseq
    %v4212 = vshrl.u32 %v4211, 7
    %v4213 = vsub.s32 0, %v4212
    %v4214 = vrot.slane %v4076, %v4213
    %v4217 = vsel %vm1692, %v3720, %v4080
    %v4218 = vsel %vm1692, %v3727, %v4084
    %vm4219 = vcmask 1041408
    %v4220 = vsel %vm4219, %v4217, %v4090
    %v4221 = vsel %vm4219, %v4218, %v4094
    %v4222 = vsel %vm1101, %v4220, %v4100
    %v4223 = vsel %vm1101, %v4221, %v4104
    %v4224 = vsel %vm1102, %v4222, %v4110
    %v4225 = vsel %vm1102, %v4223, %v4114
    %vm4226 = vcmask 1044480
    %v4227 = vsel %vm4226, %v4224, %v4120
    %v4228 = vsel %vm4226, %v4225, %v4124
    %v4229 = vsel %vm101, %v4227, %v4130
    %v4230 = vsel %vm101, %v4228, %v4134
    %vm4231 = vcmask 1046528
    %v4232 = vsel %vm4231, %v4229, %v4140
    %v4233 = vsel %vm4231, %v4230, %v4144
    %v4234 = vsel %vm1692, %v3906, %v4150
    %v4235 = vsel %vm1692, %v3913, %v4154
    %v4236 = vsel %vm4219, %v4234, %v4160
    %v4237 = vsel %vm4219, %v4235, %v4164
    %v4238 = vsel %vm1101, %v4236, %v4170
    %v4239 = vsel %vm1101, %v4237, %v4174
    %v4240 = vsel %vm1102, %v4238, %v4180
    %v4241 = vsel %vm1102, %v4239, %v4184
    %v4242 = vsel %vm4226, %v4240, %v4190
    %v4243 = vsel %vm4226, %v4241, %v4194
    %v4244 = vsel %vm101, %v4242, %v4200
    %v4245 = vsel %vm101, %v4243, %v4204
    %v4246 = vsel %vm4231, %v4244, %v4210
    %v4247 = vsel %vm4231, %v4245, %v4214
    %vm4248 = vcmp.ge.f32.partialorder %v4232, 0.0
    %vm4249 = vcmp.ge.f32.partialorder %v4246, 0.0
    %vm4250 = vcmp.ge.f32.partialorder %v4233, 0.0
    %vm4251 = vcmp.ge.f32.partialorder %v4247, 0.0
    %v4252 = vmul.f32 %v4232, 0.01
    %v4253 = vmul.f32 %v4246, 0.01
    %v4254 = vmul.f32 %v4233, 0.01
    %v4255 = vmul.f32 %v4247, 0.01
    %v4256 = vsel %vm4248, %v4232, %v4252
    %v4257 = vsel %vm4249, %v4246, %v4253
    %v4258 = vsel %vm4250, %v4233, %v4254
    %v4259 = vsel %vm4251, %v4247, %v4255
    %4260 = vst.msk [vmem:[#allocation2] sm:$0xff] %vm1776, %v4256
    %4261 = vst.msk [vmem:[#allocation2 + $0x8] sm:$0xff] %vm1776, %v4257
    %4262 = vst.msk [vmem:[#allocation2 + $0x10] sm:$0xff] %vm1776, %v4258
    %4263 = vst.msk [vmem:[#allocation2 + $0x18] sm:$0xff] %vm1776, %v4259
    // Predicated region
    $region38: #{protein_cnn_forward.1} parent=1 // pred_check
      _
    $region39: #{protein_cnn_forward.1} parent=1 // pred_check_branch
      %4265 = sbr.rel (0) target = $region41
    $region40: #{protein_cnn_forward.1} parent=1 // pred_region
      %s4267 = ssub.s32 512, 512
      %4268 = vsyncadd [#allocation3], %s4267
      %s4269 = sshll.u32 [#allocation2], 4
      %s4270 = int_to_ptr.vmem [resolvable:$true] %s4269
      %4275 = dma.vmem_to_hbm [thread:$0]  %s4270, 512, %s9, [#allocation3], 128, 128, 8
    $region41: #{protein_cnn_forward.1} parent=1 // pred_fallthru
      _
    // Predicated region
    $region42: #{protein_cnn_forward.1} parent=1 // pred_check
      _
    $region43: #{protein_cnn_forward.1} parent=1 // pred_check_branch
      %4277 = sbr.rel (0) target = $region45
    $region44: #{protein_cnn_forward.1} parent=1 // pred_region
      %4278 = dma.done [#allocation3], 512
    $region45: #{protein_cnn_forward.1} parent=1 // pred_fallthru
      _
    %4279 = vsyncpa [#allocation3], 1

</llo_original>
